<compile_context>
chip_gen: v7x
topology: tpu7x:2x2x1
jax: 0.10.0
libtpu: 0.0.40
codegen_flags: <defaults>
</compile_context>

<pallas_src>
import functools
import math

import jax
import jax.numpy as jnp
from jax.experimental import pallas as pl
from jax.experimental.pallas import tpu as pltpu


# ----------------------------- small helpers ---------------------------------

def _round_up(n, m):
    return (n + m - 1) // m * m


def _gelu(x):
    # TODO(synk): PyTorch nn.GELU() default is the exact erf form; the tanh
    # approximation is used here for robust Mosaic lowering (diff ~1e-3).
    return jax.nn.gelu(x, approximate=True)


def _layernorm(x, gamma, beta, eps=1e-5):
    mu = jnp.mean(x, axis=-1, keepdims=True)
    var = jnp.mean((x - mu) ** 2, axis=-1, keepdims=True)
    return (x - mu) * jax.lax.rsqrt(var + eps) * gamma + beta


# --------------------------------- the kernel ---------------------------------

def vishwamai_layer_kernel(
    x_ref,
    w_qkv_ref, b_qkv_ref, w_o_ref, b_o_ref, pf_feat_ref,
    w_gates_ref, b_gates_ref, arg_w2_ref, arg_b2_ref,
    ffn_w1_ref, ffn_b1_ref, ffn_w2_ref, ffn_b2_ref,
    ln_g_ref, ln_b_ref,
    out_ref,
    *, num_heads, gate_dim_p, depth_factor):
    f32 = jnp.float32
    bf16 = jnp.bfloat16

    xs = x_ref[...]                               # (S, D) f32 (batch dim squeezed)
    S, D = xs.shape
    H = num_heads
    hd = D // H

    xb = xs.astype(bf16)
    avg = jnp.mean(xs, axis=0, keepdims=True)     # (1, D) f32

    # --- fused gating heads: [ARG hidden | TAA gate | attn gate | pad] -------
    gate_pre = (jnp.dot(avg.astype(bf16), w_gates_ref[...],
                        preferred_element_type=f32) + b_gates_ref[...])
    arg_h = _gelu(gate_pre[:, :gate_dim_p])       # padded columns are exactly 0
    arg_g = jax.nn.sigmoid(
        jnp.dot(arg_h.astype(bf16), arg_w2_ref[...], preferred_element_type=f32)
        + arg_b2_ref[...])                                        # (1, 2)
    gate_tail = gate_pre[:, gate_dim_p:gate_dim_p + 4]            # 128-aligned
    taa_g = jax.nn.softmax(gate_tail[:, 0:2], axis=-1)
    attn_g = jax.nn.softmax(gate_tail[:, 2:4], axis=-1)

    # arg_g[:, 0] (attn_weight) is computed by the module but never consumed.
    ffn_scale = arg_g[:, 1:2] * depth_factor                      # (1, 1)
    c_moe = attn_g[:, 0:1] * depth_factor
    c_sp = attn_g[:, 1:2] * taa_g[:, 0:1] * depth_factor
    c_pf = attn_g[:, 1:2] * taa_g[:, 1:2] * depth_factor

    # --- fused QKV for all three attention branches: one (S,D)@(D,9D) --------
    qkv = (jnp.dot(xb, w_qkv_ref[...], preferred_element_type=f32)
           + b_qkv_ref[...])                                      # (S, 9D) f32
    qkv_bf = qkv.astype(bf16)                                     # single cast

    # Column layout (set in _pack_params, heads contiguous inside each D):
    #   [moe_q | moe_k | moe_v | sp_q | sp_k | sp_v | pf_q | pf_k | pf_v]
    def head_cols(blk, h):                                        # (S, hd) view
        base = blk * D + h * hd
        return qkv_bf[:, base:base + hd]

    w_o = w_o_ref[...]                 # (3D, D) bf16, rows [moe | sp | pf]
    contract_last = (((1,), (1,)), ((), ()))      # A @ B.T without a transpose

    # --- softmax attention (MoE + sparse stand-ins) fused with their output
    # projections: each head's context accumulates straight into the (S, D)
    # branch output -> no head-merge / branch concat, one (S,S) live at a time.
    # 1/sqrt(hd) is folded into the q columns of w_qkv at pack time.
    # TODO(synk): OptimizedMoEAttention / DynamicSparseAttention internals not
    # provided; standard MHA stand-ins (sparse is exact only for top_k >= S).
    def sdpa_branch(q_blk, k_blk, v_blk, wo_row0):
        out = None
        for h in range(H):
            q, k, v = head_cols(q_blk, h), head_cols(k_blk, h), head_cols(v_blk, h)
            s = jax.lax.dot_general(q, k, contract_last,
                                    preferred_element_type=f32)   # (S, S)
            p = jax.nn.softmax(s, axis=-1)
            ctx = jnp.dot(p.astype(bf16), v, preferred_element_type=f32)
            r0 = wo_row0 + h * hd
            term = jnp.dot(ctx.astype(bf16), w_o[r0:r0 + hd, :],
                           preferred_element_type=f32)            # (S, D)
            out = term if out is None else out + term
        return out

    moe_out = sdpa_branch(0, 1, 2, 0)
    sp_out = sdpa_branch(3, 4, 5, D)

    # --- Performer branch (LearnedPerformerAttention stand-in: learned ReLU
    # random-feature map), also fused with its output projection. -------------
    feat = pf_feat_ref[...]                                       # (H, hd, kdim)
    pf_out = None
    for h in range(H):
        q, k, v = head_cols(6, h), head_cols(7, h), head_cols(8, h)
        fh = feat[h]                                              # (hd, kdim)
        qp = jax.nn.relu(jnp.dot(q, fh, preferred_element_type=f32)) + 1e-6
        kp = jax.nn.relu(jnp.dot(k, fh, preferred_element_type=f32)) + 1e-6
        kp_t = jnp.transpose(kp).astype(bf16)                     # (kdim, S)
        kv = jnp.dot(kp_t, v, preferred_element_type=f32)         # (kdim, hd)
        z = jnp.sum(kp, axis=0, keepdims=True)                    # (1, kdim)
        num = jnp.dot(qp.astype(bf16), kv.astype(bf16),
                      preferred_element_type=f32)                 # (S, hd)
        den = jnp.sum(qp * z, axis=-1, keepdims=True)             # (S, 1)
        ctx = num * pl.reciprocal(den + 1e-6, approx=False)       # exact divide
        r0 = 2 * D + h * hd
        term = jnp.dot(ctx.astype(bf16), w_o[r0:r0 + hd, :],
                       preferred_element_type=f32)
        pf_out = term if pf_out is None else pf_out + term

    # --- mix branches: gate scalars + depth factor on partial sums / biases --
    b_o = b_o_ref[...]                                            # (3, D)
    attn_bias = c_moe * b_o[0:1] + c_sp * b_o[1:2] + c_pf * b_o[2:3]
    attn_out = c_moe * moe_out + c_sp * sp_out + c_pf * pf_out + attn_bias

    x1 = _layernorm(xs + attn_out, ln_g_ref[0:1, :], ln_b_ref[0:1, :])

    # --- FeedForward: Linear -> GELU -> Linear --------------------------------
    # TODO(synk): FeedForward source not provided; standard GELU MLP stand-in.
    ffn_h = _gelu(jnp.dot(x1.astype(bf16), ffn_w1_ref[...],
                          preferred_element_type=f32) + ffn_b1_ref[...])
    ffn_out = (jnp.dot(ffn_h.astype(bf16), ffn_w2_ref[...],
                       preferred_element_type=f32) + ffn_b2_ref[...]) * ffn_scale

    x2 = _layernorm(x1 + ffn_out, ln_g_ref[1:2, :], ln_b_ref[1:2, :])
    # norm3 applied to norm2's output -- matches the reference module exactly.
    out_ref[...] = _layernorm(x2, ln_g_ref[2:3, :],
                              ln_b_ref[2:3, :]).astype(out_ref.dtype)


# ------------------------------- weight packing --------------------------------

def _pack_params(params, num_heads):
    """Fuse logical per-branch weights into lane-dense bf16 matmul operands."""
    f32 = jnp.float32
    bf16 = jnp.bfloat16
    D = params["moe_w"].shape[1]
    hd = D // num_heads
    q_scale = 1.0 / math.sqrt(hd)

    def qkv_cols(W, b, scale_q):
        w = jnp.concatenate([W[0] * scale_q, W[1], W[2]], axis=1)   # (D, 3D)
        bb = jnp.concatenate([b[0] * scale_q, b[1], b[2]], axis=0)  # (3D,)
        return w, bb

    moe_w, moe_b = qkv_cols(params["moe_w"], params["moe_b"], q_scale)
    sp_w, sp_b = qkv_cols(params["sp_w"], params["sp_b"], q_scale)
    pf_w, pf_b = qkv_cols(params["pf_w"], params["pf_b"], 1.0)

    w_qkv = jnp.concatenate([moe_w, sp_w, pf_w], axis=1).astype(bf16)   # (D, 9D)
    b_qkv = jnp.concatenate([moe_b, sp_b, pf_b], axis=0)[None, :].astype(f32)

    w_o = jnp.concatenate(
        [params["moe_w"][3], params["sp_w"][3], params["pf_w"][3]],
        axis=0).astype(bf16)                                            # (3D, D)
    b_o = jnp.stack(
        [params["moe_b"][3], params["sp_b"][3], params["pf_b"][3]],
        axis=0).astype(f32)                                             # (3, D)

    # Lane-aligned gating weights: ARG hidden padded up to a multiple of 128,
    # the 4 tiny gate columns placed at a 128-aligned offset and padded to a
    # full lane tile (padding is free at pack time; padded columns are inert).
    gate_dim = params["arg_w1"].shape[1]
    gate_dim_p = _round_up(gate_dim, 128)
    arg_w1_p = jnp.pad(params["arg_w1"], ((0, 0), (0, gate_dim_p - gate_dim)))
    arg_b1_p = jnp.pad(params["arg_b1"], ((0, 0), (0, gate_dim_p - gate_dim)))
    tail_pad = 128 - 4
    w_gates = jnp.concatenate(
        [arg_w1_p, params["taa_gate_w"], params["attn_gate_w"],
         jnp.zeros((D, tail_pad), f32)], axis=1).astype(bf16)           # (D, gdp+128)
    b_gates = jnp.concatenate(
        [arg_b1_p, params["taa_gate_b"], params["attn_gate_b"],
         jnp.zeros((1, tail_pad), f32)], axis=1).astype(f32)
    arg_w2_p = jnp.pad(params["arg_w2"],
                       ((0, gate_dim_p - gate_dim), (0, 0))).astype(bf16)

    return dict(
        w_qkv=w_qkv, b_qkv=b_qkv, w_o=w_o, b_o=b_o,
        pf_feat=params["pf_feat"].astype(bf16),
        w_gates=w_gates, b_gates=b_gates,
        arg_w2=arg_w2_p, arg_b2=params["arg_b2"].astype(f32),
        ffn_w1=params["ffn_w1"].astype(bf16), ffn_b1=params["ffn_b1"].astype(f32),
        ffn_w2=params["ffn_w2"].astype(bf16), ffn_b2=params["ffn_b2"].astype(f32),
        ln_g=params["ln_g"].astype(f32), ln_b=params["ln_b"].astype(f32),
    )


# --------------------------------- wrapper ------------------------------------

def _vmem_limit_bytes(weights, S, D, kdim, ff_dim, weight_copies):
    """Generation-aware VMEM budget derived from the actual resident buffers."""
    f32b, bf16b = 4, 2
    weight_bytes = weight_copies * sum(int(w.size) * w.dtype.itemsize
                                       for w in weights)
    io_bytes = 2 * 2 * S * D * f32b                   # double-buffered x / out
    act_bytes = (S * 9 * D * (f32b + bf16b)           # qkv f32 + one bf16 copy
                 + 3 * S * S * (f32b + bf16b)         # live per-head scores/probs
                 + 2 * S * kdim * (f32b + bf16b)      # performer features
                 + 10 * S * D * f32b                  # branch sums / residual / LN
                 + 2 * S * ff_dim * (f32b + bf16b))   # FFN hidden
    needed = int(1.5 * (weight_bytes + io_bytes + act_bytes))   # scheduling slack
    try:
        physical = pltpu.get_tpu_info().vmem_capacity_bytes
    except Exception:                                 # info query unavailable
        physical = 64 << 20                           # assume v7x (smallest VMEM)
    # Keep >=25% of physical VMEM as headroom for compiler scratch (v7x-safe).
    return max(16 << 20, min(needed, physical * 3 // 4))


def vishwamai_transformer_layer(x, params, *, num_heads, layer_idx, num_layers,
                                top_k):
    B, S, D = x.shape
    depth_factor = 1.0 + (layer_idx / num_layers) * 0.5
    # TODO(synk): DynamicSparseAttention top-k masking not implemented; the
    # dense stand-in is only equivalent when top_k >= seq_len.
    assert top_k >= S

    packed = _pack_params(params, num_heads)
    order = ["w_qkv", "b_qkv", "w_o", "b_o", "pf_feat",
             "w_gates", "b_gates", "arg_w2", "arg_b2",
             "ffn_w1", "ffn_b1", "ffn_w2", "ffn_b2", "ln_g", "ln_b"]
    weights = [packed[k] for k in order]
    gate_dim_p = packed["arg_w2"].shape[0]
    kdim = packed["pf_feat"].shape[2]
    ff_dim = packed["ffn_w1"].shape[1]

    kernel = functools.partial(
        vishwamai_layer_kernel,
        num_heads=num_heads, gate_dim_p=gate_dim_p, depth_factor=depth_factor)

    def build(single_buffer_weights):
        vmem_limit = _vmem_limit_bytes(
            weights, S, D, kdim, ff_dim,
            weight_copies=1 if single_buffer_weights else 2)

        def wspec(a):
            nd = a.ndim
            kw = {}
            if single_buffer_weights:
                # Weight block indices never change across the grid; a single
                # VMEM buffer suffices (halves the resident weight footprint).
                kw["pipeline_mode"] = pl.Buffered(1)
            return pl.BlockSpec(a.shape, lambda b, nd=nd: (0,) * nd, **kw)

        return pl.pallas_call(
            kernel,
            out_shape=jax.ShapeDtypeStruct((B, S, D), jnp.float32),
            grid=(B,),
            in_specs=[pl.BlockSpec((None, S, D), lambda b: (b, 0, 0))]
                     + [wspec(w) for w in weights],
            out_specs=pl.BlockSpec((None, S, D), lambda b: (b, 0, 0)),
            compiler_params=pltpu.CompilerParams(
                dimension_semantics=("parallel",),
                vmem_limit_bytes=int(vmem_limit)),
        )

    try:
        return build(single_buffer_weights=True)(x, *weights)
    except (pltpu.LoweringException, NotImplementedError, ValueError, TypeError):
        # TODO(synk): pl.Buffered(1) single-buffering rejected by this jax
        # version; fall back to default double-buffered weight specs.
        return build(single_buffer_weights=False)(x, *weights)


def init_params(key, D, num_heads, ff_dim, gate_dim, kernel_dim):
    hd = D // num_heads
    ks = jax.random.split(key, 16)
    n = lambda k, shape: (0.02 * jax.random.normal(k, shape)).astype(jnp.float32)
    z = lambda shape: jnp.zeros(shape, jnp.float32)
    return {
        # AdaptiveReasoningGate: Linear(D,gate_dim) -> GELU -> Linear(gate_dim,2) -> Sigmoid
        "arg_w1": n(ks[0], (D, gate_dim)), "arg_b1": z((1, gate_dim)),
        "arg_w2": n(ks[1], (gate_dim, 2)), "arg_b2": z((1, 2)),
        # OptimizedMoEAttention stand-in (MHA): packed [Wq, Wk, Wv, Wo]
        "moe_w": n(ks[2], (4, D, D)), "moe_b": z((4, D)),
        # DynamicSparseAttention stand-in (MHA)
        "sp_w": n(ks[3], (4, D, D)), "sp_b": z((4, D)),
        # LearnedPerformerAttention stand-in
        "pf_w": n(ks[4], (4, D, D)), "pf_b": z((4, D)),
        "pf_feat": n(ks[5], (num_heads, hd, kernel_dim)),
        # HybridThoughtAwareAttention gate: Linear(D, 2)
        "taa_gate_w": n(ks[6], (D, 2)), "taa_gate_b": z((1, 2)),
        # Layer-level attention gate: Linear(D, 2)
        "attn_gate_w": n(ks[7], (D, 2)), "attn_gate_b": z((1, 2)),
        # FeedForward: Linear(D, ff_dim) -> GELU -> Linear(ff_dim, D)
        "ffn_w1": n(ks[8], (D, ff_dim)), "ffn_b1": z((1, ff_dim)),
        "ffn_w2": n(ks[9], (ff_dim, D)), "ffn_b2": z((1, D)),
        # LayerNorm 1/2/3 (gamma, beta stacked)
        "ln_g": jnp.ones((3, D), jnp.float32), "ln_b": z((3, D)),
    }


if __name__ == "__main__":
    B, S, D = 2, 8, 32
    num_heads = 4
    ff_dim = 64
    gate_dim = 128
    kernel_dim = 64
    top_k = 10
    layer_idx, num_layers = 1, 4

    key = jax.random.PRNGKey(0)
    kx, kp = jax.random.split(key)
    x = jax.random.normal(kx, (B, S, D), dtype=jnp.float32)
    params = init_params(kp, D, num_heads, ff_dim, gate_dim, kernel_dim)

    out = vishwamai_transformer_layer(
        x, params, num_heads=num_heads,
        layer_idx=layer_idx, num_layers=num_layers, top_k=top_k)
    out = jax.block_until_ready(out)

    assert out.shape == (B, S, D)
    assert bool(jnp.all(jnp.isfinite(out)))
    print("KERNEL_OK")
</pallas_src>

<mosaic_0001>
module attributes {stable_mosaic.version = 11 : i64} {
  func.func @vishwamai_layer_kernel(%arg0: i32, %arg1: memref<1x8x32xf32, #tpu.memory_space<vmem>>, %arg2: memref<32x288xbf16, #tpu.memory_space<vmem>>, %arg3: memref<1x288xf32, #tpu.memory_space<vmem>>, %arg4: memref<96x32xbf16, #tpu.memory_space<vmem>>, %arg5: memref<3x32xf32, #tpu.memory_space<vmem>>, %arg6: memref<4x8x64xbf16, #tpu.memory_space<vmem>>, %arg7: memref<32x256xbf16, #tpu.memory_space<vmem>>, %arg8: memref<1x256xf32, #tpu.memory_space<vmem>>, %arg9: memref<128x2xbf16, #tpu.memory_space<vmem>>, %arg10: memref<1x2xf32, #tpu.memory_space<vmem>>, %arg11: memref<32x64xbf16, #tpu.memory_space<vmem>>, %arg12: memref<1x64xf32, #tpu.memory_space<vmem>>, %arg13: memref<64x32xbf16, #tpu.memory_space<vmem>>, %arg14: memref<1x32xf32, #tpu.memory_space<vmem>>, %arg15: memref<3x32xf32, #tpu.memory_space<vmem>>, %arg16: memref<3x32xf32, #tpu.memory_space<vmem>>, %arg17: memref<1x8x32xf32, #tpu.memory_space<vmem>>) attributes {dimension_semantics = [#tpu.dimension_semantics<parallel>], iteration_bounds = array<i64: 2>, scalar_prefetch = 0 : i64, scratch_operands = 0 : i64, tpu.core_type = #tpu.core_type<tc>, window_params = [{transform_indices = @transform_0, window_bounds = array<i64: 1, 8, 32>}, {pipeline_mode = #tpu.pipeline_mode<synchronous>, transform_indices = @transform_1, window_bounds = array<i64: 32, 288>}, {pipeline_mode = #tpu.pipeline_mode<synchronous>, transform_indices = @transform_2, window_bounds = array<i64: 1, 288>}, {pipeline_mode = #tpu.pipeline_mode<synchronous>, transform_indices = @transform_3, window_bounds = array<i64: 96, 32>}, {pipeline_mode = #tpu.pipeline_mode<synchronous>, transform_indices = @transform_4, window_bounds = array<i64: 3, 32>}, {pipeline_mode = #tpu.pipeline_mode<synchronous>, transform_indices = @transform_5, window_bounds = array<i64: 4, 8, 64>}, {pipeline_mode = #tpu.pipeline_mode<synchronous>, transform_indices = @transform_6, window_bounds = array<i64: 32, 256>}, {pipeline_mode = #tpu.pipeline_mode<synchronous>, transform_indices = @transform_7, window_bounds = array<i64: 1, 256>}, {pipeline_mode = #tpu.pipeline_mode<synchronous>, transform_indices = @transform_8, window_bounds = array<i64: 128, 2>}, {pipeline_mode = #tpu.pipeline_mode<synchronous>, transform_indices = @transform_9, window_bounds = array<i64: 1, 2>}, {pipeline_mode = #tpu.pipeline_mode<synchronous>, transform_indices = @transform_10, window_bounds = array<i64: 32, 64>}, {pipeline_mode = #tpu.pipeline_mode<synchronous>, transform_indices = @transform_11, window_bounds = array<i64: 1, 64>}, {pipeline_mode = #tpu.pipeline_mode<synchronous>, transform_indices = @transform_12, window_bounds = array<i64: 64, 32>}, {pipeline_mode = #tpu.pipeline_mode<synchronous>, transform_indices = @transform_13, window_bounds = array<i64: 1, 32>}, {pipeline_mode = #tpu.pipeline_mode<synchronous>, transform_indices = @transform_14, window_bounds = array<i64: 3, 32>}, {pipeline_mode = #tpu.pipeline_mode<synchronous>, transform_indices = @transform_15, window_bounds = array<i64: 3, 32>}, {transform_indices = @transform_16, window_bounds = array<i64: 1, 8, 32>}]} {
    %c0 = arith.constant 0 : index
    %c0_0 = arith.constant 0 : index
    %c0_1 = arith.constant 0 : index
    %0 = vector.load %arg1[%c0, %c0_0, %c0_1] : memref<1x8x32xf32, #tpu.memory_space<vmem>>, vector<1x8x32xf32>
    %1 = vector.shape_cast %0 : vector<1x8x32xf32> to vector<8x32xf32>
    %2 = arith.truncf %1 : vector<8x32xf32> to vector<8x32xbf16>
    %cst = arith.constant dense<0.000000e+00> : vector<32xf32>
    %3 = vector.multi_reduction <add>, %1, %cst [0] : vector<8x32xf32> to vector<32xf32>
    %4 = vector.shape_cast %3 : vector<32xf32> to vector<1x32xf32>
    %cst_2 = arith.constant 8.000000e+00 : f32
    %5 = vector.broadcast %cst_2 : f32 to vector<1x32xf32>
    %6 = arith.divf %4, %5 : vector<1x32xf32>
    %7 = arith.truncf %6 : vector<1x32xf32> to vector<1x32xbf16>
    %c0_3 = arith.constant 0 : index
    %c0_4 = arith.constant 0 : index
    %8 = vector.load %arg7[%c0_3, %c0_4] : memref<32x256xbf16, #tpu.memory_space<vmem>>, vector<32x256xbf16>
    %cst_5 = arith.constant dense<0.000000e+00> : vector<1x256xf32>
    %9 = tpu.matmul %7, %8, %cst_5 {dimension_numbers = #tpu.dot_dimension_numbers<[1], [0], [0], [1], [0, 0, 1, 1], [], []>} : vector<1x32xbf16>, vector<32x256xbf16>, vector<1x256xf32> -> vector<1x256xf32>
    %c0_6 = arith.constant 0 : index
    %c0_7 = arith.constant 0 : index
    %10 = vector.load %arg8[%c0_6, %c0_7] : memref<1x256xf32, #tpu.memory_space<vmem>>, vector<1x256xf32>
    %11 = arith.addf %9, %10 : vector<1x256xf32>
    %12 = vector.extract_strided_slice %11 {offsets = [0, 0], sizes = [1, 128], strides = [1, 1]} : vector<1x256xf32> to vector<1x128xf32>
    %13 = arith.mulf %12, %12 : vector<1x128xf32>
    %14 = arith.mulf %12, %13 : vector<1x128xf32>
    %cst_8 = arith.constant 4.471500e-02 : f32
    %15 = vector.broadcast %cst_8 : f32 to vector<1x128xf32>
    %16 = arith.mulf %15, %14 : vector<1x128xf32>
    %17 = arith.addf %12, %16 : vector<1x128xf32>
    %cst_9 = arith.constant 0.797884583 : f32
    %18 = vector.broadcast %cst_9 : f32 to vector<1x128xf32>
    %19 = arith.mulf %18, %17 : vector<1x128xf32>
    %20 = math.tanh %19 : vector<1x128xf32>
    %cst_10 = arith.constant 1.000000e+00 : f32
    %21 = vector.broadcast %cst_10 : f32 to vector<1x128xf32>
    %22 = arith.addf %21, %20 : vector<1x128xf32>
    %cst_11 = arith.constant 5.000000e-01 : f32
    %23 = vector.broadcast %cst_11 : f32 to vector<1x128xf32>
    %24 = arith.mulf %23, %22 : vector<1x128xf32>
    %25 = arith.mulf %12, %24 : vector<1x128xf32>
    %26 = arith.truncf %25 : vector<1x128xf32> to vector<1x128xbf16>
    %c0_12 = arith.constant 0 : index
    %c0_13 = arith.constant 0 : index
    %27 = vector.load %arg9[%c0_12, %c0_13] : memref<128x2xbf16, #tpu.memory_space<vmem>>, vector<128x2xbf16>
    %cst_14 = arith.constant dense<0.000000e+00> : vector<1x2xf32>
    %28 = tpu.matmul %26, %27, %cst_14 {dimension_numbers = #tpu.dot_dimension_numbers<[1], [0], [0], [1], [0, 0, 1, 1], [], []>} : vector<1x128xbf16>, vector<128x2xbf16>, vector<1x2xf32> -> vector<1x2xf32>
    %c0_15 = arith.constant 0 : index
    %c0_16 = arith.constant 0 : index
    %29 = vector.load %arg10[%c0_15, %c0_16] : memref<1x2xf32, #tpu.memory_space<vmem>>, vector<1x2xf32>
    %30 = arith.addf %28, %29 : vector<1x2xf32>
    %31 = arith.negf %30 : vector<1x2xf32>
    %32 = math.exp %31 : vector<1x2xf32>
    %cst_17 = arith.constant 1.000000e+00 : f32
    %33 = vector.broadcast %cst_17 : f32 to vector<1x2xf32>
    %34 = arith.addf %33, %32 : vector<1x2xf32>
    %35 = arith.divf %33, %34 : vector<1x2xf32>
    %36 = vector.extract_strided_slice %11 {offsets = [0, 128], sizes = [1, 4], strides = [1, 1]} : vector<1x256xf32> to vector<1x4xf32>
    %37 = vector.extract_strided_slice %36 {offsets = [0, 0], sizes = [1, 2], strides = [1, 1]} : vector<1x4xf32> to vector<1x2xf32>
    %cst_18 = arith.constant dense<0xFF800000> : vector<1xf32>
    %38 = vector.multi_reduction <maximumf>, %37, %cst_18 [1] : vector<1x2xf32> to vector<1xf32>
    %cst_19 = arith.constant 0xFF800000 : f32
    %39 = vector.broadcast %cst_19 : f32 to vector<1xf32>
    %40 = arith.maximumf %39, %38 : vector<1xf32>
    %41 = vector.shape_cast %40 : vector<1xf32> to vector<1x1xf32>
    %42 = vector.broadcast %41 : vector<1x1xf32> to vector<1x2xf32>
    %43 = arith.subf %37, %42 : vector<1x2xf32>
    %44 = math.exp %43 : vector<1x2xf32>
    %cst_20 = arith.constant dense<0.000000e+00> : vector<1xf32>
    %45 = vector.multi_reduction <add>, %44, %cst_20 [1] : vector<1x2xf32> to vector<1xf32>
    %46 = vector.shape_cast %45 : vector<1xf32> to vector<1x1xf32>
    %47 = vector.broadcast %46 : vector<1x1xf32> to vector<1x2xf32>
    %48 = arith.divf %44, %47 : vector<1x2xf32>
    %49 = vector.extract_strided_slice %36 {offsets = [0, 2], sizes = [1, 2], strides = [1, 1]} : vector<1x4xf32> to vector<1x2xf32>
    %cst_21 = arith.constant dense<0xFF800000> : vector<1xf32>
    %50 = vector.multi_reduction <maximumf>, %49, %cst_21 [1] : vector<1x2xf32> to vector<1xf32>
    %cst_22 = arith.constant 0xFF800000 : f32
    %51 = vector.broadcast %cst_22 : f32 to vector<1xf32>
    %52 = arith.maximumf %51, %50 : vector<1xf32>
    %53 = vector.shape_cast %52 : vector<1xf32> to vector<1x1xf32>
    %54 = vector.broadcast %53 : vector<1x1xf32> to vector<1x2xf32>
    %55 = arith.subf %49, %54 : vector<1x2xf32>
    %56 = math.exp %55 : vector<1x2xf32>
    %cst_23 = arith.constant dense<0.000000e+00> : vector<1xf32>
    %57 = vector.multi_reduction <add>, %56, %cst_23 [1] : vector<1x2xf32> to vector<1xf32>
    %58 = vector.shape_cast %57 : vector<1xf32> to vector<1x1xf32>
    %59 = vector.broadcast %58 : vector<1x1xf32> to vector<1x2xf32>
    %60 = arith.divf %56, %59 : vector<1x2xf32>
    %61 = vector.extract_strided_slice %35 {offsets = [0, 1], sizes = [1, 1], strides = [1, 1]} : vector<1x2xf32> to vector<1x1xf32>
    %cst_24 = arith.constant 1.125000e+00 : f32
    %62 = vector.broadcast %cst_24 : f32 to vector<1x1xf32>
    %63 = arith.mulf %61, %62 : vector<1x1xf32>
    %64 = vector.extract_strided_slice %60 {offsets = [0, 0], sizes = [1, 1], strides = [1, 1]} : vector<1x2xf32> to vector<1x1xf32>
    %cst_25 = arith.constant 1.125000e+00 : f32
    %65 = vector.broadcast %cst_25 : f32 to vector<1x1xf32>
    %66 = arith.mulf %64, %65 : vector<1x1xf32>
    %67 = vector.extract_strided_slice %60 {offsets = [0, 1], sizes = [1, 1], strides = [1, 1]} : vector<1x2xf32> to vector<1x1xf32>
    %68 = vector.extract_strided_slice %48 {offsets = [0, 0], sizes = [1, 1], strides = [1, 1]} : vector<1x2xf32> to vector<1x1xf32>
    %69 = arith.mulf %67, %68 : vector<1x1xf32>
    %cst_26 = arith.constant 1.125000e+00 : f32
    %70 = vector.broadcast %cst_26 : f32 to vector<1x1xf32>
    %71 = arith.mulf %69, %70 : vector<1x1xf32>
    %72 = vector.extract_strided_slice %60 {offsets = [0, 1], sizes = [1, 1], strides = [1, 1]} : vector<1x2xf32> to vector<1x1xf32>
    %73 = vector.extract_strided_slice %48 {offsets = [0, 1], sizes = [1, 1], strides = [1, 1]} : vector<1x2xf32> to vector<1x1xf32>
    %74 = arith.mulf %72, %73 : vector<1x1xf32>
    %cst_27 = arith.constant 1.125000e+00 : f32
    %75 = vector.broadcast %cst_27 : f32 to vector<1x1xf32>
    %76 = arith.mulf %74, %75 : vector<1x1xf32>
    %c0_28 = arith.constant 0 : index
    %c0_29 = arith.constant 0 : index
    %77 = vector.load %arg2[%c0_28, %c0_29] : memref<32x288xbf16, #tpu.memory_space<vmem>>, vector<32x288xbf16>
    %cst_30 = arith.constant dense<0.000000e+00> : vector<8x288xf32>
    %78 = tpu.matmul %2, %77, %cst_30 {dimension_numbers = #tpu.dot_dimension_numbers<[1], [0], [0], [1], [0, 0, 1, 1], [], []>} : vector<8x32xbf16>, vector<32x288xbf16>, vector<8x288xf32> -> vector<8x288xf32>
    %c0_31 = arith.constant 0 : index
    %c0_32 = arith.constant 0 : index
    %79 = vector.load %arg3[%c0_31, %c0_32] : memref<1x288xf32, #tpu.memory_space<vmem>>, vector<1x288xf32>
    %80 = vector.broadcast %79 : vector<1x288xf32> to vector<8x288xf32>
    %81 = arith.addf %78, %80 : vector<8x288xf32>
    %82 = arith.truncf %81 : vector<8x288xf32> to vector<8x288xbf16>
    %c0_33 = arith.constant 0 : index
    %c0_34 = arith.constant 0 : index
    %83 = vector.load %arg4[%c0_33, %c0_34] : memref<96x32xbf16, #tpu.memory_space<vmem>>, vector<96x32xbf16>
    %84 = vector.extract_strided_slice %82 {offsets = [0, 0], sizes = [8, 8], strides = [1, 1]} : vector<8x288xbf16> to vector<8x8xbf16>
    %85 = vector.extract_strided_slice %82 {offsets = [0, 32], sizes = [8, 8], strides = [1, 1]} : vector<8x288xbf16> to vector<8x8xbf16>
    %86 = vector.extract_strided_slice %82 {offsets = [0, 64], sizes = [8, 8], strides = [1, 1]} : vector<8x288xbf16> to vector<8x8xbf16>
    %cst_35 = arith.constant dense<0.000000e+00> : vector<8x8xf32>
    %87 = tpu.matmul %84, %85, %cst_35 {dimension_numbers = #tpu.dot_dimension_numbers<[1], [1], [0], [0], [0, 0, 1, 0], [], []>} : vector<8x8xbf16>, vector<8x8xbf16>, vector<8x8xf32> -> vector<8x8xf32>
    %cst_36 = arith.constant dense<0xFF800000> : vector<8xf32>
    %88 = vector.multi_reduction <maximumf>, %87, %cst_36 [1] : vector<8x8xf32> to vector<8xf32>
    %cst_37 = arith.constant 0xFF800000 : f32
    %89 = vector.broadcast %cst_37 : f32 to vector<8xf32>
    %90 = arith.maximumf %89, %88 : vector<8xf32>
    %91 = vector.shape_cast %90 : vector<8xf32> to vector<8x1xf32>
    %92 = vector.broadcast %91 : vector<8x1xf32> to vector<8x8xf32>
    %93 = arith.subf %87, %92 : vector<8x8xf32>
    %94 = math.exp %93 : vector<8x8xf32>
    %cst_38 = arith.constant dense<0.000000e+00> : vector<8xf32>
    %95 = vector.multi_reduction <add>, %94, %cst_38 [1] : vector<8x8xf32> to vector<8xf32>
    %96 = vector.shape_cast %95 : vector<8xf32> to vector<8x1xf32>
    %97 = vector.broadcast %96 : vector<8x1xf32> to vector<8x8xf32>
    %98 = arith.divf %94, %97 : vector<8x8xf32>
    %99 = arith.truncf %98 : vector<8x8xf32> to vector<8x8xbf16>
    %cst_39 = arith.constant dense<0.000000e+00> : vector<8x8xf32>
    %100 = tpu.matmul %99, %86, %cst_39 {dimension_numbers = #tpu.dot_dimension_numbers<[1], [0], [0], [1], [0, 0, 1, 1], [], []>} : vector<8x8xbf16>, vector<8x8xbf16>, vector<8x8xf32> -> vector<8x8xf32>
    %101 = arith.truncf %100 : vector<8x8xf32> to vector<8x8xbf16>
    %102 = vector.extract_strided_slice %83 {offsets = [0, 0], sizes = [8, 32], strides = [1, 1]} : vector<96x32xbf16> to vector<8x32xbf16>
    %cst_40 = arith.constant dense<0.000000e+00> : vector<8x32xf32>
    %103 = tpu.matmul %101, %102, %cst_40 {dimension_numbers = #tpu.dot_dimension_numbers<[1], [0], [0], [1], [0, 0, 1, 1], [], []>} : vector<8x8xbf16>, vector<8x32xbf16>, vector<8x32xf32> -> vector<8x32xf32>
    %104 = vector.extract_strided_slice %82 {offsets = [0, 8], sizes = [8, 8], strides = [1, 1]} : vector<8x288xbf16> to vector<8x8xbf16>
    %105 = vector.extract_strided_slice %82 {offsets = [0, 40], sizes = [8, 8], strides = [1, 1]} : vector<8x288xbf16> to vector<8x8xbf16>
    %106 = vector.extract_strided_slice %82 {offsets = [0, 72], sizes = [8, 8], strides = [1, 1]} : vector<8x288xbf16> to vector<8x8xbf16>
    %cst_41 = arith.constant dense<0.000000e+00> : vector<8x8xf32>
    %107 = tpu.matmul %104, %105, %cst_41 {dimension_numbers = #tpu.dot_dimension_numbers<[1], [1], [0], [0], [0, 0, 1, 0], [], []>} : vector<8x8xbf16>, vector<8x8xbf16>, vector<8x8xf32> -> vector<8x8xf32>
    %cst_42 = arith.constant dense<0xFF800000> : vector<8xf32>
    %108 = vector.multi_reduction <maximumf>, %107, %cst_42 [1] : vector<8x8xf32> to vector<8xf32>
    %cst_43 = arith.constant 0xFF800000 : f32
    %109 = vector.broadcast %cst_43 : f32 to vector<8xf32>
    %110 = arith.maximumf %109, %108 : vector<8xf32>
    %111 = vector.shape_cast %110 : vector<8xf32> to vector<8x1xf32>
    %112 = vector.broadcast %111 : vector<8x1xf32> to vector<8x8xf32>
    %113 = arith.subf %107, %112 : vector<8x8xf32>
    %114 = math.exp %113 : vector<8x8xf32>
    %cst_44 = arith.constant dense<0.000000e+00> : vector<8xf32>
    %115 = vector.multi_reduction <add>, %114, %cst_44 [1] : vector<8x8xf32> to vector<8xf32>
    %116 = vector.shape_cast %115 : vector<8xf32> to vector<8x1xf32>
    %117 = vector.broadcast %116 : vector<8x1xf32> to vector<8x8xf32>
    %118 = arith.divf %114, %117 : vector<8x8xf32>
    %119 = arith.truncf %118 : vector<8x8xf32> to vector<8x8xbf16>
    %cst_45 = arith.constant dense<0.000000e+00> : vector<8x8xf32>
    %120 = tpu.matmul %119, %106, %cst_45 {dimension_numbers = #tpu.dot_dimension_numbers<[1], [0], [0], [1], [0, 0, 1, 1], [], []>} : vector<8x8xbf16>, vector<8x8xbf16>, vector<8x8xf32> -> vector<8x8xf32>
    %121 = arith.truncf %120 : vector<8x8xf32> to vector<8x8xbf16>
    %122 = vector.extract_strided_slice %83 {offsets = [8, 0], sizes = [8, 32], strides = [1, 1]} : vector<96x32xbf16> to vector<8x32xbf16>
    %cst_46 = arith.constant dense<0.000000e+00> : vector<8x32xf32>
    %123 = tpu.matmul %121, %122, %cst_46 {dimension_numbers = #tpu.dot_dimension_numbers<[1], [0], [0], [1], [0, 0, 1, 1], [], []>} : vector<8x8xbf16>, vector<8x32xbf16>, vector<8x32xf32> -> vector<8x32xf32>
    %124 = arith.addf %103, %123 : vector<8x32xf32>
    %125 = vector.extract_strided_slice %82 {offsets = [0, 16], sizes = [8, 8], strides = [1, 1]} : vector<8x288xbf16> to vector<8x8xbf16>
    %126 = vector.extract_strided_slice %82 {offsets = [0, 48], sizes = [8, 8], strides = [1, 1]} : vector<8x288xbf16> to vector<8x8xbf16>
    %127 = vector.extract_strided_slice %82 {offsets = [0, 80], sizes = [8, 8], strides = [1, 1]} : vector<8x288xbf16> to vector<8x8xbf16>
    %cst_47 = arith.constant dense<0.000000e+00> : vector<8x8xf32>
    %128 = tpu.matmul %125, %126, %cst_47 {dimension_numbers = #tpu.dot_dimension_numbers<[1], [1], [0], [0], [0, 0, 1, 0], [], []>} : vector<8x8xbf16>, vector<8x8xbf16>, vector<8x8xf32> -> vector<8x8xf32>
    %cst_48 = arith.constant dense<0xFF800000> : vector<8xf32>
    %129 = vector.multi_reduction <maximumf>, %128, %cst_48 [1] : vector<8x8xf32> to vector<8xf32>
    %cst_49 = arith.constant 0xFF800000 : f32
    %130 = vector.broadcast %cst_49 : f32 to vector<8xf32>
    %131 = arith.maximumf %130, %129 : vector<8xf32>
    %132 = vector.shape_cast %131 : vector<8xf32> to vector<8x1xf32>
    %133 = vector.broadcast %132 : vector<8x1xf32> to vector<8x8xf32>
    %134 = arith.subf %128, %133 : vector<8x8xf32>
    %135 = math.exp %134 : vector<8x8xf32>
    %cst_50 = arith.constant dense<0.000000e+00> : vector<8xf32>
    %136 = vector.multi_reduction <add>, %135, %cst_50 [1] : vector<8x8xf32> to vector<8xf32>
    %137 = vector.shape_cast %136 : vector<8xf32> to vector<8x1xf32>
    %138 = vector.broadcast %137 : vector<8x1xf32> to vector<8x8xf32>
    %139 = arith.divf %135, %138 : vector<8x8xf32>
    %140 = arith.truncf %139 : vector<8x8xf32> to vector<8x8xbf16>
    %cst_51 = arith.constant dense<0.000000e+00> : vector<8x8xf32>
    %141 = tpu.matmul %140, %127, %cst_51 {dimension_numbers = #tpu.dot_dimension_numbers<[1], [0], [0], [1], [0, 0, 1, 1], [], []>} : vector<8x8xbf16>, vector<8x8xbf16>, vector<8x8xf32> -> vector<8x8xf32>
    %142 = arith.truncf %141 : vector<8x8xf32> to vector<8x8xbf16>
    %143 = vector.extract_strided_slice %83 {offsets = [16, 0], sizes = [8, 32], strides = [1, 1]} : vector<96x32xbf16> to vector<8x32xbf16>
    %cst_52 = arith.constant dense<0.000000e+00> : vector<8x32xf32>
    %144 = tpu.matmul %142, %143, %cst_52 {dimension_numbers = #tpu.dot_dimension_numbers<[1], [0], [0], [1], [0, 0, 1, 1], [], []>} : vector<8x8xbf16>, vector<8x32xbf16>, vector<8x32xf32> -> vector<8x32xf32>
    %145 = arith.addf %124, %144 : vector<8x32xf32>
    %146 = vector.extract_strided_slice %82 {offsets = [0, 24], sizes = [8, 8], strides = [1, 1]} : vector<8x288xbf16> to vector<8x8xbf16>
    %147 = vector.extract_strided_slice %82 {offsets = [0, 56], sizes = [8, 8], strides = [1, 1]} : vector<8x288xbf16> to vector<8x8xbf16>
    %148 = vector.extract_strided_slice %82 {offsets = [0, 88], sizes = [8, 8], strides = [1, 1]} : vector<8x288xbf16> to vector<8x8xbf16>
    %cst_53 = arith.constant dense<0.000000e+00> : vector<8x8xf32>
    %149 = tpu.matmul %146, %147, %cst_53 {dimension_numbers = #tpu.dot_dimension_numbers<[1], [1], [0], [0], [0, 0, 1, 0], [], []>} : vector<8x8xbf16>, vector<8x8xbf16>, vector<8x8xf32> -> vector<8x8xf32>
    %cst_54 = arith.constant dense<0xFF800000> : vector<8xf32>
    %150 = vector.multi_reduction <maximumf>, %149, %cst_54 [1] : vector<8x8xf32> to vector<8xf32>
    %cst_55 = arith.constant 0xFF800000 : f32
    %151 = vector.broadcast %cst_55 : f32 to vector<8xf32>
    %152 = arith.maximumf %151, %150 : vector<8xf32>
    %153 = vector.shape_cast %152 : vector<8xf32> to vector<8x1xf32>
    %154 = vector.broadcast %153 : vector<8x1xf32> to vector<8x8xf32>
    %155 = arith.subf %149, %154 : vector<8x8xf32>
    %156 = math.exp %155 : vector<8x8xf32>
    %cst_56 = arith.constant dense<0.000000e+00> : vector<8xf32>
    %157 = vector.multi_reduction <add>, %156, %cst_56 [1] : vector<8x8xf32> to vector<8xf32>
    %158 = vector.shape_cast %157 : vector<8xf32> to vector<8x1xf32>
    %159 = vector.broadcast %158 : vector<8x1xf32> to vector<8x8xf32>
    %160 = arith.divf %156, %159 : vector<8x8xf32>
    %161 = arith.truncf %160 : vector<8x8xf32> to vector<8x8xbf16>
    %cst_57 = arith.constant dense<0.000000e+00> : vector<8x8xf32>
    %162 = tpu.matmul %161, %148, %cst_57 {dimension_numbers = #tpu.dot_dimension_numbers<[1], [0], [0], [1], [0, 0, 1, 1], [], []>} : vector<8x8xbf16>, vector<8x8xbf16>, vector<8x8xf32> -> vector<8x8xf32>
    %163 = arith.truncf %162 : vector<8x8xf32> to vector<8x8xbf16>
    %164 = vector.extract_strided_slice %83 {offsets = [24, 0], sizes = [8, 32], strides = [1, 1]} : vector<96x32xbf16> to vector<8x32xbf16>
    %cst_58 = arith.constant dense<0.000000e+00> : vector<8x32xf32>
    %165 = tpu.matmul %163, %164, %cst_58 {dimension_numbers = #tpu.dot_dimension_numbers<[1], [0], [0], [1], [0, 0, 1, 1], [], []>} : vector<8x8xbf16>, vector<8x32xbf16>, vector<8x32xf32> -> vector<8x32xf32>
    %166 = arith.addf %145, %165 : vector<8x32xf32>
    %167 = vector.extract_strided_slice %82 {offsets = [0, 96], sizes = [8, 8], strides = [1, 1]} : vector<8x288xbf16> to vector<8x8xbf16>
    %168 = vector.extract_strided_slice %82 {offsets = [0, 128], sizes = [8, 8], strides = [1, 1]} : vector<8x288xbf16> to vector<8x8xbf16>
    %169 = vector.extract_strided_slice %82 {offsets = [0, 160], sizes = [8, 8], strides = [1, 1]} : vector<8x288xbf16> to vector<8x8xbf16>
    %cst_59 = arith.constant dense<0.000000e+00> : vector<8x8xf32>
    %170 = tpu.matmul %167, %168, %cst_59 {dimension_numbers = #tpu.dot_dimension_numbers<[1], [1], [0], [0], [0, 0, 1, 0], [], []>} : vector<8x8xbf16>, vector<8x8xbf16>, vector<8x8xf32> -> vector<8x8xf32>
    %cst_60 = arith.constant dense<0xFF800000> : vector<8xf32>
    %171 = vector.multi_reduction <maximumf>, %170, %cst_60 [1] : vector<8x8xf32> to vector<8xf32>
    %cst_61 = arith.constant 0xFF800000 : f32
    %172 = vector.broadcast %cst_61 : f32 to vector<8xf32>
    %173 = arith.maximumf %172, %171 : vector<8xf32>
    %174 = vector.shape_cast %173 : vector<8xf32> to vector<8x1xf32>
    %175 = vector.broadcast %174 : vector<8x1xf32> to vector<8x8xf32>
    %176 = arith.subf %170, %175 : vector<8x8xf32>
    %177 = math.exp %176 : vector<8x8xf32>
    %cst_62 = arith.constant dense<0.000000e+00> : vector<8xf32>
    %178 = vector.multi_reduction <add>, %177, %cst_62 [1] : vector<8x8xf32> to vector<8xf32>
    %179 = vector.shape_cast %178 : vector<8xf32> to vector<8x1xf32>
    %180 = vector.broadcast %179 : vector<8x1xf32> to vector<8x8xf32>
    %181 = arith.divf %177, %180 : vector<8x8xf32>
    %182 = arith.truncf %181 : vector<8x8xf32> to vector<8x8xbf16>
    %cst_63 = arith.constant dense<0.000000e+00> : vector<8x8xf32>
    %183 = tpu.matmul %182, %169, %cst_63 {dimension_numbers = #tpu.dot_dimension_numbers<[1], [0], [0], [1], [0, 0, 1, 1], [], []>} : vector<8x8xbf16>, vector<8x8xbf16>, vector<8x8xf32> -> vector<8x8xf32>
    %184 = arith.truncf %183 : vector<8x8xf32> to vector<8x8xbf16>
    %185 = vector.extract_strided_slice %83 {offsets = [32, 0], sizes = [8, 32], strides = [1, 1]} : vector<96x32xbf16> to vector<8x32xbf16>
    %cst_64 = arith.constant dense<0.000000e+00> : vector<8x32xf32>
    %186 = tpu.matmul %184, %185, %cst_64 {dimension_numbers = #tpu.dot_dimension_numbers<[1], [0], [0], [1], [0, 0, 1, 1], [], []>} : vector<8x8xbf16>, vector<8x32xbf16>, vector<8x32xf32> -> vector<8x32xf32>
    %187 = vector.extract_strided_slice %82 {offsets = [0, 104], sizes = [8, 8], strides = [1, 1]} : vector<8x288xbf16> to vector<8x8xbf16>
    %188 = vector.extract_strided_slice %82 {offsets = [0, 136], sizes = [8, 8], strides = [1, 1]} : vector<8x288xbf16> to vector<8x8xbf16>
    %189 = vector.extract_strided_slice %82 {offsets = [0, 168], sizes = [8, 8], strides = [1, 1]} : vector<8x288xbf16> to vector<8x8xbf16>
    %cst_65 = arith.constant dense<0.000000e+00> : vector<8x8xf32>
    %190 = tpu.matmul %187, %188, %cst_65 {dimension_numbers = #tpu.dot_dimension_numbers<[1], [1], [0], [0], [0, 0, 1, 0], [], []>} : vector<8x8xbf16>, vector<8x8xbf16>, vector<8x8xf32> -> vector<8x8xf32>
    %cst_66 = arith.constant dense<0xFF800000> : vector<8xf32>
    %191 = vector.multi_reduction <maximumf>, %190, %cst_66 [1] : vector<8x8xf32> to vector<8xf32>
    %cst_67 = arith.constant 0xFF800000 : f32
    %192 = vector.broadcast %cst_67 : f32 to vector<8xf32>
    %193 = arith.maximumf %192, %191 : vector<8xf32>
    %194 = vector.shape_cast %193 : vector<8xf32> to vector<8x1xf32>
    %195 = vector.broadcast %194 : vector<8x1xf32> to vector<8x8xf32>
    %196 = arith.subf %190, %195 : vector<8x8xf32>
    %197 = math.exp %196 : vector<8x8xf32>
    %cst_68 = arith.constant dense<0.000000e+00> : vector<8xf32>
    %198 = vector.multi_reduction <add>, %197, %cst_68 [1] : vector<8x8xf32> to vector<8xf32>
    %199 = vector.shape_cast %198 : vector<8xf32> to vector<8x1xf32>
    %200 = vector.broadcast %199 : vector<8x1xf32> to vector<8x8xf32>
    %201 = arith.divf %197, %200 : vector<8x8xf32>
    %202 = arith.truncf %201 : vector<8x8xf32> to vector<8x8xbf16>
    %cst_69 = arith.constant dense<0.000000e+00> : vector<8x8xf32>
    %203 = tpu.matmul %202, %189, %cst_69 {dimension_numbers = #tpu.dot_dimension_numbers<[1], [0], [0], [1], [0, 0, 1, 1], [], []>} : vector<8x8xbf16>, vector<8x8xbf16>, vector<8x8xf32> -> vector<8x8xf32>
    %204 = arith.truncf %203 : vector<8x8xf32> to vector<8x8xbf16>
    %205 = vector.extract_strided_slice %83 {offsets = [40, 0], sizes = [8, 32], strides = [1, 1]} : vector<96x32xbf16> to vector<8x32xbf16>
    %cst_70 = arith.constant dense<0.000000e+00> : vector<8x32xf32>
    %206 = tpu.matmul %204, %205, %cst_70 {dimension_numbers = #tpu.dot_dimension_numbers<[1], [0], [0], [1], [0, 0, 1, 1], [], []>} : vector<8x8xbf16>, vector<8x32xbf16>, vector<8x32xf32> -> vector<8x32xf32>
    %207 = arith.addf %186, %206 : vector<8x32xf32>
    %208 = vector.extract_strided_slice %82 {offsets = [0, 112], sizes = [8, 8], strides = [1, 1]} : vector<8x288xbf16> to vector<8x8xbf16>
    %209 = vector.extract_strided_slice %82 {offsets = [0, 144], sizes = [8, 8], strides = [1, 1]} : vector<8x288xbf16> to vector<8x8xbf16>
    %210 = vector.extract_strided_slice %82 {offsets = [0, 176], sizes = [8, 8], strides = [1, 1]} : vector<8x288xbf16> to vector<8x8xbf16>
    %cst_71 = arith.constant dense<0.000000e+00> : vector<8x8xf32>
    %211 = tpu.matmul %208, %209, %cst_71 {dimension_numbers = #tpu.dot_dimension_numbers<[1], [1], [0], [0], [0, 0, 1, 0], [], []>} : vector<8x8xbf16>, vector<8x8xbf16>, vector<8x8xf32> -> vector<8x8xf32>
    %cst_72 = arith.constant dense<0xFF800000> : vector<8xf32>
    %212 = vector.multi_reduction <maximumf>, %211, %cst_72 [1] : vector<8x8xf32> to vector<8xf32>
    %cst_73 = arith.constant 0xFF800000 : f32
    %213 = vector.broadcast %cst_73 : f32 to vector<8xf32>
    %214 = arith.maximumf %213, %212 : vector<8xf32>
    %215 = vector.shape_cast %214 : vector<8xf32> to vector<8x1xf32>
    %216 = vector.broadcast %215 : vector<8x1xf32> to vector<8x8xf32>
    %217 = arith.subf %211, %216 : vector<8x8xf32>
    %218 = math.exp %217 : vector<8x8xf32>
    %cst_74 = arith.constant dense<0.000000e+00> : vector<8xf32>
    %219 = vector.multi_reduction <add>, %218, %cst_74 [1] : vector<8x8xf32> to vector<8xf32>
    %220 = vector.shape_cast %219 : vector<8xf32> to vector<8x1xf32>
    %221 = vector.broadcast %220 : vector<8x1xf32> to vector<8x8xf32>
    %222 = arith.divf %218, %221 : vector<8x8xf32>
    %223 = arith.truncf %222 : vector<8x8xf32> to vector<8x8xbf16>
    %cst_75 = arith.constant dense<0.000000e+00> : vector<8x8xf32>
    %224 = tpu.matmul %223, %210, %cst_75 {dimension_numbers = #tpu.dot_dimension_numbers<[1], [0], [0], [1], [0, 0, 1, 1], [], []>} : vector<8x8xbf16>, vector<8x8xbf16>, vector<8x8xf32> -> vector<8x8xf32>
    %225 = arith.truncf %224 : vector<8x8xf32> to vector<8x8xbf16>
    %226 = vector.extract_strided_slice %83 {offsets = [48, 0], sizes = [8, 32], strides = [1, 1]} : vector<96x32xbf16> to vector<8x32xbf16>
    %cst_76 = arith.constant dense<0.000000e+00> : vector<8x32xf32>
    %227 = tpu.matmul %225, %226, %cst_76 {dimension_numbers = #tpu.dot_dimension_numbers<[1], [0], [0], [1], [0, 0, 1, 1], [], []>} : vector<8x8xbf16>, vector<8x32xbf16>, vector<8x32xf32> -> vector<8x32xf32>
    %228 = arith.addf %207, %227 : vector<8x32xf32>
    %229 = vector.extract_strided_slice %82 {offsets = [0, 120], sizes = [8, 8], strides = [1, 1]} : vector<8x288xbf16> to vector<8x8xbf16>
    %230 = vector.extract_strided_slice %82 {offsets = [0, 152], sizes = [8, 8], strides = [1, 1]} : vector<8x288xbf16> to vector<8x8xbf16>
    %231 = vector.extract_strided_slice %82 {offsets = [0, 184], sizes = [8, 8], strides = [1, 1]} : vector<8x288xbf16> to vector<8x8xbf16>
    %cst_77 = arith.constant dense<0.000000e+00> : vector<8x8xf32>
    %232 = tpu.matmul %229, %230, %cst_77 {dimension_numbers = #tpu.dot_dimension_numbers<[1], [1], [0], [0], [0, 0, 1, 0], [], []>} : vector<8x8xbf16>, vector<8x8xbf16>, vector<8x8xf32> -> vector<8x8xf32>
    %cst_78 = arith.constant dense<0xFF800000> : vector<8xf32>
    %233 = vector.multi_reduction <maximumf>, %232, %cst_78 [1] : vector<8x8xf32> to vector<8xf32>
    %cst_79 = arith.constant 0xFF800000 : f32
    %234 = vector.broadcast %cst_79 : f32 to vector<8xf32>
    %235 = arith.maximumf %234, %233 : vector<8xf32>
    %236 = vector.shape_cast %235 : vector<8xf32> to vector<8x1xf32>
    %237 = vector.broadcast %236 : vector<8x1xf32> to vector<8x8xf32>
    %238 = arith.subf %232, %237 : vector<8x8xf32>
    %239 = math.exp %238 : vector<8x8xf32>
    %cst_80 = arith.constant dense<0.000000e+00> : vector<8xf32>
    %240 = vector.multi_reduction <add>, %239, %cst_80 [1] : vector<8x8xf32> to vector<8xf32>
    %241 = vector.shape_cast %240 : vector<8xf32> to vector<8x1xf32>
    %242 = vector.broadcast %241 : vector<8x1xf32> to vector<8x8xf32>
    %243 = arith.divf %239, %242 : vector<8x8xf32>
    %244 = arith.truncf %243 : vector<8x8xf32> to vector<8x8xbf16>
    %cst_81 = arith.constant dense<0.000000e+00> : vector<8x8xf32>
    %245 = tpu.matmul %244, %231, %cst_81 {dimension_numbers = #tpu.dot_dimension_numbers<[1], [0], [0], [1], [0, 0, 1, 1], [], []>} : vector<8x8xbf16>, vector<8x8xbf16>, vector<8x8xf32> -> vector<8x8xf32>
    %246 = arith.truncf %245 : vector<8x8xf32> to vector<8x8xbf16>
    %247 = vector.extract_strided_slice %83 {offsets = [56, 0], sizes = [8, 32], strides = [1, 1]} : vector<96x32xbf16> to vector<8x32xbf16>
    %cst_82 = arith.constant dense<0.000000e+00> : vector<8x32xf32>
    %248 = tpu.matmul %246, %247, %cst_82 {dimension_numbers = #tpu.dot_dimension_numbers<[1], [0], [0], [1], [0, 0, 1, 1], [], []>} : vector<8x8xbf16>, vector<8x32xbf16>, vector<8x32xf32> -> vector<8x32xf32>
    %249 = arith.addf %228, %248 : vector<8x32xf32>
    %c0_83 = arith.constant 0 : index
    %c0_84 = arith.constant 0 : index
    %c0_85 = arith.constant 0 : index
    %250 = vector.load %arg6[%c0_83, %c0_84, %c0_85] : memref<4x8x64xbf16, #tpu.memory_space<vmem>>, vector<4x8x64xbf16>
    %251 = vector.extract_strided_slice %82 {offsets = [0, 192], sizes = [8, 8], strides = [1, 1]} : vector<8x288xbf16> to vector<8x8xbf16>
    %252 = vector.extract_strided_slice %82 {offsets = [0, 224], sizes = [8, 8], strides = [1, 1]} : vector<8x288xbf16> to vector<8x8xbf16>
    %253 = vector.extract_strided_slice %82 {offsets = [0, 256], sizes = [8, 8], strides = [1, 1]} : vector<8x288xbf16> to vector<8x8xbf16>
    %254 = vector.extract_strided_slice %250 {offsets = [0, 0, 0], sizes = [1, 8, 64], strides = [1, 1, 1]} : vector<4x8x64xbf16> to vector<1x8x64xbf16>
    %255 = vector.shape_cast %254 : vector<1x8x64xbf16> to vector<8x64xbf16>
    %cst_86 = arith.constant dense<0.000000e+00> : vector<8x64xf32>
    %256 = tpu.matmul %251, %255, %cst_86 {dimension_numbers = #tpu.dot_dimension_numbers<[1], [0], [0], [1], [0, 0, 1, 1], [], []>} : vector<8x8xbf16>, vector<8x64xbf16>, vector<8x64xf32> -> vector<8x64xf32>
    %cst_87 = arith.constant 0.000000e+00 : f32
    %257 = vector.broadcast %cst_87 : f32 to vector<8x64xf32>
    %258 = arith.maximumf %256, %257 : vector<8x64xf32>
    %cst_88 = arith.constant 9.99999997E-7 : f32
    %259 = vector.broadcast %cst_88 : f32 to vector<8x64xf32>
    %260 = arith.addf %258, %259 : vector<8x64xf32>
    %cst_89 = arith.constant dense<0.000000e+00> : vector<8x64xf32>
    %261 = tpu.matmul %252, %255, %cst_89 {dimension_numbers = #tpu.dot_dimension_numbers<[1], [0], [0], [1], [0, 0, 1, 1], [], []>} : vector<8x8xbf16>, vector<8x64xbf16>, vector<8x64xf32> -> vector<8x64xf32>
    %cst_90 = arith.constant 0.000000e+00 : f32
    %262 = vector.broadcast %cst_90 : f32 to vector<8x64xf32>
    %263 = arith.maximumf %261, %262 : vector<8x64xf32>
    %cst_91 = arith.constant 9.99999997E-7 : f32
    %264 = vector.broadcast %cst_91 : f32 to vector<8x64xf32>
    %265 = arith.addf %263, %264 : vector<8x64xf32>
    %266 = tpu.transpose %265, [1, 0] : vector<8x64xf32> -> vector<64x8xf32>
    %267 = arith.truncf %266 : vector<64x8xf32> to vector<64x8xbf16>
    %cst_92 = arith.constant dense<0.000000e+00> : vector<64x8xf32>
    %268 = tpu.matmul %267, %253, %cst_92 {dimension_numbers = #tpu.dot_dimension_numbers<[1], [0], [0], [1], [0, 0, 1, 1], [], []>} : vector<64x8xbf16>, vector<8x8xbf16>, vector<64x8xf32> -> vector<64x8xf32>
    %cst_93 = arith.constant dense<0.000000e+00> : vector<64xf32>
    %269 = vector.multi_reduction <add>, %265, %cst_93 [0] : vector<8x64xf32> to vector<64xf32>
    %270 = vector.shape_cast %269 : vector<64xf32> to vector<1x64xf32>
    %271 = arith.truncf %260 : vector<8x64xf32> to vector<8x64xbf16>
    %272 = arith.truncf %268 : vector<64x8xf32> to vector<64x8xbf16>
    %cst_94 = arith.constant dense<0.000000e+00> : vector<8x8xf32>
    %273 = tpu.matmul %271, %272, %cst_94 {dimension_numbers = #tpu.dot_dimension_numbers<[1], [0], [0], [1], [0, 0, 1, 1], [], []>} : vector<8x64xbf16>, vector<64x8xbf16>, vector<8x8xf32> -> vector<8x8xf32>
    %274 = vector.broadcast %270 : vector<1x64xf32> to vector<8x64xf32>
    %275 = arith.mulf %260, %274 : vector<8x64xf32>
    %cst_95 = arith.constant dense<0.000000e+00> : vector<8xf32>
    %276 = vector.multi_reduction <add>, %275, %cst_95 [1] : vector<8x64xf32> to vector<8xf32>
    %277 = vector.shape_cast %276 : vector<8xf32> to vector<8x1xf32>
    %cst_96 = arith.constant 9.99999997E-7 : f32
    %278 = vector.broadcast %cst_96 : f32 to vector<8x1xf32>
    %279 = arith.addf %277, %278 : vector<8x1xf32>
    %280 = tpu.reciprocal %279 : vector<8x1xf32> -> vector<8x1xf32>
    %281 = vector.broadcast %280 : vector<8x1xf32> to vector<8x8xf32>
    %282 = arith.mulf %273, %281 : vector<8x8xf32>
    %283 = arith.truncf %282 : vector<8x8xf32> to vector<8x8xbf16>
    %284 = vector.extract_strided_slice %83 {offsets = [64, 0], sizes = [8, 32], strides = [1, 1]} : vector<96x32xbf16> to vector<8x32xbf16>
    %cst_97 = arith.constant dense<0.000000e+00> : vector<8x32xf32>
    %285 = tpu.matmul %283, %284, %cst_97 {dimension_numbers = #tpu.dot_dimension_numbers<[1], [0], [0], [1], [0, 0, 1, 1], [], []>} : vector<8x8xbf16>, vector<8x32xbf16>, vector<8x32xf32> -> vector<8x32xf32>
    %286 = vector.extract_strided_slice %82 {offsets = [0, 200], sizes = [8, 8], strides = [1, 1]} : vector<8x288xbf16> to vector<8x8xbf16>
    %287 = vector.extract_strided_slice %82 {offsets = [0, 232], sizes = [8, 8], strides = [1, 1]} : vector<8x288xbf16> to vector<8x8xbf16>
    %288 = vector.extract_strided_slice %82 {offsets = [0, 264], sizes = [8, 8], strides = [1, 1]} : vector<8x288xbf16> to vector<8x8xbf16>
    %289 = vector.extract_strided_slice %250 {offsets = [1, 0, 0], sizes = [1, 8, 64], strides = [1, 1, 1]} : vector<4x8x64xbf16> to vector<1x8x64xbf16>
    %290 = vector.shape_cast %289 : vector<1x8x64xbf16> to vector<8x64xbf16>
    %cst_98 = arith.constant dense<0.000000e+00> : vector<8x64xf32>
    %291 = tpu.matmul %286, %290, %cst_98 {dimension_numbers = #tpu.dot_dimension_numbers<[1], [0], [0], [1], [0, 0, 1, 1], [], []>} : vector<8x8xbf16>, vector<8x64xbf16>, vector<8x64xf32> -> vector<8x64xf32>
    %cst_99 = arith.constant 0.000000e+00 : f32
    %292 = vector.broadcast %cst_99 : f32 to vector<8x64xf32>
    %293 = arith.maximumf %291, %292 : vector<8x64xf32>
    %cst_100 = arith.constant 9.99999997E-7 : f32
    %294 = vector.broadcast %cst_100 : f32 to vector<8x64xf32>
    %295 = arith.addf %293, %294 : vector<8x64xf32>
    %cst_101 = arith.constant dense<0.000000e+00> : vector<8x64xf32>
    %296 = tpu.matmul %287, %290, %cst_101 {dimension_numbers = #tpu.dot_dimension_numbers<[1], [0], [0], [1], [0, 0, 1, 1], [], []>} : vector<8x8xbf16>, vector<8x64xbf16>, vector<8x64xf32> -> vector<8x64xf32>
    %cst_102 = arith.constant 0.000000e+00 : f32
    %297 = vector.broadcast %cst_102 : f32 to vector<8x64xf32>
    %298 = arith.maximumf %296, %297 : vector<8x64xf32>
    %cst_103 = arith.constant 9.99999997E-7 : f32
    %299 = vector.broadcast %cst_103 : f32 to vector<8x64xf32>
    %300 = arith.addf %298, %299 : vector<8x64xf32>
    %301 = tpu.transpose %300, [1, 0] : vector<8x64xf32> -> vector<64x8xf32>
    %302 = arith.truncf %301 : vector<64x8xf32> to vector<64x8xbf16>
    %cst_104 = arith.constant dense<0.000000e+00> : vector<64x8xf32>
    %303 = tpu.matmul %302, %288, %cst_104 {dimension_numbers = #tpu.dot_dimension_numbers<[1], [0], [0], [1], [0, 0, 1, 1], [], []>} : vector<64x8xbf16>, vector<8x8xbf16>, vector<64x8xf32> -> vector<64x8xf32>
    %cst_105 = arith.constant dense<0.000000e+00> : vector<64xf32>
    %304 = vector.multi_reduction <add>, %300, %cst_105 [0] : vector<8x64xf32> to vector<64xf32>
    %305 = vector.shape_cast %304 : vector<64xf32> to vector<1x64xf32>
    %306 = arith.truncf %295 : vector<8x64xf32> to vector<8x64xbf16>
    %307 = arith.truncf %303 : vector<64x8xf32> to vector<64x8xbf16>
    %cst_106 = arith.constant dense<0.000000e+00> : vector<8x8xf32>
    %308 = tpu.matmul %306, %307, %cst_106 {dimension_numbers = #tpu.dot_dimension_numbers<[1], [0], [0], [1], [0, 0, 1, 1], [], []>} : vector<8x64xbf16>, vector<64x8xbf16>, vector<8x8xf32> -> vector<8x8xf32>
    %309 = vector.broadcast %305 : vector<1x64xf32> to vector<8x64xf32>
    %310 = arith.mulf %295, %309 : vector<8x64xf32>
    %cst_107 = arith.constant dense<0.000000e+00> : vector<8xf32>
    %311 = vector.multi_reduction <add>, %310, %cst_107 [1] : vector<8x64xf32> to vector<8xf32>
    %312 = vector.shape_cast %311 : vector<8xf32> to vector<8x1xf32>
    %cst_108 = arith.constant 9.99999997E-7 : f32
    %313 = vector.broadcast %cst_108 : f32 to vector<8x1xf32>
    %314 = arith.addf %312, %313 : vector<8x1xf32>
    %315 = tpu.reciprocal %314 : vector<8x1xf32> -> vector<8x1xf32>
    %316 = vector.broadcast %315 : vector<8x1xf32> to vector<8x8xf32>
    %317 = arith.mulf %308, %316 : vector<8x8xf32>
    %318 = arith.truncf %317 : vector<8x8xf32> to vector<8x8xbf16>
    %319 = vector.extract_strided_slice %83 {offsets = [72, 0], sizes = [8, 32], strides = [1, 1]} : vector<96x32xbf16> to vector<8x32xbf16>
    %cst_109 = arith.constant dense<0.000000e+00> : vector<8x32xf32>
    %320 = tpu.matmul %318, %319, %cst_109 {dimension_numbers = #tpu.dot_dimension_numbers<[1], [0], [0], [1], [0, 0, 1, 1], [], []>} : vector<8x8xbf16>, vector<8x32xbf16>, vector<8x32xf32> -> vector<8x32xf32>
    %321 = arith.addf %285, %320 : vector<8x32xf32>
    %322 = vector.extract_strided_slice %82 {offsets = [0, 208], sizes = [8, 8], strides = [1, 1]} : vector<8x288xbf16> to vector<8x8xbf16>
    %323 = vector.extract_strided_slice %82 {offsets = [0, 240], sizes = [8, 8], strides = [1, 1]} : vector<8x288xbf16> to vector<8x8xbf16>
    %324 = vector.extract_strided_slice %82 {offsets = [0, 272], sizes = [8, 8], strides = [1, 1]} : vector<8x288xbf16> to vector<8x8xbf16>
    %325 = vector.extract_strided_slice %250 {offsets = [2, 0, 0], sizes = [1, 8, 64], strides = [1, 1, 1]} : vector<4x8x64xbf16> to vector<1x8x64xbf16>
    %326 = vector.shape_cast %325 : vector<1x8x64xbf16> to vector<8x64xbf16>
    %cst_110 = arith.constant dense<0.000000e+00> : vector<8x64xf32>
    %327 = tpu.matmul %322, %326, %cst_110 {dimension_numbers = #tpu.dot_dimension_numbers<[1], [0], [0], [1], [0, 0, 1, 1], [], []>} : vector<8x8xbf16>, vector<8x64xbf16>, vector<8x64xf32> -> vector<8x64xf32>
    %cst_111 = arith.constant 0.000000e+00 : f32
    %328 = vector.broadcast %cst_111 : f32 to vector<8x64xf32>
    %329 = arith.maximumf %327, %328 : vector<8x64xf32>
    %cst_112 = arith.constant 9.99999997E-7 : f32
    %330 = vector.broadcast %cst_112 : f32 to vector<8x64xf32>
    %331 = arith.addf %329, %330 : vector<8x64xf32>
    %cst_113 = arith.constant dense<0.000000e+00> : vector<8x64xf32>
    %332 = tpu.matmul %323, %326, %cst_113 {dimension_numbers = #tpu.dot_dimension_numbers<[1], [0], [0], [1], [0, 0, 1, 1], [], []>} : vector<8x8xbf16>, vector<8x64xbf16>, vector<8x64xf32> -> vector<8x64xf32>
    %cst_114 = arith.constant 0.000000e+00 : f32
    %333 = vector.broadcast %cst_114 : f32 to vector<8x64xf32>
    %334 = arith.maximumf %332, %333 : vector<8x64xf32>
    %cst_115 = arith.constant 9.99999997E-7 : f32
    %335 = vector.broadcast %cst_115 : f32 to vector<8x64xf32>
    %336 = arith.addf %334, %335 : vector<8x64xf32>
    %337 = tpu.transpose %336, [1, 0] : vector<8x64xf32> -> vector<64x8xf32>
    %338 = arith.truncf %337 : vector<64x8xf32> to vector<64x8xbf16>
    %cst_116 = arith.constant dense<0.000000e+00> : vector<64x8xf32>
    %339 = tpu.matmul %338, %324, %cst_116 {dimension_numbers = #tpu.dot_dimension_numbers<[1], [0], [0], [1], [0, 0, 1, 1], [], []>} : vector<64x8xbf16>, vector<8x8xbf16>, vector<64x8xf32> -> vector<64x8xf32>
    %cst_117 = arith.constant dense<0.000000e+00> : vector<64xf32>
    %340 = vector.multi_reduction <add>, %336, %cst_117 [0] : vector<8x64xf32> to vector<64xf32>
    %341 = vector.shape_cast %340 : vector<64xf32> to vector<1x64xf32>
    %342 = arith.truncf %331 : vector<8x64xf32> to vector<8x64xbf16>
    %343 = arith.truncf %339 : vector<64x8xf32> to vector<64x8xbf16>
    %cst_118 = arith.constant dense<0.000000e+00> : vector<8x8xf32>
    %344 = tpu.matmul %342, %343, %cst_118 {dimension_numbers = #tpu.dot_dimension_numbers<[1], [0], [0], [1], [0, 0, 1, 1], [], []>} : vector<8x64xbf16>, vector<64x8xbf16>, vector<8x8xf32> -> vector<8x8xf32>
    %345 = vector.broadcast %341 : vector<1x64xf32> to vector<8x64xf32>
    %346 = arith.mulf %331, %345 : vector<8x64xf32>
    %cst_119 = arith.constant dense<0.000000e+00> : vector<8xf32>
    %347 = vector.multi_reduction <add>, %346, %cst_119 [1] : vector<8x64xf32> to vector<8xf32>
    %348 = vector.shape_cast %347 : vector<8xf32> to vector<8x1xf32>
    %cst_120 = arith.constant 9.99999997E-7 : f32
    %349 = vector.broadcast %cst_120 : f32 to vector<8x1xf32>
    %350 = arith.addf %348, %349 : vector<8x1xf32>
    %351 = tpu.reciprocal %350 : vector<8x1xf32> -> vector<8x1xf32>
    %352 = vector.broadcast %351 : vector<8x1xf32> to vector<8x8xf32>
    %353 = arith.mulf %344, %352 : vector<8x8xf32>
    %354 = arith.truncf %353 : vector<8x8xf32> to vector<8x8xbf16>
    %355 = vector.extract_strided_slice %83 {offsets = [80, 0], sizes = [8, 32], strides = [1, 1]} : vector<96x32xbf16> to vector<8x32xbf16>
    %cst_121 = arith.constant dense<0.000000e+00> : vector<8x32xf32>
    %356 = tpu.matmul %354, %355, %cst_121 {dimension_numbers = #tpu.dot_dimension_numbers<[1], [0], [0], [1], [0, 0, 1, 1], [], []>} : vector<8x8xbf16>, vector<8x32xbf16>, vector<8x32xf32> -> vector<8x32xf32>
    %357 = arith.addf %321, %356 : vector<8x32xf32>
    %358 = vector.extract_strided_slice %82 {offsets = [0, 216], sizes = [8, 8], strides = [1, 1]} : vector<8x288xbf16> to vector<8x8xbf16>
    %359 = vector.extract_strided_slice %82 {offsets = [0, 248], sizes = [8, 8], strides = [1, 1]} : vector<8x288xbf16> to vector<8x8xbf16>
    %360 = vector.extract_strided_slice %82 {offsets = [0, 280], sizes = [8, 8], strides = [1, 1]} : vector<8x288xbf16> to vector<8x8xbf16>
    %361 = vector.extract_strided_slice %250 {offsets = [3, 0, 0], sizes = [1, 8, 64], strides = [1, 1, 1]} : vector<4x8x64xbf16> to vector<1x8x64xbf16>
    %362 = vector.shape_cast %361 : vector<1x8x64xbf16> to vector<8x64xbf16>
    %cst_122 = arith.constant dense<0.000000e+00> : vector<8x64xf32>
    %363 = tpu.matmul %358, %362, %cst_122 {dimension_numbers = #tpu.dot_dimension_numbers<[1], [0], [0], [1], [0, 0, 1, 1], [], []>} : vector<8x8xbf16>, vector<8x64xbf16>, vector<8x64xf32> -> vector<8x64xf32>
    %cst_123 = arith.constant 0.000000e+00 : f32
    %364 = vector.broadcast %cst_123 : f32 to vector<8x64xf32>
    %365 = arith.maximumf %363, %364 : vector<8x64xf32>
    %cst_124 = arith.constant 9.99999997E-7 : f32
    %366 = vector.broadcast %cst_124 : f32 to vector<8x64xf32>
    %367 = arith.addf %365, %366 : vector<8x64xf32>
    %cst_125 = arith.constant dense<0.000000e+00> : vector<8x64xf32>
    %368 = tpu.matmul %359, %362, %cst_125 {dimension_numbers = #tpu.dot_dimension_numbers<[1], [0], [0], [1], [0, 0, 1, 1], [], []>} : vector<8x8xbf16>, vector<8x64xbf16>, vector<8x64xf32> -> vector<8x64xf32>
    %cst_126 = arith.constant 0.000000e+00 : f32
    %369 = vector.broadcast %cst_126 : f32 to vector<8x64xf32>
    %370 = arith.maximumf %368, %369 : vector<8x64xf32>
    %cst_127 = arith.constant 9.99999997E-7 : f32
    %371 = vector.broadcast %cst_127 : f32 to vector<8x64xf32>
    %372 = arith.addf %370, %371 : vector<8x64xf32>
    %373 = tpu.transpose %372, [1, 0] : vector<8x64xf32> -> vector<64x8xf32>
    %374 = arith.truncf %373 : vector<64x8xf32> to vector<64x8xbf16>
    %cst_128 = arith.constant dense<0.000000e+00> : vector<64x8xf32>
    %375 = tpu.matmul %374, %360, %cst_128 {dimension_numbers = #tpu.dot_dimension_numbers<[1], [0], [0], [1], [0, 0, 1, 1], [], []>} : vector<64x8xbf16>, vector<8x8xbf16>, vector<64x8xf32> -> vector<64x8xf32>
    %cst_129 = arith.constant dense<0.000000e+00> : vector<64xf32>
    %376 = vector.multi_reduction <add>, %372, %cst_129 [0] : vector<8x64xf32> to vector<64xf32>
    %377 = vector.shape_cast %376 : vector<64xf32> to vector<1x64xf32>
    %378 = arith.truncf %367 : vector<8x64xf32> to vector<8x64xbf16>
    %379 = arith.truncf %375 : vector<64x8xf32> to vector<64x8xbf16>
    %cst_130 = arith.constant dense<0.000000e+00> : vector<8x8xf32>
    %380 = tpu.matmul %378, %379, %cst_130 {dimension_numbers = #tpu.dot_dimension_numbers<[1], [0], [0], [1], [0, 0, 1, 1], [], []>} : vector<8x64xbf16>, vector<64x8xbf16>, vector<8x8xf32> -> vector<8x8xf32>
    %381 = vector.broadcast %377 : vector<1x64xf32> to vector<8x64xf32>
    %382 = arith.mulf %367, %381 : vector<8x64xf32>
    %cst_131 = arith.constant dense<0.000000e+00> : vector<8xf32>
    %383 = vector.multi_reduction <add>, %382, %cst_131 [1] : vector<8x64xf32> to vector<8xf32>
    %384 = vector.shape_cast %383 : vector<8xf32> to vector<8x1xf32>
    %cst_132 = arith.constant 9.99999997E-7 : f32
    %385 = vector.broadcast %cst_132 : f32 to vector<8x1xf32>
    %386 = arith.addf %384, %385 : vector<8x1xf32>
    %387 = tpu.reciprocal %386 : vector<8x1xf32> -> vector<8x1xf32>
    %388 = vector.broadcast %387 : vector<8x1xf32> to vector<8x8xf32>
    %389 = arith.mulf %380, %388 : vector<8x8xf32>
    %390 = arith.truncf %389 : vector<8x8xf32> to vector<8x8xbf16>
    %391 = vector.extract_strided_slice %83 {offsets = [88, 0], sizes = [8, 32], strides = [1, 1]} : vector<96x32xbf16> to vector<8x32xbf16>
    %cst_133 = arith.constant dense<0.000000e+00> : vector<8x32xf32>
    %392 = tpu.matmul %390, %391, %cst_133 {dimension_numbers = #tpu.dot_dimension_numbers<[1], [0], [0], [1], [0, 0, 1, 1], [], []>} : vector<8x8xbf16>, vector<8x32xbf16>, vector<8x32xf32> -> vector<8x32xf32>
    %393 = arith.addf %357, %392 : vector<8x32xf32>
    %c0_134 = arith.constant 0 : index
    %c0_135 = arith.constant 0 : index
    %394 = vector.load %arg5[%c0_134, %c0_135] : memref<3x32xf32, #tpu.memory_space<vmem>>, vector<3x32xf32>
    %395 = vector.extract_strided_slice %394 {offsets = [0, 0], sizes = [1, 32], strides = [1, 1]} : vector<3x32xf32> to vector<1x32xf32>
    %396 = vector.broadcast %66 : vector<1x1xf32> to vector<1x32xf32>
    %397 = arith.mulf %396, %395 : vector<1x32xf32>
    %398 = vector.extract_strided_slice %394 {offsets = [1, 0], sizes = [1, 32], strides = [1, 1]} : vector<3x32xf32> to vector<1x32xf32>
    %399 = vector.broadcast %71 : vector<1x1xf32> to vector<1x32xf32>
    %400 = arith.mulf %399, %398 : vector<1x32xf32>
    %401 = arith.addf %397, %400 : vector<1x32xf32>
    %402 = vector.extract_strided_slice %394 {offsets = [2, 0], sizes = [1, 32], strides = [1, 1]} : vector<3x32xf32> to vector<1x32xf32>
    %403 = vector.broadcast %76 : vector<1x1xf32> to vector<1x32xf32>
    %404 = arith.mulf %403, %402 : vector<1x32xf32>
    %405 = arith.addf %401, %404 : vector<1x32xf32>
    %406 = vector.broadcast %66 : vector<1x1xf32> to vector<8x32xf32>
    %407 = arith.mulf %406, %166 : vector<8x32xf32>
    %408 = vector.broadcast %71 : vector<1x1xf32> to vector<8x32xf32>
    %409 = arith.mulf %408, %249 : vector<8x32xf32>
    %410 = arith.addf %407, %409 : vector<8x32xf32>
    %411 = vector.broadcast %76 : vector<1x1xf32> to vector<8x32xf32>
    %412 = arith.mulf %411, %393 : vector<8x32xf32>
    %413 = arith.addf %410, %412 : vector<8x32xf32>
    %414 = vector.broadcast %405 : vector<1x32xf32> to vector<8x32xf32>
    %415 = arith.addf %413, %414 : vector<8x32xf32>
    %416 = arith.addf %1, %415 : vector<8x32xf32>
    %c0_136 = arith.constant 0 : index
    %c0_137 = arith.constant 0 : index
    %417 = vector.load %arg15[%c0_136, %c0_137] : memref<3x32xf32, #tpu.memory_space<vmem>>, vector<1x32xf32>
    %c0_138 = arith.constant 0 : index
    %c0_139 = arith.constant 0 : index
    %418 = vector.load %arg16[%c0_138, %c0_139] : memref<3x32xf32, #tpu.memory_space<vmem>>, vector<1x32xf32>
    %cst_140 = arith.constant dense<0.000000e+00> : vector<8xf32>
    %419 = vector.multi_reduction <add>, %416, %cst_140 [1] : vector<8x32xf32> to vector<8xf32>
    %420 = vector.shape_cast %419 : vector<8xf32> to vector<8x1xf32>
    %cst_141 = arith.constant 3.200000e+01 : f32
    %421 = vector.broadcast %cst_141 : f32 to vector<8x1xf32>
    %422 = arith.divf %420, %421 : vector<8x1xf32>
    %423 = vector.broadcast %422 : vector<8x1xf32> to vector<8x32xf32>
    %424 = arith.subf %416, %423 : vector<8x32xf32>
    %425 = arith.mulf %424, %424 : vector<8x32xf32>
    %cst_142 = arith.constant dense<0.000000e+00> : vector<8xf32>
    %426 = vector.multi_reduction <add>, %425, %cst_142 [1] : vector<8x32xf32> to vector<8xf32>
    %427 = vector.shape_cast %426 : vector<8xf32> to vector<8x1xf32>
    %cst_143 = arith.constant 3.200000e+01 : f32
    %428 = vector.broadcast %cst_143 : f32 to vector<8x1xf32>
    %429 = arith.divf %427, %428 : vector<8x1xf32>
    %430 = vector.broadcast %422 : vector<8x1xf32> to vector<8x32xf32>
    %431 = arith.subf %416, %430 : vector<8x32xf32>
    %cst_144 = arith.constant 9.99999974E-6 : f32
    %432 = vector.broadcast %cst_144 : f32 to vector<8x1xf32>
    %433 = arith.addf %429, %432 : vector<8x1xf32>
    %434 = math.rsqrt %433 : vector<8x1xf32>
    %435 = vector.broadcast %434 : vector<8x1xf32> to vector<8x32xf32>
    %436 = arith.mulf %431, %435 : vector<8x32xf32>
    %437 = vector.broadcast %417 : vector<1x32xf32> to vector<8x32xf32>
    %438 = arith.mulf %436, %437 : vector<8x32xf32>
    %439 = vector.broadcast %418 : vector<1x32xf32> to vector<8x32xf32>
    %440 = arith.addf %438, %439 : vector<8x32xf32>
    %441 = arith.truncf %440 : vector<8x32xf32> to vector<8x32xbf16>
    %c0_145 = arith.constant 0 : index
    %c0_146 = arith.constant 0 : index
    %442 = vector.load %arg11[%c0_145, %c0_146] : memref<32x64xbf16, #tpu.memory_space<vmem>>, vector<32x64xbf16>
    %cst_147 = arith.constant dense<0.000000e+00> : vector<8x64xf32>
    %443 = tpu.matmul %441, %442, %cst_147 {dimension_numbers = #tpu.dot_dimension_numbers<[1], [0], [0], [1], [0, 0, 1, 1], [], []>} : vector<8x32xbf16>, vector<32x64xbf16>, vector<8x64xf32> -> vector<8x64xf32>
    %c0_148 = arith.constant 0 : index
    %c0_149 = arith.constant 0 : index
    %444 = vector.load %arg12[%c0_148, %c0_149] : memref<1x64xf32, #tpu.memory_space<vmem>>, vector<1x64xf32>
    %445 = vector.broadcast %444 : vector<1x64xf32> to vector<8x64xf32>
    %446 = arith.addf %443, %445 : vector<8x64xf32>
    %447 = arith.mulf %446, %446 : vector<8x64xf32>
    %448 = arith.mulf %446, %447 : vector<8x64xf32>
    %cst_150 = arith.constant 4.471500e-02 : f32
    %449 = vector.broadcast %cst_150 : f32 to vector<8x64xf32>
    %450 = arith.mulf %449, %448 : vector<8x64xf32>
    %451 = arith.addf %446, %450 : vector<8x64xf32>
    %cst_151 = arith.constant 0.797884583 : f32
    %452 = vector.broadcast %cst_151 : f32 to vector<8x64xf32>
    %453 = arith.mulf %452, %451 : vector<8x64xf32>
    %454 = math.tanh %453 : vector<8x64xf32>
    %cst_152 = arith.constant 1.000000e+00 : f32
    %455 = vector.broadcast %cst_152 : f32 to vector<8x64xf32>
    %456 = arith.addf %455, %454 : vector<8x64xf32>
    %cst_153 = arith.constant 5.000000e-01 : f32
    %457 = vector.broadcast %cst_153 : f32 to vector<8x64xf32>
    %458 = arith.mulf %457, %456 : vector<8x64xf32>
    %459 = arith.mulf %446, %458 : vector<8x64xf32>
    %460 = arith.truncf %459 : vector<8x64xf32> to vector<8x64xbf16>
    %c0_154 = arith.constant 0 : index
    %c0_155 = arith.constant 0 : index
    %461 = vector.load %arg13[%c0_154, %c0_155] : memref<64x32xbf16, #tpu.memory_space<vmem>>, vector<64x32xbf16>
    %cst_156 = arith.constant dense<0.000000e+00> : vector<8x32xf32>
    %462 = tpu.matmul %460, %461, %cst_156 {dimension_numbers = #tpu.dot_dimension_numbers<[1], [0], [0], [1], [0, 0, 1, 1], [], []>} : vector<8x64xbf16>, vector<64x32xbf16>, vector<8x32xf32> -> vector<8x32xf32>
    %c0_157 = arith.constant 0 : index
    %c0_158 = arith.constant 0 : index
    %463 = vector.load %arg14[%c0_157, %c0_158] : memref<1x32xf32, #tpu.memory_space<vmem>>, vector<1x32xf32>
    %464 = vector.broadcast %463 : vector<1x32xf32> to vector<8x32xf32>
    %465 = arith.addf %462, %464 : vector<8x32xf32>
    %466 = vector.broadcast %63 : vector<1x1xf32> to vector<8x32xf32>
    %467 = arith.mulf %465, %466 : vector<8x32xf32>
    %468 = arith.addf %440, %467 : vector<8x32xf32>
    %c1 = arith.constant 1 : index
    %c0_159 = arith.constant 0 : index
    %469 = vector.load %arg15[%c1, %c0_159] : memref<3x32xf32, #tpu.memory_space<vmem>>, vector<1x32xf32>
    %c1_160 = arith.constant 1 : index
    %c0_161 = arith.constant 0 : index
    %470 = vector.load %arg16[%c1_160, %c0_161] : memref<3x32xf32, #tpu.memory_space<vmem>>, vector<1x32xf32>
    %cst_162 = arith.constant dense<0.000000e+00> : vector<8xf32>
    %471 = vector.multi_reduction <add>, %468, %cst_162 [1] : vector<8x32xf32> to vector<8xf32>
    %472 = vector.shape_cast %471 : vector<8xf32> to vector<8x1xf32>
    %cst_163 = arith.constant 3.200000e+01 : f32
    %473 = vector.broadcast %cst_163 : f32 to vector<8x1xf32>
    %474 = arith.divf %472, %473 : vector<8x1xf32>
    %475 = vector.broadcast %474 : vector<8x1xf32> to vector<8x32xf32>
    %476 = arith.subf %468, %475 : vector<8x32xf32>
    %477 = arith.mulf %476, %476 : vector<8x32xf32>
    %cst_164 = arith.constant dense<0.000000e+00> : vector<8xf32>
    %478 = vector.multi_reduction <add>, %477, %cst_164 [1] : vector<8x32xf32> to vector<8xf32>
    %479 = vector.shape_cast %478 : vector<8xf32> to vector<8x1xf32>
    %cst_165 = arith.constant 3.200000e+01 : f32
    %480 = vector.broadcast %cst_165 : f32 to vector<8x1xf32>
    %481 = arith.divf %479, %480 : vector<8x1xf32>
    %482 = vector.broadcast %474 : vector<8x1xf32> to vector<8x32xf32>
    %483 = arith.subf %468, %482 : vector<8x32xf32>
    %cst_166 = arith.constant 9.99999974E-6 : f32
    %484 = vector.broadcast %cst_166 : f32 to vector<8x1xf32>
    %485 = arith.addf %481, %484 : vector<8x1xf32>
    %486 = math.rsqrt %485 : vector<8x1xf32>
    %487 = vector.broadcast %486 : vector<8x1xf32> to vector<8x32xf32>
    %488 = arith.mulf %483, %487 : vector<8x32xf32>
    %489 = vector.broadcast %469 : vector<1x32xf32> to vector<8x32xf32>
    %490 = arith.mulf %488, %489 : vector<8x32xf32>
    %491 = vector.broadcast %470 : vector<1x32xf32> to vector<8x32xf32>
    %492 = arith.addf %490, %491 : vector<8x32xf32>
    %c2 = arith.constant 2 : index
    %c0_167 = arith.constant 0 : index
    %493 = vector.load %arg15[%c2, %c0_167] : memref<3x32xf32, #tpu.memory_space<vmem>>, vector<1x32xf32>
    %c2_168 = arith.constant 2 : index
    %c0_169 = arith.constant 0 : index
    %494 = vector.load %arg16[%c2_168, %c0_169] : memref<3x32xf32, #tpu.memory_space<vmem>>, vector<1x32xf32>
    %cst_170 = arith.constant dense<0.000000e+00> : vector<8xf32>
    %495 = vector.multi_reduction <add>, %492, %cst_170 [1] : vector<8x32xf32> to vector<8xf32>
    %496 = vector.shape_cast %495 : vector<8xf32> to vector<8x1xf32>
    %cst_171 = arith.constant 3.200000e+01 : f32
    %497 = vector.broadcast %cst_171 : f32 to vector<8x1xf32>
    %498 = arith.divf %496, %497 : vector<8x1xf32>
    %499 = vector.broadcast %498 : vector<8x1xf32> to vector<8x32xf32>
    %500 = arith.subf %492, %499 : vector<8x32xf32>
    %501 = arith.mulf %500, %500 : vector<8x32xf32>
    %cst_172 = arith.constant dense<0.000000e+00> : vector<8xf32>
    %502 = vector.multi_reduction <add>, %501, %cst_172 [1] : vector<8x32xf32> to vector<8xf32>
    %503 = vector.shape_cast %502 : vector<8xf32> to vector<8x1xf32>
    %cst_173 = arith.constant 3.200000e+01 : f32
    %504 = vector.broadcast %cst_173 : f32 to vector<8x1xf32>
    %505 = arith.divf %503, %504 : vector<8x1xf32>
    %506 = vector.broadcast %498 : vector<8x1xf32> to vector<8x32xf32>
    %507 = arith.subf %492, %506 : vector<8x32xf32>
    %cst_174 = arith.constant 9.99999974E-6 : f32
    %508 = vector.broadcast %cst_174 : f32 to vector<8x1xf32>
    %509 = arith.addf %505, %508 : vector<8x1xf32>
    %510 = math.rsqrt %509 : vector<8x1xf32>
    %511 = vector.broadcast %510 : vector<8x1xf32> to vector<8x32xf32>
    %512 = arith.mulf %507, %511 : vector<8x32xf32>
    %513 = vector.broadcast %493 : vector<1x32xf32> to vector<8x32xf32>
    %514 = arith.mulf %512, %513 : vector<8x32xf32>
    %515 = vector.broadcast %494 : vector<1x32xf32> to vector<8x32xf32>
    %516 = arith.addf %514, %515 : vector<8x32xf32>
    %c0_175 = arith.constant 0 : index
    %c0_176 = arith.constant 0 : index
    %c0_177 = arith.constant 0 : index
    %517 = vector.load %arg17[%c0_175, %c0_176, %c0_177] : memref<1x8x32xf32, #tpu.memory_space<vmem>>, vector<1x8x32xf32>
    %518 = vector.shape_cast %517 : vector<1x8x32xf32> to vector<8x32xf32>
    %519 = vector.shape_cast %516 : vector<8x32xf32> to vector<1x8x32xf32>
    tpu.vector_store %arg17[%c0_175, %c0_176, %c0_177], %519 {strides = array<i32>} : memref<1x8x32xf32, #tpu.memory_space<vmem>>, vector<1x8x32xf32>,
    return
  }
  func.func @transform_0(%arg0: i32) -> (i32, i32, i32) {
    %c0_i32 = arith.constant 0 : i32
    %c0_i32_0 = arith.constant 0 : i32
    %c0_i32_1 = arith.constant 0 : i32
    return %arg0, %c0_i32, %c0_i32_0 : i32, i32, i32
  }
  func.func @transform_1(%arg0: i32) -> (i32, i32) {
    %c0_i32 = arith.constant 0 : i32
    %c0_i32_0 = arith.constant 0 : i32
    %c0_i32_1 = arith.constant 0 : i32
    return %c0_i32, %c0_i32_0 : i32, i32
  }
  func.func @transform_2(%arg0: i32) -> (i32, i32) {
    %c0_i32 = arith.constant 0 : i32
    %c0_i32_0 = arith.constant 0 : i32
    %c0_i32_1 = arith.constant 0 : i32
    return %c0_i32, %c0_i32_0 : i32, i32
  }
  func.func @transform_3(%arg0: i32) -> (i32, i32) {
    %c0_i32 = arith.constant 0 : i32
    %c0_i32_0 = arith.constant 0 : i32
    %c0_i32_1 = arith.constant 0 : i32
    return %c0_i32, %c0_i32_0 : i32, i32
  }
  func.func @transform_4(%arg0: i32) -> (i32, i32) {
    %c0_i32 = arith.constant 0 : i32
    %c0_i32_0 = arith.constant 0 : i32
    %c0_i32_1 = arith.constant 0 : i32
    return %c0_i32, %c0_i32_0 : i32, i32
  }
  func.func @transform_5(%arg0: i32) -> (i32, i32, i32) {
    %c0_i32 = arith.constant 0 : i32
    %c0_i32_0 = arith.constant 0 : i32
    %c0_i32_1 = arith.constant 0 : i32
    %c0_i32_2 = arith.constant 0 : i32
    return %c0_i32, %c0_i32_0, %c0_i32_1 : i32, i32, i32
  }
  func.func @transform_6(%arg0: i32) -> (i32, i32) {
    %c0_i32 = arith.constant 0 : i32
    %c0_i32_0 = arith.constant 0 : i32
    %c0_i32_1 = arith.constant 0 : i32
    return %c0_i32, %c0_i32_0 : i32, i32
  }
  func.func @transform_7(%arg0: i32) -> (i32, i32) {
    %c0_i32 = arith.constant 0 : i32
    %c0_i32_0 = arith.constant 0 : i32
    %c0_i32_1 = arith.constant 0 : i32
    return %c0_i32, %c0_i32_0 : i32, i32
  }
  func.func @transform_8(%arg0: i32) -> (i32, i32) {
    %c0_i32 = arith.constant 0 : i32
    %c0_i32_0 = arith.constant 0 : i32
    %c0_i32_1 = arith.constant 0 : i32
    return %c0_i32, %c0_i32_0 : i32, i32
  }
  func.func @transform_9(%arg0: i32) -> (i32, i32) {
    %c0_i32 = arith.constant 0 : i32
    %c0_i32_0 = arith.constant 0 : i32
    %c0_i32_1 = arith.constant 0 : i32
    return %c0_i32, %c0_i32_0 : i32, i32
  }
  func.func @transform_10(%arg0: i32) -> (i32, i32) {
    %c0_i32 = arith.constant 0 : i32
    %c0_i32_0 = arith.constant 0 : i32
    %c0_i32_1 = arith.constant 0 : i32
    return %c0_i32, %c0_i32_0 : i32, i32
  }
  func.func @transform_11(%arg0: i32) -> (i32, i32) {
    %c0_i32 = arith.constant 0 : i32
    %c0_i32_0 = arith.constant 0 : i32
    %c0_i32_1 = arith.constant 0 : i32
    return %c0_i32, %c0_i32_0 : i32, i32
  }
  func.func @transform_12(%arg0: i32) -> (i32, i32) {
    %c0_i32 = arith.constant 0 : i32
    %c0_i32_0 = arith.constant 0 : i32
    %c0_i32_1 = arith.constant 0 : i32
    return %c0_i32, %c0_i32_0 : i32, i32
  }
  func.func @transform_13(%arg0: i32) -> (i32, i32) {
    %c0_i32 = arith.constant 0 : i32
    %c0_i32_0 = arith.constant 0 : i32
    %c0_i32_1 = arith.constant 0 : i32
    return %c0_i32, %c0_i32_0 : i32, i32
  }
  func.func @transform_14(%arg0: i32) -> (i32, i32) {
    %c0_i32 = arith.constant 0 : i32
    %c0_i32_0 = arith.constant 0 : i32
    %c0_i32_1 = arith.constant 0 : i32
    return %c0_i32, %c0_i32_0 : i32, i32
  }
  func.func @transform_15(%arg0: i32) -> (i32, i32) {
    %c0_i32 = arith.constant 0 : i32
    %c0_i32_0 = arith.constant 0 : i32
    %c0_i32_1 = arith.constant 0 : i32
    return %c0_i32, %c0_i32_0 : i32, i32
  }
  func.func @transform_16(%arg0: i32) -> (i32, i32, i32) {
    %c0_i32 = arith.constant 0 : i32
    %c0_i32_0 = arith.constant 0 : i32
    %c0_i32_1 = arith.constant 0 : i32
    return %arg0, %c0_i32, %c0_i32_0 : i32, i32, i32
  }
}

</mosaic_0001>

<llo_original>
// kernel: tpu_custom_call.1
$region0: #{tpu_custom_call.1}
  #allocation0 [shape = 'u32[]', space=smem, size = 0x4, offset = 0x4, fixed_abs, tag = 'smem constant byte address 0x4 - core index']
  #allocation1 [shape = 'u32[144,128]{1,0:T(1,128)}', space=vmem, size = 0x12000, scoped, tag = 'internal scratch']
  %s0 = inlined_call_operand.vmem [shape: f32[2,8,32], index: 0, kind: input, shape index: {}]
  %s1 = inlined_call_operand.vmem [shape: bf16[32,288], index: 1, kind: input, shape index: {}]
  %s2 = inlined_call_operand.vmem [shape: f32[1,288], index: 2, kind: input, shape index: {}]
  %s3 = inlined_call_operand.vmem [shape: bf16[96,32], index: 3, kind: input, shape index: {}]
  %s4 = inlined_call_operand.vmem [shape: f32[3,32], index: 4, kind: input, shape index: {}]
  %s5 = inlined_call_operand.vmem [shape: bf16[4,8,64], index: 5, kind: input, shape index: {}]
  %s6 = inlined_call_operand.vmem [shape: bf16[32,256], index: 6, kind: input, shape index: {}]
  %s7 = inlined_call_operand.vmem [shape: f32[1,256], index: 7, kind: input, shape index: {}]
  %s8 = inlined_call_operand.vmem [shape: bf16[128,2], index: 8, kind: input, shape index: {}]
  %s9 = inlined_call_operand.vmem [shape: f32[1,2], index: 9, kind: input, shape index: {}]
  %s10 = inlined_call_operand.vmem [shape: bf16[32,64], index: 10, kind: input, shape index: {}]
  %s11 = inlined_call_operand.vmem [shape: f32[1,64], index: 11, kind: input, shape index: {}]
  %s12 = inlined_call_operand.vmem [shape: bf16[64,32], index: 12, kind: input, shape index: {}]
  %s13 = inlined_call_operand.vmem [shape: f32[1,32], index: 13, kind: input, shape index: {}]
  %s14 = inlined_call_operand.vmem [shape: f32[3,32], index: 14, kind: input, shape index: {}]
  %s15 = inlined_call_operand.vmem [shape: f32[3,32], index: 15, kind: input, shape index: {}]
  %s16 = inlined_call_operand.hbm [shape: f32[2,8,32], index: 16, kind: output, shape index: {}]
  %s17 = sld [smem:[#allocation0]]
  $region97: #{tpu_custom_call.1} parent=0
    _
  %s19 = ssub.s32 1, %s17
  %s20 = scalar_select 0, %s19, %s17
  $region1: #{tpu_custom_call.1} parent=0
    #allocation2 [shape = 'u8[8192]{0}', space=vmem, size = 0x2000, scoped, tag = 'output window, operand 0']
    #allocation3 [shape = 's32[2]{0}', space=sflag, size = 0x8, scoped, tag = 'scoped memory for tpu_custom_call.1']
    %21 = vsyncpa [#allocation3], 0
    %s22 = scalar_lea.sflag [#allocation3], 1
    %23 = vsyncpa %s22, 0
    loop: start=0, step=1, limit=4
    $region2: #{tpu_custom_call.1} parent=1 // loop_pre_header
      _
    $region3: #{tpu_custom_call.1} parent=1 // loop_header
      %s25 = sphi 0, %s29
      %p26 = scmp.ge.s32.totalorder %s25, 4
      %s35 = sphi 0, %s37
      %s38 = sphi 0, %s35
      %s39 = sphi 0, %s38
      %s55 = sphi 0, %s39
      %s59 = sphi 0, %s59
      %s61 = sphi 0, %s59
      %s62 = sphi 0, %s61
      %s76 = sphi 0, %s62
      %s80 = sphi 0, %s80
      %s82 = sphi 0, %s80
      %s83 = sphi 0, %s82
      %s97 = sphi 0, %s83
      %s101 = sphi 0, %s101
      %s103 = sphi 0, %s101
      %s104 = sphi 0, %s103
      %s118 = sphi 0, %s104
      %s122 = sphi 0, %s122
      %s124 = sphi 0, %s122
      %s125 = sphi 0, %s124
      %s139 = sphi 0, %s125
      %s143 = sphi 0, %s143
      %s145 = sphi 0, %s143
      %s146 = sphi 0, %s145
      %s160 = sphi 0, %s146
      %s164 = sphi 0, %s164
      %s166 = sphi 0, %s164
      %s167 = sphi 0, %s166
      %s181 = sphi 0, %s167
      %s185 = sphi 0, %s185
      %s187 = sphi 0, %s185
      %s188 = sphi 0, %s187
      %s202 = sphi 0, %s188
      %s206 = sphi 0, %s206
      %s208 = sphi 0, %s206
      %s209 = sphi 0, %s208
      %s223 = sphi 0, %s209
      %s227 = sphi 0, %s227
      %s229 = sphi 0, %s227
      %s230 = sphi 0, %s229
      %s244 = sphi 0, %s230
      %s248 = sphi 0, %s248
      %s250 = sphi 0, %s248
      %s251 = sphi 0, %s250
      %s265 = sphi 0, %s251
      %s269 = sphi 0, %s269
      %s271 = sphi 0, %s269
      %s272 = sphi 0, %s271
      %s286 = sphi 0, %s272
      %s290 = sphi 0, %s290
      %s292 = sphi 0, %s290
      %s293 = sphi 0, %s292
      %s307 = sphi 0, %s293
      %s311 = sphi 0, %s311
      %s313 = sphi 0, %s311
      %s314 = sphi 0, %s313
      %s328 = sphi 0, %s314
      %s332 = sphi 0, %s332
      %s334 = sphi 0, %s332
      %s335 = sphi 0, %s334
      %s349 = sphi 0, %s335
      %s353 = sphi 0, %s353
      %s355 = sphi 0, %s353
      %s356 = sphi 0, %s355
      %s370 = sphi 0, %s356
      %s376 = sphi 0, %s378
      %s379 = sphi 0, %s376
      %s380 = sphi 0, %s379
      %s396 = sphi 0, %s380
    $region4: #{tpu_custom_call.1} parent=1 // loop_header_branch
      %28 = sbr.rel (%p26) target = $region8
    $region5: #{tpu_custom_call.1} parent=1 // loop_body
      %s30 = ssub.s32 %s25, 1
      %s31 = ssub.s32 %s25, 2
      %s32 = sadd.s32 %s25, 1
      %s33 = ssub.s32 %s25, %s32
      %p34 = scmp.eq.s32.totalorder %s33, 0
      %s36 = sadd.s32 %s35, 1
      %s37 = scalar_select %p34, %s35, %s36
      %p40 = pneg %p34
      %p41 = scmp.eq.s32.totalorder %s25, 1
      %p42 = por %p40, %p41
      %p43 = scmp.ne.s32.totalorder %s35, %s38
      %p44 = scmp.eq.s32.totalorder %s25, 0
      %p45 = por %p43, %p44
      %p46 = scmp.ne.s32.totalorder %s35, %s38
      %p47 = scmp.eq.s32.totalorder %s30, 1
      %p48 = por %p46, %p47
      %p49 = scmp.ne.s32.totalorder %s38, %s39
      %p50 = scmp.eq.s32.totalorder %s30, 0
      %p51 = por %p49, %p50
      %p52 = scmp.ne.s32.totalorder %s38, %s39
      %p53 = scmp.eq.s32.totalorder %s31, 1
      %p54 = por %p52, %p53
      %p56 = scmp.ne.s32.totalorder %s39, %s55
      %p57 = scmp.eq.s32.totalorder %s31, 0
      %p58 = por %p56, %p57
      %s60 = sadd.s32 %s59, 1
      %p63 = scmp.eq.s32.totalorder %s25, 1
      %p64 = scmp.ne.s32.totalorder %s59, %s61
      %p65 = scmp.eq.s32.totalorder %s25, 0
      %p66 = por %p64, %p65
      %p67 = scmp.ne.s32.totalorder %s59, %s61
      %p68 = scmp.eq.s32.totalorder %s30, 1
      %p69 = por %p67, %p68
      %p70 = scmp.ne.s32.totalorder %s61, %s62
      %p71 = scmp.eq.s32.totalorder %s30, 0
      %p72 = por %p70, %p71
      %p73 = scmp.ne.s32.totalorder %s61, %s62
      %p74 = scmp.eq.s32.totalorder %s31, 1
      %p75 = por %p73, %p74
      %p77 = scmp.ne.s32.totalorder %s62, %s76
      %p78 = scmp.eq.s32.totalorder %s31, 0
      %p79 = por %p77, %p78
      %s81 = sadd.s32 %s80, 1
      %p84 = scmp.eq.s32.totalorder %s25, 1
      %p85 = scmp.ne.s32.totalorder %s80, %s82
      %p86 = scmp.eq.s32.totalorder %s25, 0
      %p87 = por %p85, %p86
      %p88 = scmp.ne.s32.totalorder %s80, %s82
      %p89 = scmp.eq.s32.totalorder %s30, 1
      %p90 = por %p88, %p89
      %p91 = scmp.ne.s32.totalorder %s82, %s83
      %p92 = scmp.eq.s32.totalorder %s30, 0
      %p93 = por %p91, %p92
      %p94 = scmp.ne.s32.totalorder %s82, %s83
      %p95 = scmp.eq.s32.totalorder %s31, 1
      %p96 = por %p94, %p95
      %p98 = scmp.ne.s32.totalorder %s83, %s97
      %p99 = scmp.eq.s32.totalorder %s31, 0
      %p100 = por %p98, %p99
      %s102 = sadd.s32 %s101, 1
      %p105 = scmp.eq.s32.totalorder %s25, 1
      %p106 = scmp.ne.s32.totalorder %s101, %s103
      %p107 = scmp.eq.s32.totalorder %s25, 0
      %p108 = por %p106, %p107
      %p109 = scmp.ne.s32.totalorder %s101, %s103
      %p110 = scmp.eq.s32.totalorder %s30, 1
      %p111 = por %p109, %p110
      %p112 = scmp.ne.s32.totalorder %s103, %s104
      %p113 = scmp.eq.s32.totalorder %s30, 0
      %p114 = por %p112, %p113
      %p115 = scmp.ne.s32.totalorder %s103, %s104
      %p116 = scmp.eq.s32.totalorder %s31, 1
      %p117 = por %p115, %p116
      %p119 = scmp.ne.s32.totalorder %s104, %s118
      %p120 = scmp.eq.s32.totalorder %s31, 0
      %p121 = por %p119, %p120
      %s123 = sadd.s32 %s122, 1
      %p126 = scmp.eq.s32.totalorder %s25, 1
      %p127 = scmp.ne.s32.totalorder %s122, %s124
      %p128 = scmp.eq.s32.totalorder %s25, 0
      %p129 = por %p127, %p128
      %p130 = scmp.ne.s32.totalorder %s122, %s124
      %p131 = scmp.eq.s32.totalorder %s30, 1
      %p132 = por %p130, %p131
      %p133 = scmp.ne.s32.totalorder %s124, %s125
      %p134 = scmp.eq.s32.totalorder %s30, 0
      %p135 = por %p133, %p134
      %p136 = scmp.ne.s32.totalorder %s124, %s125
      %p137 = scmp.eq.s32.totalorder %s31, 1
      %p138 = por %p136, %p137
      %p140 = scmp.ne.s32.totalorder %s125, %s139
      %p141 = scmp.eq.s32.totalorder %s31, 0
      %p142 = por %p140, %p141
      %s144 = sadd.s32 %s143, 1
      %p147 = scmp.eq.s32.totalorder %s25, 1
      %p148 = scmp.ne.s32.totalorder %s143, %s145
      %p149 = scmp.eq.s32.totalorder %s25, 0
      %p150 = por %p148, %p149
      %p151 = scmp.ne.s32.totalorder %s143, %s145
      %p152 = scmp.eq.s32.totalorder %s30, 1
      %p153 = por %p151, %p152
      %p154 = scmp.ne.s32.totalorder %s145, %s146
      %p155 = scmp.eq.s32.totalorder %s30, 0
      %p156 = por %p154, %p155
      %p157 = scmp.ne.s32.totalorder %s145, %s146
      %p158 = scmp.eq.s32.totalorder %s31, 1
      %p159 = por %p157, %p158
      %p161 = scmp.ne.s32.totalorder %s146, %s160
      %p162 = scmp.eq.s32.totalorder %s31, 0
      %p163 = por %p161, %p162
      %s165 = sadd.s32 %s164, 1
      %p168 = scmp.eq.s32.totalorder %s25, 1
      %p169 = scmp.ne.s32.totalorder %s164, %s166
      %p170 = scmp.eq.s32.totalorder %s25, 0
      %p171 = por %p169, %p170
      %p172 = scmp.ne.s32.totalorder %s164, %s166
      %p173 = scmp.eq.s32.totalorder %s30, 1
      %p174 = por %p172, %p173
      %p175 = scmp.ne.s32.totalorder %s166, %s167
      %p176 = scmp.eq.s32.totalorder %s30, 0
      %p177 = por %p175, %p176
      %p178 = scmp.ne.s32.totalorder %s166, %s167
      %p179 = scmp.eq.s32.totalorder %s31, 1
      %p180 = por %p178, %p179
      %p182 = scmp.ne.s32.totalorder %s167, %s181
      %p183 = scmp.eq.s32.totalorder %s31, 0
      %p184 = por %p182, %p183
      %s186 = sadd.s32 %s185, 1
      %p189 = scmp.eq.s32.totalorder %s25, 1
      %p190 = scmp.ne.s32.totalorder %s185, %s187
      %p191 = scmp.eq.s32.totalorder %s25, 0
      %p192 = por %p190, %p191
      %p193 = scmp.ne.s32.totalorder %s185, %s187
      %p194 = scmp.eq.s32.totalorder %s30, 1
      %p195 = por %p193, %p194
      %p196 = scmp.ne.s32.totalorder %s187, %s188
      %p197 = scmp.eq.s32.totalorder %s30, 0
      %p198 = por %p196, %p197
      %p199 = scmp.ne.s32.totalorder %s187, %s188
      %p200 = scmp.eq.s32.totalorder %s31, 1
      %p201 = por %p199, %p200
      %p203 = scmp.ne.s32.totalorder %s188, %s202
      %p204 = scmp.eq.s32.totalorder %s31, 0
      %p205 = por %p203, %p204
      %s207 = sadd.s32 %s206, 1
      %p210 = scmp.eq.s32.totalorder %s25, 1
      %p211 = scmp.ne.s32.totalorder %s206, %s208
      %p212 = scmp.eq.s32.totalorder %s25, 0
      %p213 = por %p211, %p212
      %p214 = scmp.ne.s32.totalorder %s206, %s208
      %p215 = scmp.eq.s32.totalorder %s30, 1
      %p216 = por %p214, %p215
      %p217 = scmp.ne.s32.totalorder %s208, %s209
      %p218 = scmp.eq.s32.totalorder %s30, 0
      %p219 = por %p217, %p218
      %p220 = scmp.ne.s32.totalorder %s208, %s209
      %p221 = scmp.eq.s32.totalorder %s31, 1
      %p222 = por %p220, %p221
      %p224 = scmp.ne.s32.totalorder %s209, %s223
      %p225 = scmp.eq.s32.totalorder %s31, 0
      %p226 = por %p224, %p225
      %s228 = sadd.s32 %s227, 1
      %p231 = scmp.eq.s32.totalorder %s25, 1
      %p232 = scmp.ne.s32.totalorder %s227, %s229
      %p233 = scmp.eq.s32.totalorder %s25, 0
      %p234 = por %p232, %p233
      %p235 = scmp.ne.s32.totalorder %s227, %s229
      %p236 = scmp.eq.s32.totalorder %s30, 1
      %p237 = por %p235, %p236
      %p238 = scmp.ne.s32.totalorder %s229, %s230
      %p239 = scmp.eq.s32.totalorder %s30, 0
      %p240 = por %p238, %p239
      %p241 = scmp.ne.s32.totalorder %s229, %s230
      %p242 = scmp.eq.s32.totalorder %s31, 1
      %p243 = por %p241, %p242
      %p245 = scmp.ne.s32.totalorder %s230, %s244
      %p246 = scmp.eq.s32.totalorder %s31, 0
      %p247 = por %p245, %p246
      %s249 = sadd.s32 %s248, 1
      %p252 = scmp.eq.s32.totalorder %s25, 1
      %p253 = scmp.ne.s32.totalorder %s248, %s250
      %p254 = scmp.eq.s32.totalorder %s25, 0
      %p255 = por %p253, %p254
      %p256 = scmp.ne.s32.totalorder %s248, %s250
      %p257 = scmp.eq.s32.totalorder %s30, 1
      %p258 = por %p256, %p257
      %p259 = scmp.ne.s32.totalorder %s250, %s251
      %p260 = scmp.eq.s32.totalorder %s30, 0
      %p261 = por %p259, %p260
      %p262 = scmp.ne.s32.totalorder %s250, %s251
      %p263 = scmp.eq.s32.totalorder %s31, 1
      %p264 = por %p262, %p263
      %p266 = scmp.ne.s32.totalorder %s251, %s265
      %p267 = scmp.eq.s32.totalorder %s31, 0
      %p268 = por %p266, %p267
      %s270 = sadd.s32 %s269, 1
      %p273 = scmp.eq.s32.totalorder %s25, 1
      %p274 = scmp.ne.s32.totalorder %s269, %s271
      %p275 = scmp.eq.s32.totalorder %s25, 0
      %p276 = por %p274, %p275
      %p277 = scmp.ne.s32.totalorder %s269, %s271
      %p278 = scmp.eq.s32.totalorder %s30, 1
      %p279 = por %p277, %p278
      %p280 = scmp.ne.s32.totalorder %s271, %s272
      %p281 = scmp.eq.s32.totalorder %s30, 0
      %p282 = por %p280, %p281
      %p283 = scmp.ne.s32.totalorder %s271, %s272
      %p284 = scmp.eq.s32.totalorder %s31, 1
      %p285 = por %p283, %p284
      %p287 = scmp.ne.s32.totalorder %s272, %s286
      %p288 = scmp.eq.s32.totalorder %s31, 0
      %p289 = por %p287, %p288
      %s291 = sadd.s32 %s290, 1
      %p294 = scmp.eq.s32.totalorder %s25, 1
      %p295 = scmp.ne.s32.totalorder %s290, %s292
      %p296 = scmp.eq.s32.totalorder %s25, 0
      %p297 = por %p295, %p296
      %p298 = scmp.ne.s32.totalorder %s290, %s292
      %p299 = scmp.eq.s32.totalorder %s30, 1
      %p300 = por %p298, %p299
      %p301 = scmp.ne.s32.totalorder %s292, %s293
      %p302 = scmp.eq.s32.totalorder %s30, 0
      %p303 = por %p301, %p302
      %p304 = scmp.ne.s32.totalorder %s292, %s293
      %p305 = scmp.eq.s32.totalorder %s31, 1
      %p306 = por %p304, %p305
      %p308 = scmp.ne.s32.totalorder %s293, %s307
      %p309 = scmp.eq.s32.totalorder %s31, 0
      %p310 = por %p308, %p309
      %s312 = sadd.s32 %s311, 1
      %p315 = scmp.eq.s32.totalorder %s25, 1
      %p316 = scmp.ne.s32.totalorder %s311, %s313
      %p317 = scmp.eq.s32.totalorder %s25, 0
      %p318 = por %p316, %p317
      %p319 = scmp.ne.s32.totalorder %s311, %s313
      %p320 = scmp.eq.s32.totalorder %s30, 1
      %p321 = por %p319, %p320
      %p322 = scmp.ne.s32.totalorder %s313, %s314
      %p323 = scmp.eq.s32.totalorder %s30, 0
      %p324 = por %p322, %p323
      %p325 = scmp.ne.s32.totalorder %s313, %s314
      %p326 = scmp.eq.s32.totalorder %s31, 1
      %p327 = por %p325, %p326
      %p329 = scmp.ne.s32.totalorder %s314, %s328
      %p330 = scmp.eq.s32.totalorder %s31, 0
      %p331 = por %p329, %p330
      %s333 = sadd.s32 %s332, 1
      %p336 = scmp.eq.s32.totalorder %s25, 1
      %p337 = scmp.ne.s32.totalorder %s332, %s334
      %p338 = scmp.eq.s32.totalorder %s25, 0
      %p339 = por %p337, %p338
      %p340 = scmp.ne.s32.totalorder %s332, %s334
      %p341 = scmp.eq.s32.totalorder %s30, 1
      %p342 = por %p340, %p341
      %p343 = scmp.ne.s32.totalorder %s334, %s335
      %p344 = scmp.eq.s32.totalorder %s30, 0
      %p345 = por %p343, %p344
      %p346 = scmp.ne.s32.totalorder %s334, %s335
      %p347 = scmp.eq.s32.totalorder %s31, 1
      %p348 = por %p346, %p347
      %p350 = scmp.ne.s32.totalorder %s335, %s349
      %p351 = scmp.eq.s32.totalorder %s31, 0
      %p352 = por %p350, %p351
      %s354 = sadd.s32 %s353, 1
      %p357 = scmp.eq.s32.totalorder %s25, 1
      %p358 = scmp.ne.s32.totalorder %s353, %s355
      %p359 = scmp.eq.s32.totalorder %s25, 0
      %p360 = por %p358, %p359
      %p361 = scmp.ne.s32.totalorder %s353, %s355
      %p362 = scmp.eq.s32.totalorder %s30, 1
      %p363 = por %p361, %p362
      %p364 = scmp.ne.s32.totalorder %s355, %s356
      %p365 = scmp.eq.s32.totalorder %s30, 0
      %p366 = por %p364, %p365
      %p367 = scmp.ne.s32.totalorder %s355, %s356
      %p368 = scmp.eq.s32.totalorder %s31, 1
      %p369 = por %p367, %p368
      %p371 = scmp.ne.s32.totalorder %s356, %s370
      %p372 = scmp.eq.s32.totalorder %s31, 0
      %p373 = por %p371, %p372
      %s374 = ssub.s32 %s25, %s32
      %p375 = scmp.eq.s32.totalorder %s374, 0
      %s377 = sadd.s32 %s376, 1
      %s378 = scalar_select %p375, %s376, %s377
      %p381 = pneg %p375
      %p382 = scmp.eq.s32.totalorder %s25, 1
      %p383 = por %p381, %p382
      %p384 = scmp.ne.s32.totalorder %s376, %s379
      %p385 = scmp.eq.s32.totalorder %s25, 0
      %p386 = por %p384, %p385
      %p387 = scmp.ne.s32.totalorder %s376, %s379
      %p388 = scmp.eq.s32.totalorder %s30, 1
      %p389 = por %p387, %p388
      %p390 = scmp.ne.s32.totalorder %s379, %s380
      %p391 = scmp.eq.s32.totalorder %s30, 0
      %p392 = por %p390, %p391
      %p393 = scmp.ne.s32.totalorder %s379, %s380
      %p394 = scmp.eq.s32.totalorder %s31, 1
      %p395 = por %p393, %p394
      %p397 = scmp.ne.s32.totalorder %s380, %s396
      %p398 = scmp.eq.s32.totalorder %s31, 0
      %p399 = por %p397, %p398
      %p400 = scmp.le.s32.totalorder 1, %s25
      %p401 = scmp.lt.s32.totalorder %s25, 3
      %p402 = pnand %p400, %p401
      %p403 = pneg %p402
      // Predicated region
      $region9: #{tpu_custom_call.1} parent=5 // pred_check
        _
      $region10: #{tpu_custom_call.1} parent=5 // pred_check_branch
        %405 = sbr.rel (%p402) target = $region12
      $region11: #{tpu_custom_call.1} parent=5 // pred_region
        %s406 = ssub.s32 %s25, 1
        // Predicated region
        $region13: #{tpu_custom_call.1} parent=11 // pred_check
          %p407 = pneg %p72
        $region14: #{tpu_custom_call.1} parent=11 // pred_check_branch
          %409 = sbr.rel (%p407) target = $region16
        $region15: #{tpu_custom_call.1} parent=11 // pred_region
          _
        $region16: #{tpu_custom_call.1} parent=11 // pred_fallthru
          _
        // Predicated region
        $region17: #{tpu_custom_call.1} parent=11 // pred_check
          %p410 = pneg %p93
        $region18: #{tpu_custom_call.1} parent=11 // pred_check_branch
          %412 = sbr.rel (%p410) target = $region20
        $region19: #{tpu_custom_call.1} parent=11 // pred_region
          _
        $region20: #{tpu_custom_call.1} parent=11 // pred_fallthru
          _
        // Predicated region
        $region21: #{tpu_custom_call.1} parent=11 // pred_check
          %p413 = pneg %p114
        $region22: #{tpu_custom_call.1} parent=11 // pred_check_branch
          %415 = sbr.rel (%p413) target = $region24
        $region23: #{tpu_custom_call.1} parent=11 // pred_region
          _
        $region24: #{tpu_custom_call.1} parent=11 // pred_fallthru
          _
        // Predicated region
        $region25: #{tpu_custom_call.1} parent=11 // pred_check
          %p416 = pneg %p135
        $region26: #{tpu_custom_call.1} parent=11 // pred_check_branch
          %418 = sbr.rel (%p416) target = $region28
        $region27: #{tpu_custom_call.1} parent=11 // pred_region
          _
        $region28: #{tpu_custom_call.1} parent=11 // pred_fallthru
          _
        // Predicated region
        $region29: #{tpu_custom_call.1} parent=11 // pred_check
          %p419 = pneg %p156
        $region30: #{tpu_custom_call.1} parent=11 // pred_check_branch
          %421 = sbr.rel (%p419) target = $region32
        $region31: #{tpu_custom_call.1} parent=11 // pred_region
          _
        $region32: #{tpu_custom_call.1} parent=11 // pred_fallthru
          _
        // Predicated region
        $region33: #{tpu_custom_call.1} parent=11 // pred_check
          %p422 = pneg %p177
        $region34: #{tpu_custom_call.1} parent=11 // pred_check_branch
          %424 = sbr.rel (%p422) target = $region36
        $region35: #{tpu_custom_call.1} parent=11 // pred_region
          _
        $region36: #{tpu_custom_call.1} parent=11 // pred_fallthru
          _
        // Predicated region
        $region37: #{tpu_custom_call.1} parent=11 // pred_check
          %p425 = pneg %p198
        $region38: #{tpu_custom_call.1} parent=11 // pred_check_branch
          %427 = sbr.rel (%p425) target = $region40
        $region39: #{tpu_custom_call.1} parent=11 // pred_region
          _
        $region40: #{tpu_custom_call.1} parent=11 // pred_fallthru
          _
        // Predicated region
        $region41: #{tpu_custom_call.1} parent=11 // pred_check
          %p428 = pneg %p219
        $region42: #{tpu_custom_call.1} parent=11 // pred_check_branch
          %430 = sbr.rel (%p428) target = $region44
        $region43: #{tpu_custom_call.1} parent=11 // pred_region
          _
        $region44: #{tpu_custom_call.1} parent=11 // pred_fallthru
          _
        // Predicated region
        $region45: #{tpu_custom_call.1} parent=11 // pred_check
          %p431 = pneg %p240
        $region46: #{tpu_custom_call.1} parent=11 // pred_check_branch
          %433 = sbr.rel (%p431) target = $region48
        $region47: #{tpu_custom_call.1} parent=11 // pred_region
          _
        $region48: #{tpu_custom_call.1} parent=11 // pred_fallthru
          _
        // Predicated region
        $region49: #{tpu_custom_call.1} parent=11 // pred_check
          %p434 = pneg %p261
        $region50: #{tpu_custom_call.1} parent=11 // pred_check_branch
          %436 = sbr.rel (%p434) target = $region52
        $region51: #{tpu_custom_call.1} parent=11 // pred_region
          _
        $region52: #{tpu_custom_call.1} parent=11 // pred_fallthru
          _
        // Predicated region
        $region53: #{tpu_custom_call.1} parent=11 // pred_check
          %p437 = pneg %p282
        $region54: #{tpu_custom_call.1} parent=11 // pred_check_branch
          %439 = sbr.rel (%p437) target = $region56
        $region55: #{tpu_custom_call.1} parent=11 // pred_region
          _
        $region56: #{tpu_custom_call.1} parent=11 // pred_fallthru
          _
        // Predicated region
        $region57: #{tpu_custom_call.1} parent=11 // pred_check
          %p440 = pneg %p303
        $region58: #{tpu_custom_call.1} parent=11 // pred_check_branch
          %442 = sbr.rel (%p440) target = $region60
        $region59: #{tpu_custom_call.1} parent=11 // pred_region
          _
        $region60: #{tpu_custom_call.1} parent=11 // pred_fallthru
          _
        // Predicated region
        $region61: #{tpu_custom_call.1} parent=11 // pred_check
          %p443 = pneg %p324
        $region62: #{tpu_custom_call.1} parent=11 // pred_check_branch
          %445 = sbr.rel (%p443) target = $region64
        $region63: #{tpu_custom_call.1} parent=11 // pred_region
          _
        $region64: #{tpu_custom_call.1} parent=11 // pred_fallthru
          _
        // Predicated region
        $region65: #{tpu_custom_call.1} parent=11 // pred_check
          %p446 = pneg %p345
        $region66: #{tpu_custom_call.1} parent=11 // pred_check_branch
          %448 = sbr.rel (%p446) target = $region68
        $region67: #{tpu_custom_call.1} parent=11 // pred_region
          _
        $region68: #{tpu_custom_call.1} parent=11 // pred_fallthru
          _
        // Predicated region
        $region69: #{tpu_custom_call.1} parent=11 // pred_check
          %p449 = pneg %p366
        $region70: #{tpu_custom_call.1} parent=11 // pred_check_branch
          %451 = sbr.rel (%p449) target = $region72
        $region71: #{tpu_custom_call.1} parent=11 // pred_region
          _
        $region72: #{tpu_custom_call.1} parent=11 // pred_fallthru
          _
      $region12: #{tpu_custom_call.1} parent=5 // pred_fallthru
        _
      %p452 = scmp.lt.s32.totalorder %s25, 2
      // Predicated region
      $region73: #{tpu_custom_call.1} parent=5 // pred_check
        %p453 = pneg %p452
      $region74: #{tpu_custom_call.1} parent=5 // pred_check_branch
        %455 = sbr.rel (%p453) target = $region76
      $region75: #{tpu_custom_call.1} parent=5 // pred_region
        // Predicated region
        $region77: #{tpu_custom_call.1} parent=75 // pred_check
          %p456 = pneg %p45
        $region78: #{tpu_custom_call.1} parent=75 // pred_check_branch
          %458 = sbr.rel (%p456) target = $region80
        $region79: #{tpu_custom_call.1} parent=75 // pred_region
          %p459 = scmp.lt.s32.totalorder %s25, 1
          %s460 = scalar_select %p459, %s25, 1
          %s461 = smul.addr %s460, 8
          %s462 = scalar_lea.vmem %s0, %s461
        $region80: #{tpu_custom_call.1} parent=75 // pred_fallthru
          _
      $region76: #{tpu_custom_call.1} parent=5 // pred_fallthru
        _
      %p463 = scmp.le.s32.totalorder 1, %s25
      %p464 = scmp.lt.s32.totalorder %s25, 3
      %p465 = pnand %p463, %p464
      %p466 = pneg %p465
      // Predicated region
      $region81: #{tpu_custom_call.1} parent=5 // pred_check
        _
      $region82: #{tpu_custom_call.1} parent=5 // pred_check_branch
        %468 = sbr.rel (%p465) target = $region84
      $region83: #{tpu_custom_call.1} parent=5 // pred_region
        %s469 = ssub.s32 %s25, 1
        %p470 = scmp.lt.s32.totalorder %s30, 1
        %s471 = scalar_select %p470, %s30, 1
        %s472 = smul.addr %s471, 8
        %s473 = scalar_lea.vmem %s0, %s472
        %p474 = pneg %p51
        %p475 = pneg %p48
        %p476 = pneg %p72
        %p477 = pneg %p69
        %p478 = pneg %p93
        %p479 = pneg %p90
        %p480 = pneg %p114
        %p481 = pneg %p111
        %p482 = pneg %p135
        %p483 = pneg %p132
        %p484 = pneg %p156
        %p485 = pneg %p153
        %p486 = pneg %p177
        %p487 = pneg %p174
        %p488 = pneg %p198
        %p489 = pneg %p195
        %p490 = pneg %p219
        %p491 = pneg %p216
        %p492 = pneg %p240
        %p493 = pneg %p237
        %p494 = pneg %p261
        %p495 = pneg %p258
        %p496 = pneg %p282
        %p497 = pneg %p279
        %p498 = pneg %p303
        %p499 = pneg %p300
        %p500 = pneg %p324
        %p501 = pneg %p321
        %p502 = pneg %p345
        %p503 = pneg %p342
        %p504 = pneg %p366
        %p505 = pneg %p363
        %p506 = pneg %p392
        %p507 = pneg %p389
        %s508 = sand.u32 %s379, 1
        %s509 = scalar_lea.sflag [#allocation3], %s508
        %s510 = sand.u32 %s379, 1
        %s511 = smul.addr %s510, 8
        %s512 = scalar_lea.vmem [#allocation2], %s511
        %p513 = scmp.lt.s32.totalorder %s30, 1
        %s514 = scalar_select %p513, %s30, 1
        %s515 = smul.addr %s514, 8
        %s516 = scalar_lea.vmem %s0, %s515
        %v518 = vld [vmem:[%s516] sm:$0xff]
        %v519 = vpack.c.bf16 %v518, %v518
        %vm520 = vcmask 261120
        %v521 = vsel %vm520, %v518, 0.0
        %v522 = vrot.slane %v521, 4
        %v523 = vadd.f32 %v521, %v522
        %v524 = vrot.slane %v523, 2
        %v525 = vadd.f32 %v523, %v524
        %v526 = vrot.slane %v525, 1
        %v527 = vadd.f32 %v525, %v526
        %v528 = vrcp.pop 8.0
        %v529 = vmul.f32 %v527, %v528
        %v530 = vpack.c.bf16 %v529, %v529
        %v531 = vld [vmem:[%s6] sm:$0xff]
        %v532 = vld [vmem:[%s6 + $0x8] sm:$0xff]
        %v533 = vld [vmem:[%s6 + $0x10] sm:$0xff]
        %v534 = vld [vmem:[%s6 + $0x18] sm:$0xff]
        %v535 = vld [vmem:[%s7] sm:$0x3]
        %v540 = vunpack.c.l.b16 %v531
        %v541 = vunpack.c.h.b16 %v531
        %v542 = vunpack.c.l.b16 %v532
        %v543 = vunpack.c.h.b16 %v532
        %v544 = vunpack.c.l.b16 %v533
        %v545 = vunpack.c.h.b16 %v533
        %v546 = vunpack.c.l.b16 %v534
        %v547 = vunpack.c.h.b16 %v534
        %v548 = vpack.c.b16 %v542, %v540
        %v549 = vpack.c.b16 %v543, %v541
        %v550 = vpack.c.b16 %v546, %v544
        %v551 = vpack.c.b16 %v547, %v545
        %v557 = vlaneseq
        %v558 = vshrl.u32 %v557, 7
        %v559 = vsub.s32 0, %v558
        %v560 = vrot.slane %v535, %v559
        %v561 = vlaneseq
        %v562 = vshrl.u32 %v561, 7
        %v563 = vsub.s32 1, %v562
        %v564 = vrot.slane %v535, %v563
        %v568 = vsel %vm520, %v530, 0
        %570 = vmatprep.subr.bf16.mxu0 %v549
        %571 = vmatpush1.bf16.msra.mxu0 %v548
        %572 = vmatprep.subr.bf16.mxu0 %v551
        %573 = vmatpush1.bf16.msra.mxu0 %v550
        %574 = vmatprep.subr.bf16.mxu0 0
        %575 = vmatpush1.bf16.msra.mxu0 0
        %576 = vmatprep.subr.bf16.mxu0 0
        %577 = vmatpush1.bf16.msra.mxu0 0
        %578 = vmatprep.subr.bf16.mxu0 0
        %579 = vmatpush1.bf16.msra.mxu0 0
        %580 = vmatprep.subr.bf16.mxu0 0
        %581 = vmatpush1.bf16.msra.mxu0 0
        %582 = vmatprep.subr.bf16.mxu0 0
        %583 = vmatpush1.bf16.msra.mxu0 0
        %584 = vmatprep.subr.bf16.mxu0 0
        %585 = vmatpush1.bf16.msra.mxu0 0
        %586 = vmatprep.subr.bf16.mxu0 0
        %587 = vmatpush1.bf16.msra.mxu0 0
        %588 = vmatprep.subr.bf16.mxu0 0
        %589 = vmatpush1.bf16.msra.mxu0 0
        %590 = vmatprep.subr.bf16.mxu0 0
        %591 = vmatpush1.bf16.msra.mxu0 0
        %592 = vmatprep.subr.bf16.mxu0 0
        %593 = vmatpush1.bf16.msra.mxu0 0
        %594 = vmatprep.subr.bf16.mxu0 0
        %595 = vmatpush1.bf16.msra.mxu0 0
        %596 = vmatprep.subr.bf16.mxu0 0
        %597 = vmatpush1.bf16.msra.mxu0 0
        %598 = vmatprep.subr.bf16.mxu0 0
        %599 = vmatpush1.bf16.msra.mxu0 0
        %600 = vmatprep.subr.bf16.mxu0 0
        %601 = vmatpush1.bf16.msra.mxu0 0
        %602 = vmatprep.mubr.bf16.mxu0 0
        %603 = vmatmul.mubr.bf16.gmra.mrb[0].mxu0 %v568
        %v604 = vpop.f32.mrb[0].mxu0
        %v605 = vadd.f32 %v560, %v604
        %v606 = vpop.f32.mrb[0].mxu0
        %v607 = vadd.f32 %v564, %v606
        %v608 = vpop.f32.mrb[0].mxu0
        %v609 = vpop.f32.mrb[0].mxu0
        %610 = vdwg.mxu0
        %v611 = vmul.f32 %v605, %v605
        %v612 = vmul.f32 %v605, %v611
        %v613 = vmul.f32 %v612, 0.044715
        %v614 = vadd.f32 %v605, %v613
        %v615 = vmul.f32 %v614, 0.7978846
        %v616 = vtanh.pop %v615
        %v617 = vadd.f32 %v616, 1.0
        %v618 = vmul.f32 %v617, 0.5
        %v619 = vmul.f32 %v605, %v618
        %v620 = vpack.c.bf16 %v619, %v619
        %v621 = vld [vmem:[%s8] sm:$0xf]
        %v622 = vld [vmem:[%s8 + $0x4] sm:$0xf]
        %v623 = vld [vmem:[%s8 + $0x8] sm:$0xf]
        %v624 = vld [vmem:[%s8 + $0xc] sm:$0xf]
        %v625 = vld [vmem:[%s8 + $0x10] sm:$0xf]
        %v626 = vld [vmem:[%s8 + $0x14] sm:$0xf]
        %v627 = vld [vmem:[%s8 + $0x18] sm:$0xf]
        %v628 = vld [vmem:[%s8 + $0x1c] sm:$0xf]
        %v629 = vld [vmem:[%s8 + $0x20] sm:$0xf]
        %v630 = vld [vmem:[%s8 + $0x24] sm:$0xf]
        %v631 = vld [vmem:[%s8 + $0x28] sm:$0xf]
        %v632 = vld [vmem:[%s8 + $0x2c] sm:$0xf]
        %v633 = vld [vmem:[%s8 + $0x30] sm:$0xf]
        %v634 = vld [vmem:[%s8 + $0x34] sm:$0xf]
        %v635 = vld [vmem:[%s8 + $0x38] sm:$0xf]
        %v636 = vld [vmem:[%s8 + $0x3c] sm:$0xf]
        %v637 = vld [vmem:[%s9] sm:$0x1]
        %v654 = vunpack.c.l.b16 %v621
        %v655 = vunpack.c.l.b16 %v622
        %v656 = vunpack.c.l.b16 %v623
        %v657 = vunpack.c.l.b16 %v624
        %v658 = vunpack.c.l.b16 %v625
        %v659 = vunpack.c.l.b16 %v626
        %v660 = vunpack.c.l.b16 %v627
        %v661 = vunpack.c.l.b16 %v628
        %v662 = vunpack.c.l.b16 %v629
        %v663 = vunpack.c.l.b16 %v630
        %v664 = vunpack.c.l.b16 %v631
        %v665 = vunpack.c.l.b16 %v632
        %v666 = vunpack.c.l.b16 %v633
        %v667 = vunpack.c.l.b16 %v634
        %v668 = vunpack.c.l.b16 %v635
        %v669 = vunpack.c.l.b16 %v636
        %v670 = vpack.c.b16 %v655, %v654
        %v671 = vpack.c.b16 %v657, %v656
        %v672 = vpack.c.b16 %v659, %v658
        %v673 = vpack.c.b16 %v661, %v660
        %v674 = vpack.c.b16 %v663, %v662
        %v675 = vpack.c.b16 %v665, %v664
        %v676 = vpack.c.b16 %v667, %v666
        %v677 = vpack.c.b16 %v669, %v668
        %686 = vmatprep.subr.bf16.mxu0 0
        %687 = vmatpush1.bf16.msra.mxu0 %v670
        %688 = vmatprep.subr.bf16.mxu0 0
        %689 = vmatpush1.bf16.msra.mxu0 %v671
        %690 = vmatprep.subr.bf16.mxu0 0
        %691 = vmatpush1.bf16.msra.mxu0 %v672
        %692 = vmatprep.subr.bf16.mxu0 0
        %693 = vmatpush1.bf16.msra.mxu0 %v673
        %694 = vmatprep.subr.bf16.mxu0 0
        %695 = vmatpush1.bf16.msra.mxu0 %v674
        %696 = vmatprep.subr.bf16.mxu0 0
        %697 = vmatpush1.bf16.msra.mxu0 %v675
        %698 = vmatprep.subr.bf16.mxu0 0
        %699 = vmatpush1.bf16.msra.mxu0 %v676
        %700 = vmatprep.subr.bf16.mxu0 0
        %701 = vmatpush1.bf16.msra.mxu0 %v677
        %702 = vmatprep.subr.bf16.mxu0 0
        %703 = vmatpush1.bf16.msra.mxu0 0
        %704 = vmatprep.subr.bf16.mxu0 0
        %705 = vmatpush1.bf16.msra.mxu0 0
        %706 = vmatprep.subr.bf16.mxu0 0
        %707 = vmatpush1.bf16.msra.mxu0 0
        %708 = vmatprep.subr.bf16.mxu0 0
        %709 = vmatpush1.bf16.msra.mxu0 0
        %710 = vmatprep.subr.bf16.mxu0 0
        %711 = vmatpush1.bf16.msra.mxu0 0
        %712 = vmatprep.subr.bf16.mxu0 0
        %713 = vmatpush1.bf16.msra.mxu0 0
        %714 = vmatprep.subr.bf16.mxu0 0
        %715 = vmatpush1.bf16.msra.mxu0 0
        %716 = vmatprep.subr.bf16.mxu0 0
        %717 = vmatpush1.bf16.msra.mxu0 0
        %718 = vmatprep.mubr.bf16.mxu0 0
        %719 = vmatmul.mubr.bf16.gmra.mrb[0].mxu0 %v620
        %v720 = vpop.f32.mrb[0].mxu0
        %v721 = vadd.f32 %v637, %v720
        %v722 = vpop.f32.mrb[0].mxu0
        %v723 = vpop.f32.mrb[0].mxu0
        %v724 = vpop.f32.mrb[0].mxu0
        %725 = vdwg.mxu0
        %v726 = vxor.u32 %v721, 2147483648
        %v727 = vmul.f32 %v726, 1.442695
        %v728 = vpow.pop %v727
        %v729 = vadd.f32 %v728, 1.0
        %v730 = vrcp.pop %v729
        %v731 = vmul.f32 1.0, %v730
        %vm732 = vcmask 8192
        %v733 = vsel %vm732, %v607, -inf
        %734 = vmax.xlane.f32.xlu0 %v733
        %v735 = vpop.xlane.xlu0 %734
        %v736 = vsub.f32 %v607, %v735
        %v737 = vmul.f32 %v736, 1.442695
        %v738 = vpow.pop %v737
        %v739 = vsel %vm732, %v738, 0.0
        %740 = vadd.xlane.f32.xlu0 %v739
        %v741 = vpop.xlane.xlu0 %740
        %v742 = vrcp.pop %v741
        %v743 = vmul.f32 %v738, %v742
        %vm744 = vcmask 24592
        %v745 = vsel %vm744, %v607, -inf
        %746 = vmax.xlane.f32.xlu0 %v745
        %v747 = vpop.xlane.xlu0 %746
        %v748 = vsub.f32 %v607, %v747
        %v749 = vmul.f32 %v748, 1.442695
        %v750 = vpow.pop %v749
        %752 = vrot.lane.b32.xlu0 %v750, 126
        %v753 = vpop.permute.xlu0 %752
        %v755 = vsel %vm732, %v753, 0.0
        %756 = vadd.xlane.f32.xlu0 %v755
        %v757 = vpop.xlane.xlu0 %756
        %v758 = vrcp.pop %v757
        %v759 = vmul.f32 %v750, %v758
        %v760 = vmul.f32 %v731, 1.125
        %v761 = vmul.f32 %v759, 1.125
        %763 = vrot.lane.b32.xlu0 %v743, 3
        %v764 = vpop.permute.xlu0 %763
        %v766 = vmul.f32 %v759, %v764
        %v767 = vmul.f32 %v766, 1.125
        %768 = vrot.lane.b32.xlu0 %v743, 2
        %v769 = vpop.permute.xlu0 %768
        %v771 = vmul.f32 %v759, %v769
        %v772 = vmul.f32 %v771, 1.125
        %v773 = vld [vmem:[%s1] sm:$0xff]
        %v774 = vld [vmem:[%s1 + $0x8] sm:$0xf]
        %v775 = vld [vmem:[%s1 + $0xc] sm:$0xff]
        %v776 = vld [vmem:[%s1 + $0x14] sm:$0xf]
        %v777 = vld [vmem:[%s1 + $0x18] sm:$0xff]
        %v778 = vld [vmem:[%s1 + $0x20] sm:$0xf]
        %v779 = vld [vmem:[%s1 + $0x24] sm:$0xff]
        %v780 = vld [vmem:[%s1 + $0x2c] sm:$0xf]
        %v781 = vld [vmem:[%s2] sm:$0x7]
        %v783 = vlaneseq
        %v784 = vshrl.u32 %v783, 7
        %v785 = vsub.s32 0, %v784
        %v786 = vrot.slane %v781, %v785
        %v787 = vlaneseq
        %v788 = vshrl.u32 %v787, 7
        %v789 = vsub.s32 1, %v788
        %v790 = vrot.slane %v781, %v789
        %v791 = vlaneseq
        %v792 = vshrl.u32 %v791, 7
        %v793 = vsub.s32 2, %v792
        %v794 = vrot.slane %v781, %v793
        %v806 = vunpack.c.l.b16 %v773
        %v807 = vunpack.c.h.b16 %v773
        %v808 = vunpack.c.l.b16 %v774
        %v809 = vunpack.c.l.b16 %v775
        %v810 = vunpack.c.h.b16 %v775
        %v811 = vunpack.c.l.b16 %v776
        %v812 = vunpack.c.l.b16 %v777
        %v813 = vunpack.c.h.b16 %v777
        %v814 = vunpack.c.l.b16 %v778
        %v815 = vunpack.c.l.b16 %v779
        %v816 = vunpack.c.h.b16 %v779
        %v817 = vunpack.c.l.b16 %v780
        %v818 = vpack.c.b16 %v809, %v806
        %v819 = vpack.c.b16 %v810, %v807
        %v820 = vpack.c.b16 %v811, %v808
        %v821 = vpack.c.b16 %v815, %v812
        %v822 = vpack.c.b16 %v816, %v813
        %v823 = vpack.c.b16 %v817, %v814
        %v831 = vsel %vm520, %v519, 0
        %833 = vmatprep.subr.bf16.mxu0 %v819
        %834 = vmatpush1.bf16.msra.mxu0 %v818
        %835 = vmatprep.subr.bf16.mxu0 %v822
        %836 = vmatpush1.bf16.msra.mxu0 %v821
        %837 = vmatprep.subr.bf16.mxu0 0
        %838 = vmatpush1.bf16.msra.mxu0 0
        %839 = vmatprep.subr.bf16.mxu0 0
        %840 = vmatpush1.bf16.msra.mxu0 0
        %841 = vmatprep.subr.bf16.mxu0 0
        %842 = vmatpush1.bf16.msra.mxu0 0
        %843 = vmatprep.subr.bf16.mxu0 0
        %844 = vmatpush1.bf16.msra.mxu0 0
        %845 = vmatprep.subr.bf16.mxu0 0
        %846 = vmatpush1.bf16.msra.mxu0 0
        %847 = vmatprep.subr.bf16.mxu0 0
        %848 = vmatpush1.bf16.msra.mxu0 0
        %849 = vmatprep.subr.bf16.mxu0 0
        %850 = vmatpush1.bf16.msra.mxu0 0
        %851 = vmatprep.subr.bf16.mxu0 0
        %852 = vmatpush1.bf16.msra.mxu0 0
        %853 = vmatprep.subr.bf16.mxu0 0
        %854 = vmatpush1.bf16.msra.mxu0 0
        %855 = vmatprep.subr.bf16.mxu0 0
        %856 = vmatpush1.bf16.msra.mxu0 0
        %857 = vmatprep.subr.bf16.mxu0 0
        %858 = vmatpush1.bf16.msra.mxu0 0
        %859 = vmatprep.subr.bf16.mxu0 0
        %860 = vmatpush1.bf16.msra.mxu0 0
        %861 = vmatprep.subr.bf16.mxu0 0
        %862 = vmatpush1.bf16.msra.mxu0 0
        %863 = vmatprep.subr.bf16.mxu0 0
        %864 = vmatpush1.bf16.msra.mxu0 0
        %865 = vmatprep.mubr.bf16.mxu0 0
        %866 = vmatmul.mubr.bf16.gmra.mrb[0].mxu0 %v831
        %v867 = vpop.f32.mrb[0].mxu0
        %v868 = vadd.f32 %v786, %v867
        %v869 = vpop.f32.mrb[0].mxu0
        %v870 = vadd.f32 %v790, %v869
        %v871 = vpop.f32.mrb[0].mxu0
        %v872 = vpop.f32.mrb[0].mxu0
        %873 = vdwg.mxu0
        %874 = vmatprep.subr.bf16.mxu0 0
        %875 = vmatpush1.bf16.msra.mxu0 %v820
        %876 = vmatprep.subr.bf16.mxu0 0
        %877 = vmatpush1.bf16.msra.mxu0 %v823
        %878 = vmatprep.subr.bf16.mxu0 0
        %879 = vmatpush1.bf16.msra.mxu0 0
        %880 = vmatprep.subr.bf16.mxu0 0
        %881 = vmatpush1.bf16.msra.mxu0 0
        %882 = vmatprep.subr.bf16.mxu0 0
        %883 = vmatpush1.bf16.msra.mxu0 0
        %884 = vmatprep.subr.bf16.mxu0 0
        %885 = vmatpush1.bf16.msra.mxu0 0
        %886 = vmatprep.subr.bf16.mxu0 0
        %887 = vmatpush1.bf16.msra.mxu0 0
        %888 = vmatprep.subr.bf16.mxu0 0
        %889 = vmatpush1.bf16.msra.mxu0 0
        %890 = vmatprep.subr.bf16.mxu0 0
        %891 = vmatpush1.bf16.msra.mxu0 0
        %892 = vmatprep.subr.bf16.mxu0 0
        %893 = vmatpush1.bf16.msra.mxu0 0
        %894 = vmatprep.subr.bf16.mxu0 0
        %895 = vmatpush1.bf16.msra.mxu0 0
        %896 = vmatprep.subr.bf16.mxu0 0
        %897 = vmatpush1.bf16.msra.mxu0 0
        %898 = vmatprep.subr.bf16.mxu0 0
        %899 = vmatpush1.bf16.msra.mxu0 0
        %900 = vmatprep.subr.bf16.mxu0 0
        %901 = vmatpush1.bf16.msra.mxu0 0
        %902 = vmatprep.subr.bf16.mxu0 0
        %903 = vmatpush1.bf16.msra.mxu0 0
        %904 = vmatprep.subr.bf16.mxu0 0
        %905 = vmatpush1.bf16.msra.mxu0 0
        %906 = vmatprep.mubr.bf16.mxu0 0
        %907 = vmatmul.mubr.bf16.gmra.mrb[0].mxu0 %v831
        %v908 = vpop.f32.mrb[0].mxu0
        %v909 = vadd.f32 %v794, %v908
        %v910 = vpop.f32.mrb[0].mxu0
        %v911 = vpop.f32.mrb[0].mxu0
        %v912 = vpop.f32.mrb[0].mxu0
        %913 = vdwg.mxu0
        %v914 = vpack.c.bf16 %v868, %v868
        %v915 = vpack.c.bf16 %v870, %v870
        %v916 = vpack.c.bf16 %v909, %v909
        %v917 = vld [vmem:[%s3] sm:$0xf]
        %v918 = vld [vmem:[%s3 + $0x4] sm:$0xf]
        %v919 = vld [vmem:[%s3 + $0x8] sm:$0xf]
        %v920 = vld [vmem:[%s3 + $0xc] sm:$0xf]
        %v921 = vld [vmem:[%s3 + $0x10] sm:$0xf]
        %v922 = vld [vmem:[%s3 + $0x14] sm:$0xf]
        %v923 = vld [vmem:[%s3 + $0x18] sm:$0xf]
        %v924 = vld [vmem:[%s3 + $0x1c] sm:$0xf]
        %v925 = vld [vmem:[%s3 + $0x20] sm:$0xf]
        %v926 = vld [vmem:[%s3 + $0x24] sm:$0xf]
        %v927 = vld [vmem:[%s3 + $0x28] sm:$0xf]
        %v928 = vld [vmem:[%s3 + $0x2c] sm:$0xf]
        %930 = vrot.lane.b32.xlu0 %v914, 96
        %v931 = vpop.permute.xlu0 %930
        %vm932 = vcmask 64512
        %v934 = vsel %vm932, %v914, 0
        %v937 = vsel %vm932, %v931, 0
        %939 = vmatprep.subr.bf16.mxu0 0
        %940 = vmatpush1.bf16.xpose.msra.mxu0 %v937
        %941 = vmatprep.subr.bf16.mxu0 0
        %942 = vmatpush1.bf16.xpose.msra.mxu0 0
        %943 = vmatprep.subr.bf16.mxu0 0
        %944 = vmatpush1.bf16.xpose.msra.mxu0 0
        %945 = vmatprep.subr.bf16.mxu0 0
        %946 = vmatpush1.bf16.xpose.msra.mxu0 0
        %947 = vmatprep.subr.bf16.mxu0 0
        %948 = vmatpush1.bf16.xpose.msra.mxu0 0
        %949 = vmatprep.subr.bf16.mxu0 0
        %950 = vmatpush1.bf16.xpose.msra.mxu0 0
        %951 = vmatprep.subr.bf16.mxu0 0
        %952 = vmatpush1.bf16.xpose.msra.mxu0 0
        %953 = vmatprep.subr.bf16.mxu0 0
        %954 = vmatpush1.bf16.xpose.msra.mxu0 0
        %955 = vmatprep.subr.bf16.mxu0 0
        %956 = vmatpush1.bf16.xpose.msra.mxu0 0
        %957 = vmatprep.subr.bf16.mxu0 0
        %958 = vmatpush1.bf16.xpose.msra.mxu0 0
        %959 = vmatprep.subr.bf16.mxu0 0
        %960 = vmatpush1.bf16.xpose.msra.mxu0 0
        %961 = vmatprep.subr.bf16.mxu0 0
        %962 = vmatpush1.bf16.xpose.msra.mxu0 0
        %963 = vmatprep.subr.bf16.mxu0 0
        %964 = vmatpush1.bf16.xpose.msra.mxu0 0
        %965 = vmatprep.subr.bf16.mxu0 0
        %966 = vmatpush1.bf16.xpose.msra.mxu0 0
        %967 = vmatprep.subr.bf16.mxu0 0
        %968 = vmatpush1.bf16.xpose.msra.mxu0 0
        %969 = vmatprep.subr.bf16.mxu0 0
        %970 = vmatpush1.bf16.xpose.msra.mxu0 0
        %971 = vmatprep.mubr.bf16.mxu0 0
        %972 = vmatmul.mubr.bf16.gmra.mrb[0].mxu0 %v934
        %v973 = vpop.f32.mrb[0].mxu0
        %v974 = vadd.f32 0.0, %v973
        %v975 = vpop.f32.mrb[0].mxu0
        %v976 = vpop.f32.mrb[0].mxu0
        %v977 = vpop.f32.mrb[0].mxu0
        %978 = vdwg.mxu0
        %v979 = vsel %vm932, %v974, -inf
        %980 = vmax.xlane.f32.xlu0 %v979
        %v981 = vpop.xlane.xlu0 %980
        %v982 = vsub.f32 %v974, %v981
        %v983 = vmul.f32 %v982, 1.442695
        %v984 = vpow.pop %v983
        %v985 = vsel %vm932, %v984, 0.0
        %986 = vadd.xlane.f32.xlu0 %v985
        %v987 = vpop.xlane.xlu0 %986
        %v988 = vrcp.pop %v987
        %v989 = vmul.f32 %v984, %v988
        %v990 = vpack.c.bf16 %v989, %v989
        %991 = vrot.lane.b32.xlu0 %v914, 64
        %v992 = vpop.permute.xlu0 %991
        %v994 = vsel %vm932, %v990, 0
        %vm996 = vcmask 1043456
        %v998 = vsel %vm996, %v992, 0
        %1000 = vmatprep.subr.bf16.mxu0 0
        %1001 = vmatpush1.bf16.msra.mxu0 %v998
        %1002 = vmatprep.subr.bf16.mxu0 0
        %1003 = vmatpush1.bf16.msra.mxu0 0
        %1004 = vmatprep.subr.bf16.mxu0 0
        %1005 = vmatpush1.bf16.msra.mxu0 0
        %1006 = vmatprep.subr.bf16.mxu0 0
        %1007 = vmatpush1.bf16.msra.mxu0 0
        %1008 = vmatprep.subr.bf16.mxu0 0
        %1009 = vmatpush1.bf16.msra.mxu0 0
        %1010 = vmatprep.subr.bf16.mxu0 0
        %1011 = vmatpush1.bf16.msra.mxu0 0
        %1012 = vmatprep.subr.bf16.mxu0 0
        %1013 = vmatpush1.bf16.msra.mxu0 0
        %1014 = vmatprep.subr.bf16.mxu0 0
        %1015 = vmatpush1.bf16.msra.mxu0 0
        %1016 = vmatprep.subr.bf16.mxu0 0
        %1017 = vmatpush1.bf16.msra.mxu0 0
        %1018 = vmatprep.subr.bf16.mxu0 0
        %1019 = vmatpush1.bf16.msra.mxu0 0
        %1020 = vmatprep.subr.bf16.mxu0 0
        %1021 = vmatpush1.bf16.msra.mxu0 0
        %1022 = vmatprep.subr.bf16.mxu0 0
        %1023 = vmatpush1.bf16.msra.mxu0 0
        %1024 = vmatprep.subr.bf16.mxu0 0
        %1025 = vmatpush1.bf16.msra.mxu0 0
        %1026 = vmatprep.subr.bf16.mxu0 0
        %1027 = vmatpush1.bf16.msra.mxu0 0
        %1028 = vmatprep.subr.bf16.mxu0 0
        %1029 = vmatpush1.bf16.msra.mxu0 0
        %1030 = vmatprep.subr.bf16.mxu0 0
        %1031 = vmatpush1.bf16.msra.mxu0 0
        %1032 = vmatprep.mubr.bf16.mxu0 0
        %1033 = vmatmul.mubr.bf16.gmra.mrb[0].mxu0 %v994
        %v1034 = vpop.f32.mrb[0].mxu0
        %v1035 = vadd.f32 0.0, %v1034
        %v1036 = vpop.f32.mrb[0].mxu0
        %v1037 = vpop.f32.mrb[0].mxu0
        %v1038 = vpop.f32.mrb[0].mxu0
        %1039 = vdwg.mxu0
        %v1040 = vpack.c.bf16 %v1035, %v1035
        %1041 = vrot.lane.b32.xlu0 %v914, 120
        %v1042 = vpop.permute.xlu0 %1041
        %1043 = vrot.lane.b32.xlu0 %v914, 88
        %v1044 = vpop.permute.xlu0 %1043
        %v1046 = vsel %vm932, %v1042, 0
        %v1049 = vsel %vm932, %v1044, 0
        %1051 = vmatprep.subr.bf16.mxu0 0
        %1052 = vmatpush1.bf16.xpose.msra.mxu0 %v1049
        %1053 = vmatprep.subr.bf16.mxu0 0
        %1054 = vmatpush1.bf16.xpose.msra.mxu0 0
        %1055 = vmatprep.subr.bf16.mxu0 0
        %1056 = vmatpush1.bf16.xpose.msra.mxu0 0
        %1057 = vmatprep.subr.bf16.mxu0 0
        %1058 = vmatpush1.bf16.xpose.msra.mxu0 0
        %1059 = vmatprep.subr.bf16.mxu0 0
        %1060 = vmatpush1.bf16.xpose.msra.mxu0 0
        %1061 = vmatprep.subr.bf16.mxu0 0
        %1062 = vmatpush1.bf16.xpose.msra.mxu0 0
        %1063 = vmatprep.subr.bf16.mxu0 0
        %1064 = vmatpush1.bf16.xpose.msra.mxu0 0
        %1065 = vmatprep.subr.bf16.mxu0 0
        %1066 = vmatpush1.bf16.xpose.msra.mxu0 0
        %1067 = vmatprep.subr.bf16.mxu0 0
        %1068 = vmatpush1.bf16.xpose.msra.mxu0 0
        %1069 = vmatprep.subr.bf16.mxu0 0
        %1070 = vmatpush1.bf16.xpose.msra.mxu0 0
        %1071 = vmatprep.subr.bf16.mxu0 0
        %1072 = vmatpush1.bf16.xpose.msra.mxu0 0
        %1073 = vmatprep.subr.bf16.mxu0 0
        %1074 = vmatpush1.bf16.xpose.msra.mxu0 0
        %1075 = vmatprep.subr.bf16.mxu0 0
        %1076 = vmatpush1.bf16.xpose.msra.mxu0 0
        %1077 = vmatprep.subr.bf16.mxu0 0
        %1078 = vmatpush1.bf16.xpose.msra.mxu0 0
        %1079 = vmatprep.subr.bf16.mxu0 0
        %1080 = vmatpush1.bf16.xpose.msra.mxu0 0
        %1081 = vmatprep.subr.bf16.mxu0 0
        %1082 = vmatpush1.bf16.xpose.msra.mxu0 0
        %1083 = vmatprep.mubr.bf16.mxu0 0
        %1084 = vmatmul.mubr.bf16.gmra.mrb[0].mxu0 %v1046
        %v1085 = vpop.f32.mrb[0].mxu0
        %v1086 = vadd.f32 0.0, %v1085
        %v1087 = vpop.f32.mrb[0].mxu0
        %v1088 = vpop.f32.mrb[0].mxu0
        %v1089 = vpop.f32.mrb[0].mxu0
        %1090 = vdwg.mxu0
        %v1091 = vsel %vm932, %v1086, -inf
        %1092 = vmax.xlane.f32.xlu0 %v1091
        %v1093 = vpop.xlane.xlu0 %1092
        %v1094 = vsub.f32 %v1086, %v1093
        %v1095 = vmul.f32 %v1094, 1.442695
        %v1096 = vpow.pop %v1095
        %v1097 = vsel %vm932, %v1096, 0.0
        %1098 = vadd.xlane.f32.xlu0 %v1097
        %v1099 = vpop.xlane.xlu0 %1098
        %v1100 = vrcp.pop %v1099
        %v1101 = vmul.f32 %v1096, %v1100
        %v1102 = vpack.c.bf16 %v1101, %v1101
        %1103 = vrot.lane.b32.xlu0 %v914, 56
        %v1104 = vpop.permute.xlu0 %1103
        %v1106 = vsel %vm932, %v1102, 0
        %v1109 = vsel %vm996, %v1104, 0
        %1111 = vmatprep.subr.bf16.mxu0 0
        %1112 = vmatpush1.bf16.msra.mxu0 %v1109
        %1113 = vmatprep.subr.bf16.mxu0 0
        %1114 = vmatpush1.bf16.msra.mxu0 0
        %1115 = vmatprep.subr.bf16.mxu0 0
        %1116 = vmatpush1.bf16.msra.mxu0 0
        %1117 = vmatprep.subr.bf16.mxu0 0
        %1118 = vmatpush1.bf16.msra.mxu0 0
        %1119 = vmatprep.subr.bf16.mxu0 0
        %1120 = vmatpush1.bf16.msra.mxu0 0
        %1121 = vmatprep.subr.bf16.mxu0 0
        %1122 = vmatpush1.bf16.msra.mxu0 0
        %1123 = vmatprep.subr.bf16.mxu0 0
        %1124 = vmatpush1.bf16.msra.mxu0 0
        %1125 = vmatprep.subr.bf16.mxu0 0
        %1126 = vmatpush1.bf16.msra.mxu0 0
        %1127 = vmatprep.subr.bf16.mxu0 0
        %1128 = vmatpush1.bf16.msra.mxu0 0
        %1129 = vmatprep.subr.bf16.mxu0 0
        %1130 = vmatpush1.bf16.msra.mxu0 0
        %1131 = vmatprep.subr.bf16.mxu0 0
        %1132 = vmatpush1.bf16.msra.mxu0 0
        %1133 = vmatprep.subr.bf16.mxu0 0
        %1134 = vmatpush1.bf16.msra.mxu0 0
        %1135 = vmatprep.subr.bf16.mxu0 0
        %1136 = vmatpush1.bf16.msra.mxu0 0
        %1137 = vmatprep.subr.bf16.mxu0 0
        %1138 = vmatpush1.bf16.msra.mxu0 0
        %1139 = vmatprep.subr.bf16.mxu0 0
        %1140 = vmatpush1.bf16.msra.mxu0 0
        %1141 = vmatprep.subr.bf16.mxu0 0
        %1142 = vmatpush1.bf16.msra.mxu0 0
        %1143 = vmatprep.mubr.bf16.mxu0 0
        %1144 = vmatmul.mubr.bf16.gmra.mrb[0].mxu0 %v1106
        %v1145 = vpop.f32.mrb[0].mxu0
        %v1146 = vadd.f32 0.0, %v1145
        %v1147 = vpop.f32.mrb[0].mxu0
        %v1148 = vpop.f32.mrb[0].mxu0
        %v1149 = vpop.f32.mrb[0].mxu0
        %1150 = vdwg.mxu0
        %v1151 = vpack.c.bf16 %v1146, %v1146
        %v1153 = vsel %vm932, %v1151, 0
        %v1156 = vsel %vm996, %v918, 0
        %1158 = vmatprep.subr.bf16.mxu0 0
        %1159 = vmatpush1.bf16.msra.mxu0 %v1156
        %1160 = vmatprep.subr.bf16.mxu0 0
        %1161 = vmatpush1.bf16.msra.mxu0 0
        %1162 = vmatprep.subr.bf16.mxu0 0
        %1163 = vmatpush1.bf16.msra.mxu0 0
        %1164 = vmatprep.subr.bf16.mxu0 0
        %1165 = vmatpush1.bf16.msra.mxu0 0
        %1166 = vmatprep.subr.bf16.mxu0 0
        %1167 = vmatpush1.bf16.msra.mxu0 0
        %1168 = vmatprep.subr.bf16.mxu0 0
        %1169 = vmatpush1.bf16.msra.mxu0 0
        %1170 = vmatprep.subr.bf16.mxu0 0
        %1171 = vmatpush1.bf16.msra.mxu0 0
        %1172 = vmatprep.subr.bf16.mxu0 0
        %1173 = vmatpush1.bf16.msra.mxu0 0
        %1174 = vmatprep.subr.bf16.mxu0 0
        %1175 = vmatpush1.bf16.msra.mxu0 0
        %1176 = vmatprep.subr.bf16.mxu0 0
        %1177 = vmatpush1.bf16.msra.mxu0 0
        %1178 = vmatprep.subr.bf16.mxu0 0
        %1179 = vmatpush1.bf16.msra.mxu0 0
        %1180 = vmatprep.subr.bf16.mxu0 0
        %1181 = vmatpush1.bf16.msra.mxu0 0
        %1182 = vmatprep.subr.bf16.mxu0 0
        %1183 = vmatpush1.bf16.msra.mxu0 0
        %1184 = vmatprep.subr.bf16.mxu0 0
        %1185 = vmatpush1.bf16.msra.mxu0 0
        %1186 = vmatprep.subr.bf16.mxu0 0
        %1187 = vmatpush1.bf16.msra.mxu0 0
        %1188 = vmatprep.subr.bf16.mxu0 0
        %1189 = vmatpush1.bf16.msra.mxu0 0
        %1190 = vmatprep.mubr.bf16.mxu0 0
        %1191 = vmatmul.mubr.bf16.gmra.mrb[0].mxu0 %v1153
        %v1192 = vpop.f32.mrb[0].mxu0
        %v1193 = vadd.f32 0.0, %v1192
        %v1194 = vpop.f32.mrb[0].mxu0
        %v1195 = vpop.f32.mrb[0].mxu0
        %v1196 = vpop.f32.mrb[0].mxu0
        %1197 = vdwg.mxu0
        %v1199 = vsel %vm932, %v1040, 0
        %v1202 = vsel %vm996, %v917, 0
        %1204 = vmatprep.subr.bf16.mxu0 0
        %1205 = vmatpush1.bf16.msra.mxu0 %v1202
        %1206 = vmatprep.subr.bf16.mxu0 0
        %1207 = vmatpush1.bf16.msra.mxu0 0
        %1208 = vmatprep.subr.bf16.mxu0 0
        %1209 = vmatpush1.bf16.msra.mxu0 0
        %1210 = vmatprep.subr.bf16.mxu0 0
        %1211 = vmatpush1.bf16.msra.mxu0 0
        %1212 = vmatprep.subr.bf16.mxu0 0
        %1213 = vmatpush1.bf16.msra.mxu0 0
        %1214 = vmatprep.subr.bf16.mxu0 0
        %1215 = vmatpush1.bf16.msra.mxu0 0
        %1216 = vmatprep.subr.bf16.mxu0 0
        %1217 = vmatpush1.bf16.msra.mxu0 0
        %1218 = vmatprep.subr.bf16.mxu0 0
        %1219 = vmatpush1.bf16.msra.mxu0 0
        %1220 = vmatprep.subr.bf16.mxu0 0
        %1221 = vmatpush1.bf16.msra.mxu0 0
        %1222 = vmatprep.subr.bf16.mxu0 0
        %1223 = vmatpush1.bf16.msra.mxu0 0
        %1224 = vmatprep.subr.bf16.mxu0 0
        %1225 = vmatpush1.bf16.msra.mxu0 0
        %1226 = vmatprep.subr.bf16.mxu0 0
        %1227 = vmatpush1.bf16.msra.mxu0 0
        %1228 = vmatprep.subr.bf16.mxu0 0
        %1229 = vmatpush1.bf16.msra.mxu0 0
        %1230 = vmatprep.subr.bf16.mxu0 0
        %1231 = vmatpush1.bf16.msra.mxu0 0
        %1232 = vmatprep.subr.bf16.mxu0 0
        %1233 = vmatpush1.bf16.msra.mxu0 0
        %1234 = vmatprep.subr.bf16.mxu0 0
        %1235 = vmatpush1.bf16.msra.mxu0 0
        %1236 = vmatprep.mubr.bf16.mxu0 0
        %1237 = vmatmul.mubr.bf16.gmra.mrb[0].mxu0 %v1199
        %v1238 = vpop.f32.mrb[0].mxu0
        %v1239 = vadd.f32 %v1193, %v1238
        %v1240 = vpop.f32.mrb[0].mxu0
        %v1241 = vpop.f32.mrb[0].mxu0
        %v1242 = vpop.f32.mrb[0].mxu0
        %1243 = vdwg.mxu0
        %1244 = vrot.lane.b32.xlu0 %v914, 112
        %v1245 = vpop.permute.xlu0 %1244
        %1246 = vrot.lane.b32.xlu0 %v914, 80
        %v1247 = vpop.permute.xlu0 %1246
        %v1249 = vsel %vm932, %v1245, 0
        %v1252 = vsel %vm932, %v1247, 0
        %1254 = vmatprep.subr.bf16.mxu0 0
        %1255 = vmatpush1.bf16.xpose.msra.mxu0 %v1252
        %1256 = vmatprep.subr.bf16.mxu0 0
        %1257 = vmatpush1.bf16.xpose.msra.mxu0 0
        %1258 = vmatprep.subr.bf16.mxu0 0
        %1259 = vmatpush1.bf16.xpose.msra.mxu0 0
        %1260 = vmatprep.subr.bf16.mxu0 0
        %1261 = vmatpush1.bf16.xpose.msra.mxu0 0
        %1262 = vmatprep.subr.bf16.mxu0 0
        %1263 = vmatpush1.bf16.xpose.msra.mxu0 0
        %1264 = vmatprep.subr.bf16.mxu0 0
        %1265 = vmatpush1.bf16.xpose.msra.mxu0 0
        %1266 = vmatprep.subr.bf16.mxu0 0
        %1267 = vmatpush1.bf16.xpose.msra.mxu0 0
        %1268 = vmatprep.subr.bf16.mxu0 0
        %1269 = vmatpush1.bf16.xpose.msra.mxu0 0
        %1270 = vmatprep.subr.bf16.mxu0 0
        %1271 = vmatpush1.bf16.xpose.msra.mxu0 0
        %1272 = vmatprep.subr.bf16.mxu0 0
        %1273 = vmatpush1.bf16.xpose.msra.mxu0 0
        %1274 = vmatprep.subr.bf16.mxu0 0
        %1275 = vmatpush1.bf16.xpose.msra.mxu0 0
        %1276 = vmatprep.subr.bf16.mxu0 0
        %1277 = vmatpush1.bf16.xpose.msra.mxu0 0
        %1278 = vmatprep.subr.bf16.mxu0 0
        %1279 = vmatpush1.bf16.xpose.msra.mxu0 0
        %1280 = vmatprep.subr.bf16.mxu0 0
        %1281 = vmatpush1.bf16.xpose.msra.mxu0 0
        %1282 = vmatprep.subr.bf16.mxu0 0
        %1283 = vmatpush1.bf16.xpose.msra.mxu0 0
        %1284 = vmatprep.subr.bf16.mxu0 0
        %1285 = vmatpush1.bf16.xpose.msra.mxu0 0
        %1286 = vmatprep.mubr.bf16.mxu0 0
        %1287 = vmatmul.mubr.bf16.gmra.mrb[0].mxu0 %v1249
        %v1288 = vpop.f32.mrb[0].mxu0
        %v1289 = vadd.f32 0.0, %v1288
        %v1290 = vpop.f32.mrb[0].mxu0
        %v1291 = vpop.f32.mrb[0].mxu0
        %v1292 = vpop.f32.mrb[0].mxu0
        %1293 = vdwg.mxu0
        %v1294 = vsel %vm932, %v1289, -inf
        %1295 = vmax.xlane.f32.xlu0 %v1294
        %v1296 = vpop.xlane.xlu0 %1295
        %v1297 = vsub.f32 %v1289, %v1296
        %v1298 = vmul.f32 %v1297, 1.442695
        %v1299 = vpow.pop %v1298
        %v1300 = vsel %vm932, %v1299, 0.0
        %1301 = vadd.xlane.f32.xlu0 %v1300
        %v1302 = vpop.xlane.xlu0 %1301
        %v1303 = vrcp.pop %v1302
        %v1304 = vmul.f32 %v1299, %v1303
        %v1305 = vpack.c.bf16 %v1304, %v1304
        %1306 = vrot.lane.b32.xlu0 %v914, 48
        %v1307 = vpop.permute.xlu0 %1306
        %v1309 = vsel %vm932, %v1305, 0
        %v1312 = vsel %vm996, %v1307, 0
        %1314 = vmatprep.subr.bf16.mxu0 0
        %1315 = vmatpush1.bf16.msra.mxu0 %v1312
        %1316 = vmatprep.subr.bf16.mxu0 0
        %1317 = vmatpush1.bf16.msra.mxu0 0
        %1318 = vmatprep.subr.bf16.mxu0 0
        %1319 = vmatpush1.bf16.msra.mxu0 0
        %1320 = vmatprep.subr.bf16.mxu0 0
        %1321 = vmatpush1.bf16.msra.mxu0 0
        %1322 = vmatprep.subr.bf16.mxu0 0
        %1323 = vmatpush1.bf16.msra.mxu0 0
        %1324 = vmatprep.subr.bf16.mxu0 0
        %1325 = vmatpush1.bf16.msra.mxu0 0
        %1326 = vmatprep.subr.bf16.mxu0 0
        %1327 = vmatpush1.bf16.msra.mxu0 0
        %1328 = vmatprep.subr.bf16.mxu0 0
        %1329 = vmatpush1.bf16.msra.mxu0 0
        %1330 = vmatprep.subr.bf16.mxu0 0
        %1331 = vmatpush1.bf16.msra.mxu0 0
        %1332 = vmatprep.subr.bf16.mxu0 0
        %1333 = vmatpush1.bf16.msra.mxu0 0
        %1334 = vmatprep.subr.bf16.mxu0 0
        %1335 = vmatpush1.bf16.msra.mxu0 0
        %1336 = vmatprep.subr.bf16.mxu0 0
        %1337 = vmatpush1.bf16.msra.mxu0 0
        %1338 = vmatprep.subr.bf16.mxu0 0
        %1339 = vmatpush1.bf16.msra.mxu0 0
        %1340 = vmatprep.subr.bf16.mxu0 0
        %1341 = vmatpush1.bf16.msra.mxu0 0
        %1342 = vmatprep.subr.bf16.mxu0 0
        %1343 = vmatpush1.bf16.msra.mxu0 0
        %1344 = vmatprep.subr.bf16.mxu0 0
        %1345 = vmatpush1.bf16.msra.mxu0 0
        %1346 = vmatprep.mubr.bf16.mxu0 0
        %1347 = vmatmul.mubr.bf16.gmra.mrb[0].mxu0 %v1309
        %v1348 = vpop.f32.mrb[0].mxu0
        %v1349 = vadd.f32 0.0, %v1348
        %v1350 = vpop.f32.mrb[0].mxu0
        %v1351 = vpop.f32.mrb[0].mxu0
        %v1352 = vpop.f32.mrb[0].mxu0
        %1353 = vdwg.mxu0
        %v1354 = vpack.c.bf16 %v1349, %v1349
        %v1356 = vsel %vm932, %v1354, 0
        %v1359 = vsel %vm996, %v919, 0
        %1361 = vmatprep.subr.bf16.mxu0 0
        %1362 = vmatpush1.bf16.msra.mxu0 %v1359
        %1363 = vmatprep.subr.bf16.mxu0 0
        %1364 = vmatpush1.bf16.msra.mxu0 0
        %1365 = vmatprep.subr.bf16.mxu0 0
        %1366 = vmatpush1.bf16.msra.mxu0 0
        %1367 = vmatprep.subr.bf16.mxu0 0
        %1368 = vmatpush1.bf16.msra.mxu0 0
        %1369 = vmatprep.subr.bf16.mxu0 0
        %1370 = vmatpush1.bf16.msra.mxu0 0
        %1371 = vmatprep.subr.bf16.mxu0 0
        %1372 = vmatpush1.bf16.msra.mxu0 0
        %1373 = vmatprep.subr.bf16.mxu0 0
        %1374 = vmatpush1.bf16.msra.mxu0 0
        %1375 = vmatprep.subr.bf16.mxu0 0
        %1376 = vmatpush1.bf16.msra.mxu0 0
        %1377 = vmatprep.subr.bf16.mxu0 0
        %1378 = vmatpush1.bf16.msra.mxu0 0
        %1379 = vmatprep.subr.bf16.mxu0 0
        %1380 = vmatpush1.bf16.msra.mxu0 0
        %1381 = vmatprep.subr.bf16.mxu0 0
        %1382 = vmatpush1.bf16.msra.mxu0 0
        %1383 = vmatprep.subr.bf16.mxu0 0
        %1384 = vmatpush1.bf16.msra.mxu0 0
        %1385 = vmatprep.subr.bf16.mxu0 0
        %1386 = vmatpush1.bf16.msra.mxu0 0
        %1387 = vmatprep.subr.bf16.mxu0 0
        %1388 = vmatpush1.bf16.msra.mxu0 0
        %1389 = vmatprep.subr.bf16.mxu0 0
        %1390 = vmatpush1.bf16.msra.mxu0 0
        %1391 = vmatprep.subr.bf16.mxu0 0
        %1392 = vmatpush1.bf16.msra.mxu0 0
        %1393 = vmatprep.mubr.bf16.mxu0 0
        %1394 = vmatmul.mubr.bf16.gmra.mrb[0].mxu0 %v1356
        %v1395 = vpop.f32.mrb[0].mxu0
        %v1396 = vadd.f32 0.0, %v1395
        %v1397 = vpop.f32.mrb[0].mxu0
        %v1398 = vpop.f32.mrb[0].mxu0
        %v1399 = vpop.f32.mrb[0].mxu0
        %1400 = vdwg.mxu0
        %v1401 = vadd.f32 %v1239, %v1396
        %1402 = vrot.lane.b32.xlu0 %v914, 104
        %v1403 = vpop.permute.xlu0 %1402
        %1404 = vrot.lane.b32.xlu0 %v914, 72
        %v1405 = vpop.permute.xlu0 %1404
        %v1407 = vsel %vm932, %v1403, 0
        %v1410 = vsel %vm932, %v1405, 0
        %1412 = vmatprep.subr.bf16.mxu0 0
        %1413 = vmatpush1.bf16.xpose.msra.mxu0 %v1410
        %1414 = vmatprep.subr.bf16.mxu0 0
        %1415 = vmatpush1.bf16.xpose.msra.mxu0 0
        %1416 = vmatprep.subr.bf16.mxu0 0
        %1417 = vmatpush1.bf16.xpose.msra.mxu0 0
        %1418 = vmatprep.subr.bf16.mxu0 0
        %1419 = vmatpush1.bf16.xpose.msra.mxu0 0
        %1420 = vmatprep.subr.bf16.mxu0 0
        %1421 = vmatpush1.bf16.xpose.msra.mxu0 0
        %1422 = vmatprep.subr.bf16.mxu0 0
        %1423 = vmatpush1.bf16.xpose.msra.mxu0 0
        %1424 = vmatprep.subr.bf16.mxu0 0
        %1425 = vmatpush1.bf16.xpose.msra.mxu0 0
        %1426 = vmatprep.subr.bf16.mxu0 0
        %1427 = vmatpush1.bf16.xpose.msra.mxu0 0
        %1428 = vmatprep.subr.bf16.mxu0 0
        %1429 = vmatpush1.bf16.xpose.msra.mxu0 0
        %1430 = vmatprep.subr.bf16.mxu0 0
        %1431 = vmatpush1.bf16.xpose.msra.mxu0 0
        %1432 = vmatprep.subr.bf16.mxu0 0
        %1433 = vmatpush1.bf16.xpose.msra.mxu0 0
        %1434 = vmatprep.subr.bf16.mxu0 0
        %1435 = vmatpush1.bf16.xpose.msra.mxu0 0
        %1436 = vmatprep.subr.bf16.mxu0 0
        %1437 = vmatpush1.bf16.xpose.msra.mxu0 0
        %1438 = vmatprep.subr.bf16.mxu0 0
        %1439 = vmatpush1.bf16.xpose.msra.mxu0 0
        %1440 = vmatprep.subr.bf16.mxu0 0
        %1441 = vmatpush1.bf16.xpose.msra.mxu0 0
        %1442 = vmatprep.subr.bf16.mxu0 0
        %1443 = vmatpush1.bf16.xpose.msra.mxu0 0
        %1444 = vmatprep.mubr.bf16.mxu0 0
        %1445 = vmatmul.mubr.bf16.gmra.mrb[0].mxu0 %v1407
        %v1446 = vpop.f32.mrb[0].mxu0
        %v1447 = vadd.f32 0.0, %v1446
        %v1448 = vpop.f32.mrb[0].mxu0
        %v1449 = vpop.f32.mrb[0].mxu0
        %v1450 = vpop.f32.mrb[0].mxu0
        %1451 = vdwg.mxu0
        %v1452 = vsel %vm932, %v1447, -inf
        %1453 = vmax.xlane.f32.xlu0 %v1452
        %v1454 = vpop.xlane.xlu0 %1453
        %v1455 = vsub.f32 %v1447, %v1454
        %v1456 = vmul.f32 %v1455, 1.442695
        %v1457 = vpow.pop %v1456
        %v1458 = vsel %vm932, %v1457, 0.0
        %1459 = vadd.xlane.f32.xlu0 %v1458
        %v1460 = vpop.xlane.xlu0 %1459
        %v1461 = vrcp.pop %v1460
        %v1462 = vmul.f32 %v1457, %v1461
        %v1463 = vpack.c.bf16 %v1462, %v1462
        %1464 = vrot.lane.b32.xlu0 %v914, 40
        %v1465 = vpop.permute.xlu0 %1464
        %v1467 = vsel %vm932, %v1463, 0
        %v1470 = vsel %vm996, %v1465, 0
        %1472 = vmatprep.subr.bf16.mxu0 0
        %1473 = vmatpush1.bf16.msra.mxu0 %v1470
        %1474 = vmatprep.subr.bf16.mxu0 0
        %1475 = vmatpush1.bf16.msra.mxu0 0
        %1476 = vmatprep.subr.bf16.mxu0 0
        %1477 = vmatpush1.bf16.msra.mxu0 0
        %1478 = vmatprep.subr.bf16.mxu0 0
        %1479 = vmatpush1.bf16.msra.mxu0 0
        %1480 = vmatprep.subr.bf16.mxu0 0
        %1481 = vmatpush1.bf16.msra.mxu0 0
        %1482 = vmatprep.subr.bf16.mxu0 0
        %1483 = vmatpush1.bf16.msra.mxu0 0
        %1484 = vmatprep.subr.bf16.mxu0 0
        %1485 = vmatpush1.bf16.msra.mxu0 0
        %1486 = vmatprep.subr.bf16.mxu0 0
        %1487 = vmatpush1.bf16.msra.mxu0 0
        %1488 = vmatprep.subr.bf16.mxu0 0
        %1489 = vmatpush1.bf16.msra.mxu0 0
        %1490 = vmatprep.subr.bf16.mxu0 0
        %1491 = vmatpush1.bf16.msra.mxu0 0
        %1492 = vmatprep.subr.bf16.mxu0 0
        %1493 = vmatpush1.bf16.msra.mxu0 0
        %1494 = vmatprep.subr.bf16.mxu0 0
        %1495 = vmatpush1.bf16.msra.mxu0 0
        %1496 = vmatprep.subr.bf16.mxu0 0
        %1497 = vmatpush1.bf16.msra.mxu0 0
        %1498 = vmatprep.subr.bf16.mxu0 0
        %1499 = vmatpush1.bf16.msra.mxu0 0
        %1500 = vmatprep.subr.bf16.mxu0 0
        %1501 = vmatpush1.bf16.msra.mxu0 0
        %1502 = vmatprep.subr.bf16.mxu0 0
        %1503 = vmatpush1.bf16.msra.mxu0 0
        %1504 = vmatprep.mubr.bf16.mxu0 0
        %1505 = vmatmul.mubr.bf16.gmra.mrb[0].mxu0 %v1467
        %v1506 = vpop.f32.mrb[0].mxu0
        %v1507 = vadd.f32 0.0, %v1506
        %v1508 = vpop.f32.mrb[0].mxu0
        %v1509 = vpop.f32.mrb[0].mxu0
        %v1510 = vpop.f32.mrb[0].mxu0
        %1511 = vdwg.mxu0
        %v1512 = vpack.c.bf16 %v1507, %v1507
        %v1514 = vsel %vm932, %v1512, 0
        %v1517 = vsel %vm996, %v920, 0
        %1519 = vmatprep.subr.bf16.mxu0 0
        %1520 = vmatpush1.bf16.msra.mxu0 %v1517
        %1521 = vmatprep.subr.bf16.mxu0 0
        %1522 = vmatpush1.bf16.msra.mxu0 0
        %1523 = vmatprep.subr.bf16.mxu0 0
        %1524 = vmatpush1.bf16.msra.mxu0 0
        %1525 = vmatprep.subr.bf16.mxu0 0
        %1526 = vmatpush1.bf16.msra.mxu0 0
        %1527 = vmatprep.subr.bf16.mxu0 0
        %1528 = vmatpush1.bf16.msra.mxu0 0
        %1529 = vmatprep.subr.bf16.mxu0 0
        %1530 = vmatpush1.bf16.msra.mxu0 0
        %1531 = vmatprep.subr.bf16.mxu0 0
        %1532 = vmatpush1.bf16.msra.mxu0 0
        %1533 = vmatprep.subr.bf16.mxu0 0
        %1534 = vmatpush1.bf16.msra.mxu0 0
        %1535 = vmatprep.subr.bf16.mxu0 0
        %1536 = vmatpush1.bf16.msra.mxu0 0
        %1537 = vmatprep.subr.bf16.mxu0 0
        %1538 = vmatpush1.bf16.msra.mxu0 0
        %1539 = vmatprep.subr.bf16.mxu0 0
        %1540 = vmatpush1.bf16.msra.mxu0 0
        %1541 = vmatprep.subr.bf16.mxu0 0
        %1542 = vmatpush1.bf16.msra.mxu0 0
        %1543 = vmatprep.subr.bf16.mxu0 0
        %1544 = vmatpush1.bf16.msra.mxu0 0
        %1545 = vmatprep.subr.bf16.mxu0 0
        %1546 = vmatpush1.bf16.msra.mxu0 0
        %1547 = vmatprep.subr.bf16.mxu0 0
        %1548 = vmatpush1.bf16.msra.mxu0 0
        %1549 = vmatprep.subr.bf16.mxu0 0
        %1550 = vmatpush1.bf16.msra.mxu0 0
        %1551 = vmatprep.mubr.bf16.mxu0 0
        %1552 = vmatmul.mubr.bf16.gmra.mrb[0].mxu0 %v1514
        %v1553 = vpop.f32.mrb[0].mxu0
        %v1554 = vadd.f32 0.0, %v1553
        %v1555 = vpop.f32.mrb[0].mxu0
        %v1556 = vpop.f32.mrb[0].mxu0
        %v1557 = vpop.f32.mrb[0].mxu0
        %1558 = vdwg.mxu0
        %v1559 = vadd.f32 %v1401, %v1554
        %1560 = vrot.lane.b32.xlu0 %v914, 32
        %v1561 = vpop.permute.xlu0 %1560
        %v1563 = vsel %vm932, %v1561, 0
        %v1566 = vsel %vm932, %v915, 0
        %1568 = vmatprep.subr.bf16.mxu0 0
        %1569 = vmatpush1.bf16.xpose.msra.mxu0 %v1566
        %1570 = vmatprep.subr.bf16.mxu0 0
        %1571 = vmatpush1.bf16.xpose.msra.mxu0 0
        %1572 = vmatprep.subr.bf16.mxu0 0
        %1573 = vmatpush1.bf16.xpose.msra.mxu0 0
        %1574 = vmatprep.subr.bf16.mxu0 0
        %1575 = vmatpush1.bf16.xpose.msra.mxu0 0
        %1576 = vmatprep.subr.bf16.mxu0 0
        %1577 = vmatpush1.bf16.xpose.msra.mxu0 0
        %1578 = vmatprep.subr.bf16.mxu0 0
        %1579 = vmatpush1.bf16.xpose.msra.mxu0 0
        %1580 = vmatprep.subr.bf16.mxu0 0
        %1581 = vmatpush1.bf16.xpose.msra.mxu0 0
        %1582 = vmatprep.subr.bf16.mxu0 0
        %1583 = vmatpush1.bf16.xpose.msra.mxu0 0
        %1584 = vmatprep.subr.bf16.mxu0 0
        %1585 = vmatpush1.bf16.xpose.msra.mxu0 0
        %1586 = vmatprep.subr.bf16.mxu0 0
        %1587 = vmatpush1.bf16.xpose.msra.mxu0 0
        %1588 = vmatprep.subr.bf16.mxu0 0
        %1589 = vmatpush1.bf16.xpose.msra.mxu0 0
        %1590 = vmatprep.subr.bf16.mxu0 0
        %1591 = vmatpush1.bf16.xpose.msra.mxu0 0
        %1592 = vmatprep.subr.bf16.mxu0 0
        %1593 = vmatpush1.bf16.xpose.msra.mxu0 0
        %1594 = vmatprep.subr.bf16.mxu0 0
        %1595 = vmatpush1.bf16.xpose.msra.mxu0 0
        %1596 = vmatprep.subr.bf16.mxu0 0
        %1597 = vmatpush1.bf16.xpose.msra.mxu0 0
        %1598 = vmatprep.subr.bf16.mxu0 0
        %1599 = vmatpush1.bf16.xpose.msra.mxu0 0
        %1600 = vmatprep.mubr.bf16.mxu0 0
        %1601 = vmatmul.mubr.bf16.gmra.mrb[0].mxu0 %v1563
        %v1602 = vpop.f32.mrb[0].mxu0
        %v1603 = vadd.f32 0.0, %v1602
        %v1604 = vpop.f32.mrb[0].mxu0
        %v1605 = vpop.f32.mrb[0].mxu0
        %v1606 = vpop.f32.mrb[0].mxu0
        %1607 = vdwg.mxu0
        %v1608 = vsel %vm932, %v1603, -inf
        %1609 = vmax.xlane.f32.xlu0 %v1608
        %v1610 = vpop.xlane.xlu0 %1609
        %v1611 = vsub.f32 %v1603, %v1610
        %v1612 = vmul.f32 %v1611, 1.442695
        %v1613 = vpow.pop %v1612
        %v1614 = vsel %vm932, %v1613, 0.0
        %1615 = vadd.xlane.f32.xlu0 %v1614
        %v1616 = vpop.xlane.xlu0 %1615
        %v1617 = vrcp.pop %v1616
        %v1618 = vmul.f32 %v1613, %v1617
        %v1619 = vpack.c.bf16 %v1618, %v1618
        %1621 = vrot.lane.b32.xlu0 %v915, 96
        %v1622 = vpop.permute.xlu0 %1621
        %v1624 = vsel %vm932, %v1619, 0
        %v1627 = vsel %vm996, %v1622, 0
        %1629 = vmatprep.subr.bf16.mxu0 0
        %1630 = vmatpush1.bf16.msra.mxu0 %v1627
        %1631 = vmatprep.subr.bf16.mxu0 0
        %1632 = vmatpush1.bf16.msra.mxu0 0
        %1633 = vmatprep.subr.bf16.mxu0 0
        %1634 = vmatpush1.bf16.msra.mxu0 0
        %1635 = vmatprep.subr.bf16.mxu0 0
        %1636 = vmatpush1.bf16.msra.mxu0 0
        %1637 = vmatprep.subr.bf16.mxu0 0
        %1638 = vmatpush1.bf16.msra.mxu0 0
        %1639 = vmatprep.subr.bf16.mxu0 0
        %1640 = vmatpush1.bf16.msra.mxu0 0
        %1641 = vmatprep.subr.bf16.mxu0 0
        %1642 = vmatpush1.bf16.msra.mxu0 0
        %1643 = vmatprep.subr.bf16.mxu0 0
        %1644 = vmatpush1.bf16.msra.mxu0 0
        %1645 = vmatprep.subr.bf16.mxu0 0
        %1646 = vmatpush1.bf16.msra.mxu0 0
        %1647 = vmatprep.subr.bf16.mxu0 0
        %1648 = vmatpush1.bf16.msra.mxu0 0
        %1649 = vmatprep.subr.bf16.mxu0 0
        %1650 = vmatpush1.bf16.msra.mxu0 0
        %1651 = vmatprep.subr.bf16.mxu0 0
        %1652 = vmatpush1.bf16.msra.mxu0 0
        %1653 = vmatprep.subr.bf16.mxu0 0
        %1654 = vmatpush1.bf16.msra.mxu0 0
        %1655 = vmatprep.subr.bf16.mxu0 0
        %1656 = vmatpush1.bf16.msra.mxu0 0
        %1657 = vmatprep.subr.bf16.mxu0 0
        %1658 = vmatpush1.bf16.msra.mxu0 0
        %1659 = vmatprep.subr.bf16.mxu0 0
        %1660 = vmatpush1.bf16.msra.mxu0 0
        %1661 = vmatprep.mubr.bf16.mxu0 0
        %1662 = vmatmul.mubr.bf16.gmra.mrb[0].mxu0 %v1624
        %v1663 = vpop.f32.mrb[0].mxu0
        %v1664 = vadd.f32 0.0, %v1663
        %v1665 = vpop.f32.mrb[0].mxu0
        %v1666 = vpop.f32.mrb[0].mxu0
        %v1667 = vpop.f32.mrb[0].mxu0
        %1668 = vdwg.mxu0
        %v1669 = vpack.c.bf16 %v1664, %v1664
        %1670 = vrot.lane.b32.xlu0 %v914, 24
        %v1671 = vpop.permute.xlu0 %1670
        %1672 = vrot.lane.b32.xlu0 %v915, 120
        %v1673 = vpop.permute.xlu0 %1672
        %v1675 = vsel %vm932, %v1671, 0
        %v1678 = vsel %vm932, %v1673, 0
        %1680 = vmatprep.subr.bf16.mxu0 0
        %1681 = vmatpush1.bf16.xpose.msra.mxu0 %v1678
        %1682 = vmatprep.subr.bf16.mxu0 0
        %1683 = vmatpush1.bf16.xpose.msra.mxu0 0
        %1684 = vmatprep.subr.bf16.mxu0 0
        %1685 = vmatpush1.bf16.xpose.msra.mxu0 0
        %1686 = vmatprep.subr.bf16.mxu0 0
        %1687 = vmatpush1.bf16.xpose.msra.mxu0 0
        %1688 = vmatprep.subr.bf16.mxu0 0
        %1689 = vmatpush1.bf16.xpose.msra.mxu0 0
        %1690 = vmatprep.subr.bf16.mxu0 0
        %1691 = vmatpush1.bf16.xpose.msra.mxu0 0
        %1692 = vmatprep.subr.bf16.mxu0 0
        %1693 = vmatpush1.bf16.xpose.msra.mxu0 0
        %1694 = vmatprep.subr.bf16.mxu0 0
        %1695 = vmatpush1.bf16.xpose.msra.mxu0 0
        %1696 = vmatprep.subr.bf16.mxu0 0
        %1697 = vmatpush1.bf16.xpose.msra.mxu0 0
        %1698 = vmatprep.subr.bf16.mxu0 0
        %1699 = vmatpush1.bf16.xpose.msra.mxu0 0
        %1700 = vmatprep.subr.bf16.mxu0 0
        %1701 = vmatpush1.bf16.xpose.msra.mxu0 0
        %1702 = vmatprep.subr.bf16.mxu0 0
        %1703 = vmatpush1.bf16.xpose.msra.mxu0 0
        %1704 = vmatprep.subr.bf16.mxu0 0
        %1705 = vmatpush1.bf16.xpose.msra.mxu0 0
        %1706 = vmatprep.subr.bf16.mxu0 0
        %1707 = vmatpush1.bf16.xpose.msra.mxu0 0
        %1708 = vmatprep.subr.bf16.mxu0 0
        %1709 = vmatpush1.bf16.xpose.msra.mxu0 0
        %1710 = vmatprep.subr.bf16.mxu0 0
        %1711 = vmatpush1.bf16.xpose.msra.mxu0 0
        %1712 = vmatprep.mubr.bf16.mxu0 0
        %1713 = vmatmul.mubr.bf16.gmra.mrb[0].mxu0 %v1675
        %v1714 = vpop.f32.mrb[0].mxu0
        %v1715 = vadd.f32 0.0, %v1714
        %v1716 = vpop.f32.mrb[0].mxu0
        %v1717 = vpop.f32.mrb[0].mxu0
        %v1718 = vpop.f32.mrb[0].mxu0
        %1719 = vdwg.mxu0
        %v1720 = vsel %vm932, %v1715, -inf
        %1721 = vmax.xlane.f32.xlu0 %v1720
        %v1722 = vpop.xlane.xlu0 %1721
        %v1723 = vsub.f32 %v1715, %v1722
        %v1724 = vmul.f32 %v1723, 1.442695
        %v1725 = vpow.pop %v1724
        %v1726 = vsel %vm932, %v1725, 0.0
        %1727 = vadd.xlane.f32.xlu0 %v1726
        %v1728 = vpop.xlane.xlu0 %1727
        %v1729 = vrcp.pop %v1728
        %v1730 = vmul.f32 %v1725, %v1729
        %v1731 = vpack.c.bf16 %v1730, %v1730
        %1732 = vrot.lane.b32.xlu0 %v915, 88
        %v1733 = vpop.permute.xlu0 %1732
        %v1735 = vsel %vm932, %v1731, 0
        %v1738 = vsel %vm996, %v1733, 0
        %1740 = vmatprep.subr.bf16.mxu0 0
        %1741 = vmatpush1.bf16.msra.mxu0 %v1738
        %1742 = vmatprep.subr.bf16.mxu0 0
        %1743 = vmatpush1.bf16.msra.mxu0 0
        %1744 = vmatprep.subr.bf16.mxu0 0
        %1745 = vmatpush1.bf16.msra.mxu0 0
        %1746 = vmatprep.subr.bf16.mxu0 0
        %1747 = vmatpush1.bf16.msra.mxu0 0
        %1748 = vmatprep.subr.bf16.mxu0 0
        %1749 = vmatpush1.bf16.msra.mxu0 0
        %1750 = vmatprep.subr.bf16.mxu0 0
        %1751 = vmatpush1.bf16.msra.mxu0 0
        %1752 = vmatprep.subr.bf16.mxu0 0
        %1753 = vmatpush1.bf16.msra.mxu0 0
        %1754 = vmatprep.subr.bf16.mxu0 0
        %1755 = vmatpush1.bf16.msra.mxu0 0
        %1756 = vmatprep.subr.bf16.mxu0 0
        %1757 = vmatpush1.bf16.msra.mxu0 0
        %1758 = vmatprep.subr.bf16.mxu0 0
        %1759 = vmatpush1.bf16.msra.mxu0 0
        %1760 = vmatprep.subr.bf16.mxu0 0
        %1761 = vmatpush1.bf16.msra.mxu0 0
        %1762 = vmatprep.subr.bf16.mxu0 0
        %1763 = vmatpush1.bf16.msra.mxu0 0
        %1764 = vmatprep.subr.bf16.mxu0 0
        %1765 = vmatpush1.bf16.msra.mxu0 0
        %1766 = vmatprep.subr.bf16.mxu0 0
        %1767 = vmatpush1.bf16.msra.mxu0 0
        %1768 = vmatprep.subr.bf16.mxu0 0
        %1769 = vmatpush1.bf16.msra.mxu0 0
        %1770 = vmatprep.subr.bf16.mxu0 0
        %1771 = vmatpush1.bf16.msra.mxu0 0
        %1772 = vmatprep.mubr.bf16.mxu0 0
        %1773 = vmatmul.mubr.bf16.gmra.mrb[0].mxu0 %v1735
        %v1774 = vpop.f32.mrb[0].mxu0
        %v1775 = vadd.f32 0.0, %v1774
        %v1776 = vpop.f32.mrb[0].mxu0
        %v1777 = vpop.f32.mrb[0].mxu0
        %v1778 = vpop.f32.mrb[0].mxu0
        %1779 = vdwg.mxu0
        %v1780 = vpack.c.bf16 %v1775, %v1775
        %v1782 = vsel %vm932, %v1780, 0
        %v1785 = vsel %vm996, %v922, 0
        %1787 = vmatprep.subr.bf16.mxu0 0
        %1788 = vmatpush1.bf16.msra.mxu0 %v1785
        %1789 = vmatprep.subr.bf16.mxu0 0
        %1790 = vmatpush1.bf16.msra.mxu0 0
        %1791 = vmatprep.subr.bf16.mxu0 0
        %1792 = vmatpush1.bf16.msra.mxu0 0
        %1793 = vmatprep.subr.bf16.mxu0 0
        %1794 = vmatpush1.bf16.msra.mxu0 0
        %1795 = vmatprep.subr.bf16.mxu0 0
        %1796 = vmatpush1.bf16.msra.mxu0 0
        %1797 = vmatprep.subr.bf16.mxu0 0
        %1798 = vmatpush1.bf16.msra.mxu0 0
        %1799 = vmatprep.subr.bf16.mxu0 0
        %1800 = vmatpush1.bf16.msra.mxu0 0
        %1801 = vmatprep.subr.bf16.mxu0 0
        %1802 = vmatpush1.bf16.msra.mxu0 0
        %1803 = vmatprep.subr.bf16.mxu0 0
        %1804 = vmatpush1.bf16.msra.mxu0 0
        %1805 = vmatprep.subr.bf16.mxu0 0
        %1806 = vmatpush1.bf16.msra.mxu0 0
        %1807 = vmatprep.subr.bf16.mxu0 0
        %1808 = vmatpush1.bf16.msra.mxu0 0
        %1809 = vmatprep.subr.bf16.mxu0 0
        %1810 = vmatpush1.bf16.msra.mxu0 0
        %1811 = vmatprep.subr.bf16.mxu0 0
        %1812 = vmatpush1.bf16.msra.mxu0 0
        %1813 = vmatprep.subr.bf16.mxu0 0
        %1814 = vmatpush1.bf16.msra.mxu0 0
        %1815 = vmatprep.subr.bf16.mxu0 0
        %1816 = vmatpush1.bf16.msra.mxu0 0
        %1817 = vmatprep.subr.bf16.mxu0 0
        %1818 = vmatpush1.bf16.msra.mxu0 0
        %1819 = vmatprep.mubr.bf16.mxu0 0
        %1820 = vmatmul.mubr.bf16.gmra.mrb[0].mxu0 %v1782
        %v1821 = vpop.f32.mrb[0].mxu0
        %v1822 = vadd.f32 0.0, %v1821
        %v1823 = vpop.f32.mrb[0].mxu0
        %v1824 = vpop.f32.mrb[0].mxu0
        %v1825 = vpop.f32.mrb[0].mxu0
        %1826 = vdwg.mxu0
        %v1828 = vsel %vm932, %v1669, 0
        %v1831 = vsel %vm996, %v921, 0
        %1833 = vmatprep.subr.bf16.mxu0 0
        %1834 = vmatpush1.bf16.msra.mxu0 %v1831
        %1835 = vmatprep.subr.bf16.mxu0 0
        %1836 = vmatpush1.bf16.msra.mxu0 0
        %1837 = vmatprep.subr.bf16.mxu0 0
        %1838 = vmatpush1.bf16.msra.mxu0 0
        %1839 = vmatprep.subr.bf16.mxu0 0
        %1840 = vmatpush1.bf16.msra.mxu0 0
        %1841 = vmatprep.subr.bf16.mxu0 0
        %1842 = vmatpush1.bf16.msra.mxu0 0
        %1843 = vmatprep.subr.bf16.mxu0 0
        %1844 = vmatpush1.bf16.msra.mxu0 0
        %1845 = vmatprep.subr.bf16.mxu0 0
        %1846 = vmatpush1.bf16.msra.mxu0 0
        %1847 = vmatprep.subr.bf16.mxu0 0
        %1848 = vmatpush1.bf16.msra.mxu0 0
        %1849 = vmatprep.subr.bf16.mxu0 0
        %1850 = vmatpush1.bf16.msra.mxu0 0
        %1851 = vmatprep.subr.bf16.mxu0 0
        %1852 = vmatpush1.bf16.msra.mxu0 0
        %1853 = vmatprep.subr.bf16.mxu0 0
        %1854 = vmatpush1.bf16.msra.mxu0 0
        %1855 = vmatprep.subr.bf16.mxu0 0
        %1856 = vmatpush1.bf16.msra.mxu0 0
        %1857 = vmatprep.subr.bf16.mxu0 0
        %1858 = vmatpush1.bf16.msra.mxu0 0
        %1859 = vmatprep.subr.bf16.mxu0 0
        %1860 = vmatpush1.bf16.msra.mxu0 0
        %1861 = vmatprep.subr.bf16.mxu0 0
        %1862 = vmatpush1.bf16.msra.mxu0 0
        %1863 = vmatprep.subr.bf16.mxu0 0
        %1864 = vmatpush1.bf16.msra.mxu0 0
        %1865 = vmatprep.mubr.bf16.mxu0 0
        %1866 = vmatmul.mubr.bf16.gmra.mrb[0].mxu0 %v1828
        %v1867 = vpop.f32.mrb[0].mxu0
        %v1868 = vadd.f32 %v1822, %v1867
        %v1869 = vpop.f32.mrb[0].mxu0
        %v1870 = vpop.f32.mrb[0].mxu0
        %v1871 = vpop.f32.mrb[0].mxu0
        %1872 = vdwg.mxu0
        %1873 = vrot.lane.b32.xlu0 %v914, 16
        %v1874 = vpop.permute.xlu0 %1873
        %1875 = vrot.lane.b32.xlu0 %v915, 112
        %v1876 = vpop.permute.xlu0 %1875
        %v1878 = vsel %vm932, %v1874, 0
        %v1881 = vsel %vm932, %v1876, 0
        %1883 = vmatprep.subr.bf16.mxu0 0
        %1884 = vmatpush1.bf16.xpose.msra.mxu0 %v1881
        %1885 = vmatprep.subr.bf16.mxu0 0
        %1886 = vmatpush1.bf16.xpose.msra.mxu0 0
        %1887 = vmatprep.subr.bf16.mxu0 0
        %1888 = vmatpush1.bf16.xpose.msra.mxu0 0
        %1889 = vmatprep.subr.bf16.mxu0 0
        %1890 = vmatpush1.bf16.xpose.msra.mxu0 0
        %1891 = vmatprep.subr.bf16.mxu0 0
        %1892 = vmatpush1.bf16.xpose.msra.mxu0 0
        %1893 = vmatprep.subr.bf16.mxu0 0
        %1894 = vmatpush1.bf16.xpose.msra.mxu0 0
        %1895 = vmatprep.subr.bf16.mxu0 0
        %1896 = vmatpush1.bf16.xpose.msra.mxu0 0
        %1897 = vmatprep.subr.bf16.mxu0 0
        %1898 = vmatpush1.bf16.xpose.msra.mxu0 0
        %1899 = vmatprep.subr.bf16.mxu0 0
        %1900 = vmatpush1.bf16.xpose.msra.mxu0 0
        %1901 = vmatprep.subr.bf16.mxu0 0
        %1902 = vmatpush1.bf16.xpose.msra.mxu0 0
        %1903 = vmatprep.subr.bf16.mxu0 0
        %1904 = vmatpush1.bf16.xpose.msra.mxu0 0
        %1905 = vmatprep.subr.bf16.mxu0 0
        %1906 = vmatpush1.bf16.xpose.msra.mxu0 0
        %1907 = vmatprep.subr.bf16.mxu0 0
        %1908 = vmatpush1.bf16.xpose.msra.mxu0 0
        %1909 = vmatprep.subr.bf16.mxu0 0
        %1910 = vmatpush1.bf16.xpose.msra.mxu0 0
        %1911 = vmatprep.subr.bf16.mxu0 0
        %1912 = vmatpush1.bf16.xpose.msra.mxu0 0
        %1913 = vmatprep.subr.bf16.mxu0 0
        %1914 = vmatpush1.bf16.xpose.msra.mxu0 0
        %1915 = vmatprep.mubr.bf16.mxu0 0
        %1916 = vmatmul.mubr.bf16.gmra.mrb[0].mxu0 %v1878
        %v1917 = vpop.f32.mrb[0].mxu0
        %v1918 = vadd.f32 0.0, %v1917
        %v1919 = vpop.f32.mrb[0].mxu0
        %v1920 = vpop.f32.mrb[0].mxu0
        %v1921 = vpop.f32.mrb[0].mxu0
        %1922 = vdwg.mxu0
        %v1923 = vsel %vm932, %v1918, -inf
        %1924 = vmax.xlane.f32.xlu0 %v1923
        %v1925 = vpop.xlane.xlu0 %1924
        %v1926 = vsub.f32 %v1918, %v1925
        %v1927 = vmul.f32 %v1926, 1.442695
        %v1928 = vpow.pop %v1927
        %v1929 = vsel %vm932, %v1928, 0.0
        %1930 = vadd.xlane.f32.xlu0 %v1929
        %v1931 = vpop.xlane.xlu0 %1930
        %v1932 = vrcp.pop %v1931
        %v1933 = vmul.f32 %v1928, %v1932
        %v1934 = vpack.c.bf16 %v1933, %v1933
        %1935 = vrot.lane.b32.xlu0 %v915, 80
        %v1936 = vpop.permute.xlu0 %1935
        %v1938 = vsel %vm932, %v1934, 0
        %v1941 = vsel %vm996, %v1936, 0
        %1943 = vmatprep.subr.bf16.mxu0 0
        %1944 = vmatpush1.bf16.msra.mxu0 %v1941
        %1945 = vmatprep.subr.bf16.mxu0 0
        %1946 = vmatpush1.bf16.msra.mxu0 0
        %1947 = vmatprep.subr.bf16.mxu0 0
        %1948 = vmatpush1.bf16.msra.mxu0 0
        %1949 = vmatprep.subr.bf16.mxu0 0
        %1950 = vmatpush1.bf16.msra.mxu0 0
        %1951 = vmatprep.subr.bf16.mxu0 0
        %1952 = vmatpush1.bf16.msra.mxu0 0
        %1953 = vmatprep.subr.bf16.mxu0 0
        %1954 = vmatpush1.bf16.msra.mxu0 0
        %1955 = vmatprep.subr.bf16.mxu0 0
        %1956 = vmatpush1.bf16.msra.mxu0 0
        %1957 = vmatprep.subr.bf16.mxu0 0
        %1958 = vmatpush1.bf16.msra.mxu0 0
        %1959 = vmatprep.subr.bf16.mxu0 0
        %1960 = vmatpush1.bf16.msra.mxu0 0
        %1961 = vmatprep.subr.bf16.mxu0 0
        %1962 = vmatpush1.bf16.msra.mxu0 0
        %1963 = vmatprep.subr.bf16.mxu0 0
        %1964 = vmatpush1.bf16.msra.mxu0 0
        %1965 = vmatprep.subr.bf16.mxu0 0
        %1966 = vmatpush1.bf16.msra.mxu0 0
        %1967 = vmatprep.subr.bf16.mxu0 0
        %1968 = vmatpush1.bf16.msra.mxu0 0
        %1969 = vmatprep.subr.bf16.mxu0 0
        %1970 = vmatpush1.bf16.msra.mxu0 0
        %1971 = vmatprep.subr.bf16.mxu0 0
        %1972 = vmatpush1.bf16.msra.mxu0 0
        %1973 = vmatprep.subr.bf16.mxu0 0
        %1974 = vmatpush1.bf16.msra.mxu0 0
        %1975 = vmatprep.mubr.bf16.mxu0 0
        %1976 = vmatmul.mubr.bf16.gmra.mrb[0].mxu0 %v1938
        %v1977 = vpop.f32.mrb[0].mxu0
        %v1978 = vadd.f32 0.0, %v1977
        %v1979 = vpop.f32.mrb[0].mxu0
        %v1980 = vpop.f32.mrb[0].mxu0
        %v1981 = vpop.f32.mrb[0].mxu0
        %1982 = vdwg.mxu0
        %v1983 = vpack.c.bf16 %v1978, %v1978
        %v1985 = vsel %vm932, %v1983, 0
        %v1988 = vsel %vm996, %v923, 0
        %1990 = vmatprep.subr.bf16.mxu0 0
        %1991 = vmatpush1.bf16.msra.mxu0 %v1988
        %1992 = vmatprep.subr.bf16.mxu0 0
        %1993 = vmatpush1.bf16.msra.mxu0 0
        %1994 = vmatprep.subr.bf16.mxu0 0
        %1995 = vmatpush1.bf16.msra.mxu0 0
        %1996 = vmatprep.subr.bf16.mxu0 0
        %1997 = vmatpush1.bf16.msra.mxu0 0
        %1998 = vmatprep.subr.bf16.mxu0 0
        %1999 = vmatpush1.bf16.msra.mxu0 0
        %2000 = vmatprep.subr.bf16.mxu0 0
        %2001 = vmatpush1.bf16.msra.mxu0 0
        %2002 = vmatprep.subr.bf16.mxu0 0
        %2003 = vmatpush1.bf16.msra.mxu0 0
        %2004 = vmatprep.subr.bf16.mxu0 0
        %2005 = vmatpush1.bf16.msra.mxu0 0
        %2006 = vmatprep.subr.bf16.mxu0 0
        %2007 = vmatpush1.bf16.msra.mxu0 0
        %2008 = vmatprep.subr.bf16.mxu0 0
        %2009 = vmatpush1.bf16.msra.mxu0 0
        %2010 = vmatprep.subr.bf16.mxu0 0
        %2011 = vmatpush1.bf16.msra.mxu0 0
        %2012 = vmatprep.subr.bf16.mxu0 0
        %2013 = vmatpush1.bf16.msra.mxu0 0
        %2014 = vmatprep.subr.bf16.mxu0 0
        %2015 = vmatpush1.bf16.msra.mxu0 0
        %2016 = vmatprep.subr.bf16.mxu0 0
        %2017 = vmatpush1.bf16.msra.mxu0 0
        %2018 = vmatprep.subr.bf16.mxu0 0
        %2019 = vmatpush1.bf16.msra.mxu0 0
        %2020 = vmatprep.subr.bf16.mxu0 0
        %2021 = vmatpush1.bf16.msra.mxu0 0
        %2022 = vmatprep.mubr.bf16.mxu0 0
        %2023 = vmatmul.mubr.bf16.gmra.mrb[0].mxu0 %v1985
        %v2024 = vpop.f32.mrb[0].mxu0
        %v2025 = vadd.f32 0.0, %v2024
        %v2026 = vpop.f32.mrb[0].mxu0
        %v2027 = vpop.f32.mrb[0].mxu0
        %v2028 = vpop.f32.mrb[0].mxu0
        %2029 = vdwg.mxu0
        %v2030 = vadd.f32 %v1868, %v2025
        %2031 = vrot.lane.b32.xlu0 %v914, 8
        %v2032 = vpop.permute.xlu0 %2031
        %2033 = vrot.lane.b32.xlu0 %v915, 104
        %v2034 = vpop.permute.xlu0 %2033
        %v2036 = vsel %vm932, %v2032, 0
        %v2039 = vsel %vm932, %v2034, 0
        %2041 = vmatprep.subr.bf16.mxu0 0
        %2042 = vmatpush1.bf16.xpose.msra.mxu0 %v2039
        %2043 = vmatprep.subr.bf16.mxu0 0
        %2044 = vmatpush1.bf16.xpose.msra.mxu0 0
        %2045 = vmatprep.subr.bf16.mxu0 0
        %2046 = vmatpush1.bf16.xpose.msra.mxu0 0
        %2047 = vmatprep.subr.bf16.mxu0 0
        %2048 = vmatpush1.bf16.xpose.msra.mxu0 0
        %2049 = vmatprep.subr.bf16.mxu0 0
        %2050 = vmatpush1.bf16.xpose.msra.mxu0 0
        %2051 = vmatprep.subr.bf16.mxu0 0
        %2052 = vmatpush1.bf16.xpose.msra.mxu0 0
        %2053 = vmatprep.subr.bf16.mxu0 0
        %2054 = vmatpush1.bf16.xpose.msra.mxu0 0
        %2055 = vmatprep.subr.bf16.mxu0 0
        %2056 = vmatpush1.bf16.xpose.msra.mxu0 0
        %2057 = vmatprep.subr.bf16.mxu0 0
        %2058 = vmatpush1.bf16.xpose.msra.mxu0 0
        %2059 = vmatprep.subr.bf16.mxu0 0
        %2060 = vmatpush1.bf16.xpose.msra.mxu0 0
        %2061 = vmatprep.subr.bf16.mxu0 0
        %2062 = vmatpush1.bf16.xpose.msra.mxu0 0
        %2063 = vmatprep.subr.bf16.mxu0 0
        %2064 = vmatpush1.bf16.xpose.msra.mxu0 0
        %2065 = vmatprep.subr.bf16.mxu0 0
        %2066 = vmatpush1.bf16.xpose.msra.mxu0 0
        %2067 = vmatprep.subr.bf16.mxu0 0
        %2068 = vmatpush1.bf16.xpose.msra.mxu0 0
        %2069 = vmatprep.subr.bf16.mxu0 0
        %2070 = vmatpush1.bf16.xpose.msra.mxu0 0
        %2071 = vmatprep.subr.bf16.mxu0 0
        %2072 = vmatpush1.bf16.xpose.msra.mxu0 0
        %2073 = vmatprep.mubr.bf16.mxu0 0
        %2074 = vmatmul.mubr.bf16.gmra.mrb[0].mxu0 %v2036
        %v2075 = vpop.f32.mrb[0].mxu0
        %v2076 = vadd.f32 0.0, %v2075
        %v2077 = vpop.f32.mrb[0].mxu0
        %v2078 = vpop.f32.mrb[0].mxu0
        %v2079 = vpop.f32.mrb[0].mxu0
        %2080 = vdwg.mxu0
        %v2081 = vsel %vm932, %v2076, -inf
        %2082 = vmax.xlane.f32.xlu0 %v2081
        %v2083 = vpop.xlane.xlu0 %2082
        %v2084 = vsub.f32 %v2076, %v2083
        %v2085 = vmul.f32 %v2084, 1.442695
        %v2086 = vpow.pop %v2085
        %v2087 = vsel %vm932, %v2086, 0.0
        %2088 = vadd.xlane.f32.xlu0 %v2087
        %v2089 = vpop.xlane.xlu0 %2088
        %v2090 = vrcp.pop %v2089
        %v2091 = vmul.f32 %v2086, %v2090
        %v2092 = vpack.c.bf16 %v2091, %v2091
        %2093 = vrot.lane.b32.xlu0 %v915, 72
        %v2094 = vpop.permute.xlu0 %2093
        %v2096 = vsel %vm932, %v2092, 0
        %v2099 = vsel %vm996, %v2094, 0
        %2101 = vmatprep.subr.bf16.mxu0 0
        %2102 = vmatpush1.bf16.msra.mxu0 %v2099
        %2103 = vmatprep.subr.bf16.mxu0 0
        %2104 = vmatpush1.bf16.msra.mxu0 0
        %2105 = vmatprep.subr.bf16.mxu0 0
        %2106 = vmatpush1.bf16.msra.mxu0 0
        %2107 = vmatprep.subr.bf16.mxu0 0
        %2108 = vmatpush1.bf16.msra.mxu0 0
        %2109 = vmatprep.subr.bf16.mxu0 0
        %2110 = vmatpush1.bf16.msra.mxu0 0
        %2111 = vmatprep.subr.bf16.mxu0 0
        %2112 = vmatpush1.bf16.msra.mxu0 0
        %2113 = vmatprep.subr.bf16.mxu0 0
        %2114 = vmatpush1.bf16.msra.mxu0 0
        %2115 = vmatprep.subr.bf16.mxu0 0
        %2116 = vmatpush1.bf16.msra.mxu0 0
        %2117 = vmatprep.subr.bf16.mxu0 0
        %2118 = vmatpush1.bf16.msra.mxu0 0
        %2119 = vmatprep.subr.bf16.mxu0 0
        %2120 = vmatpush1.bf16.msra.mxu0 0
        %2121 = vmatprep.subr.bf16.mxu0 0
        %2122 = vmatpush1.bf16.msra.mxu0 0
        %2123 = vmatprep.subr.bf16.mxu0 0
        %2124 = vmatpush1.bf16.msra.mxu0 0
        %2125 = vmatprep.subr.bf16.mxu0 0
        %2126 = vmatpush1.bf16.msra.mxu0 0
        %2127 = vmatprep.subr.bf16.mxu0 0
        %2128 = vmatpush1.bf16.msra.mxu0 0
        %2129 = vmatprep.subr.bf16.mxu0 0
        %2130 = vmatpush1.bf16.msra.mxu0 0
        %2131 = vmatprep.subr.bf16.mxu0 0
        %2132 = vmatpush1.bf16.msra.mxu0 0
        %2133 = vmatprep.mubr.bf16.mxu0 0
        %2134 = vmatmul.mubr.bf16.gmra.mrb[0].mxu0 %v2096
        %v2135 = vpop.f32.mrb[0].mxu0
        %v2136 = vadd.f32 0.0, %v2135
        %v2137 = vpop.f32.mrb[0].mxu0
        %v2138 = vpop.f32.mrb[0].mxu0
        %v2139 = vpop.f32.mrb[0].mxu0
        %2140 = vdwg.mxu0
        %v2141 = vpack.c.bf16 %v2136, %v2136
        %v2143 = vsel %vm932, %v2141, 0
        %v2146 = vsel %vm996, %v924, 0
        %2148 = vmatprep.subr.bf16.mxu0 0
        %2149 = vmatpush1.bf16.msra.mxu0 %v2146
        %2150 = vmatprep.subr.bf16.mxu0 0
        %2151 = vmatpush1.bf16.msra.mxu0 0
        %2152 = vmatprep.subr.bf16.mxu0 0
        %2153 = vmatpush1.bf16.msra.mxu0 0
        %2154 = vmatprep.subr.bf16.mxu0 0
        %2155 = vmatpush1.bf16.msra.mxu0 0
        %2156 = vmatprep.subr.bf16.mxu0 0
        %2157 = vmatpush1.bf16.msra.mxu0 0
        %2158 = vmatprep.subr.bf16.mxu0 0
        %2159 = vmatpush1.bf16.msra.mxu0 0
        %2160 = vmatprep.subr.bf16.mxu0 0
        %2161 = vmatpush1.bf16.msra.mxu0 0
        %2162 = vmatprep.subr.bf16.mxu0 0
        %2163 = vmatpush1.bf16.msra.mxu0 0
        %2164 = vmatprep.subr.bf16.mxu0 0
        %2165 = vmatpush1.bf16.msra.mxu0 0
        %2166 = vmatprep.subr.bf16.mxu0 0
        %2167 = vmatpush1.bf16.msra.mxu0 0
        %2168 = vmatprep.subr.bf16.mxu0 0
        %2169 = vmatpush1.bf16.msra.mxu0 0
        %2170 = vmatprep.subr.bf16.mxu0 0
        %2171 = vmatpush1.bf16.msra.mxu0 0
        %2172 = vmatprep.subr.bf16.mxu0 0
        %2173 = vmatpush1.bf16.msra.mxu0 0
        %2174 = vmatprep.subr.bf16.mxu0 0
        %2175 = vmatpush1.bf16.msra.mxu0 0
        %2176 = vmatprep.subr.bf16.mxu0 0
        %2177 = vmatpush1.bf16.msra.mxu0 0
        %2178 = vmatprep.subr.bf16.mxu0 0
        %2179 = vmatpush1.bf16.msra.mxu0 0
        %2180 = vmatprep.mubr.bf16.mxu0 0
        %2181 = vmatmul.mubr.bf16.gmra.mrb[0].mxu0 %v2143
        %v2182 = vpop.f32.mrb[0].mxu0
        %v2183 = vadd.f32 0.0, %v2182
        %v2184 = vpop.f32.mrb[0].mxu0
        %v2185 = vpop.f32.mrb[0].mxu0
        %v2186 = vpop.f32.mrb[0].mxu0
        %2187 = vdwg.mxu0
        %v2188 = vadd.f32 %v2030, %v2183
        %v2189 = vld [vmem:[%s5] sm:$0xf]
        %v2190 = vld [vmem:[%s5 + $0x4] sm:$0xf]
        %v2191 = vld [vmem:[%s5 + $0x8] sm:$0xf]
        %v2192 = vld [vmem:[%s5 + $0xc] sm:$0xf]
        %2193 = vrot.lane.b32.xlu0 %v915, 64
        %v2194 = vpop.permute.xlu0 %2193
        %v2196 = vsel %vm932, %v2194, 0
        %v2199 = vsel %vm996, %v2189, 0
        %2201 = vmatprep.subr.bf16.mxu0 0
        %2202 = vmatpush1.bf16.msra.mxu0 %v2199
        %2203 = vmatprep.subr.bf16.mxu0 0
        %2204 = vmatpush1.bf16.msra.mxu0 0
        %2205 = vmatprep.subr.bf16.mxu0 0
        %2206 = vmatpush1.bf16.msra.mxu0 0
        %2207 = vmatprep.subr.bf16.mxu0 0
        %2208 = vmatpush1.bf16.msra.mxu0 0
        %2209 = vmatprep.subr.bf16.mxu0 0
        %2210 = vmatpush1.bf16.msra.mxu0 0
        %2211 = vmatprep.subr.bf16.mxu0 0
        %2212 = vmatpush1.bf16.msra.mxu0 0
        %2213 = vmatprep.subr.bf16.mxu0 0
        %2214 = vmatpush1.bf16.msra.mxu0 0
        %2215 = vmatprep.subr.bf16.mxu0 0
        %2216 = vmatpush1.bf16.msra.mxu0 0
        %2217 = vmatprep.subr.bf16.mxu0 0
        %2218 = vmatpush1.bf16.msra.mxu0 0
        %2219 = vmatprep.subr.bf16.mxu0 0
        %2220 = vmatpush1.bf16.msra.mxu0 0
        %2221 = vmatprep.subr.bf16.mxu0 0
        %2222 = vmatpush1.bf16.msra.mxu0 0
        %2223 = vmatprep.subr.bf16.mxu0 0
        %2224 = vmatpush1.bf16.msra.mxu0 0
        %2225 = vmatprep.subr.bf16.mxu0 0
        %2226 = vmatpush1.bf16.msra.mxu0 0
        %2227 = vmatprep.subr.bf16.mxu0 0
        %2228 = vmatpush1.bf16.msra.mxu0 0
        %2229 = vmatprep.subr.bf16.mxu0 0
        %2230 = vmatpush1.bf16.msra.mxu0 0
        %2231 = vmatprep.subr.bf16.mxu0 0
        %2232 = vmatpush1.bf16.msra.mxu0 0
        %2233 = vmatprep.mubr.bf16.mxu0 0
        %2234 = vmatmul.mubr.bf16.gmra.mrb[0].mxu0 %v2196
        %v2235 = vpop.f32.mrb[0].mxu0
        %v2236 = vadd.f32 0.0, %v2235
        %v2237 = vpop.f32.mrb[0].mxu0
        %v2238 = vpop.f32.mrb[0].mxu0
        %v2239 = vpop.f32.mrb[0].mxu0
        %2240 = vdwg.mxu0
        %v2241 = vmax.f32 %v2236, 0.0
        %v2242 = vadd.f32 %v2241, 1e-06
        %2243 = vrot.lane.b32.xlu0 %v915, 32
        %v2244 = vpop.permute.xlu0 %2243
        %v2246 = vsel %vm932, %v2244, 0
        %2248 = vmatprep.subr.bf16.mxu0 0
        %2249 = vmatpush1.bf16.msra.mxu0 %v2199
        %2250 = vmatprep.subr.bf16.mxu0 0
        %2251 = vmatpush1.bf16.msra.mxu0 0
        %2252 = vmatprep.subr.bf16.mxu0 0
        %2253 = vmatpush1.bf16.msra.mxu0 0
        %2254 = vmatprep.subr.bf16.mxu0 0
        %2255 = vmatpush1.bf16.msra.mxu0 0
        %2256 = vmatprep.subr.bf16.mxu0 0
        %2257 = vmatpush1.bf16.msra.mxu0 0
        %2258 = vmatprep.subr.bf16.mxu0 0
        %2259 = vmatpush1.bf16.msra.mxu0 0
        %2260 = vmatprep.subr.bf16.mxu0 0
        %2261 = vmatpush1.bf16.msra.mxu0 0
        %2262 = vmatprep.subr.bf16.mxu0 0
        %2263 = vmatpush1.bf16.msra.mxu0 0
        %2264 = vmatprep.subr.bf16.mxu0 0
        %2265 = vmatpush1.bf16.msra.mxu0 0
        %2266 = vmatprep.subr.bf16.mxu0 0
        %2267 = vmatpush1.bf16.msra.mxu0 0
        %2268 = vmatprep.subr.bf16.mxu0 0
        %2269 = vmatpush1.bf16.msra.mxu0 0
        %2270 = vmatprep.subr.bf16.mxu0 0
        %2271 = vmatpush1.bf16.msra.mxu0 0
        %2272 = vmatprep.subr.bf16.mxu0 0
        %2273 = vmatpush1.bf16.msra.mxu0 0
        %2274 = vmatprep.subr.bf16.mxu0 0
        %2275 = vmatpush1.bf16.msra.mxu0 0
        %2276 = vmatprep.subr.bf16.mxu0 0
        %2277 = vmatpush1.bf16.msra.mxu0 0
        %2278 = vmatprep.subr.bf16.mxu0 0
        %2279 = vmatpush1.bf16.msra.mxu0 0
        %2280 = vmatprep.mubr.bf16.mxu0 0
        %2281 = vmatmul.mubr.bf16.gmra.mrb[0].mxu0 %v2246
        %v2282 = vpop.f32.mrb[0].mxu0
        %v2283 = vadd.f32 0.0, %v2282
        %v2284 = vpop.f32.mrb[0].mxu0
        %v2285 = vpop.f32.mrb[0].mxu0
        %v2286 = vpop.f32.mrb[0].mxu0
        %2287 = vdwg.mxu0
        %v2288 = vmax.f32 %v2283, 0.0
        %v2289 = vadd.f32 %v2288, 1e-06
        %2290 = vxpose.xlu0.b32.start [1/16] %v2289, 128
        %2291 = vxpose.xlu0.b32.cont [2/16] 0.0, 128
        %2292 = vxpose.xlu0.b32.cont [3/16] 0.0, 128
        %2293 = vxpose.xlu0.b32.cont [4/16] 0.0, 128
        %2294 = vxpose.xlu0.b32.cont [5/16] 0.0, 128
        %2295 = vxpose.xlu0.b32.cont [6/16] 0.0, 128
        %2296 = vxpose.xlu0.b32.cont [7/16] 0.0, 128
        %2297 = vxpose.xlu0.b32.cont [8/16] 0.0, 128
        %2298 = vxpose.xlu0.b32.cont [9/16] 0.0, 128
        %2299 = vxpose.xlu0.b32.cont [10/16] 0.0, 128
        %2300 = vxpose.xlu0.b32.cont [11/16] 0.0, 128
        %2301 = vxpose.xlu0.b32.cont [12/16] 0.0, 128
        %2302 = vxpose.xlu0.b32.cont [13/16] 0.0, 128
        %2303 = vxpose.xlu0.b32.cont [14/16] 0.0, 128
        %2304 = vxpose.xlu0.b32.cont [15/16] 0.0, 128
        %2305 = vxpose.xlu0.b32.end [16/16] 0.0, 128
        %v2306 = vpop.trf.xlu0
        %v2307 = vpop.trf.xlu0
        %v2308 = vpop.trf.xlu0
        %v2309 = vpop.trf.xlu0
        %v2310 = vpop.trf.xlu0
        %v2311 = vpop.trf.xlu0
        %v2312 = vpop.trf.xlu0
        %v2313 = vpop.trf.xlu0
        %v2314 = vpop.trf.xlu0
        %v2315 = vpop.trf.xlu0
        %v2316 = vpop.trf.xlu0
        %v2317 = vpop.trf.xlu0
        %v2318 = vpop.trf.xlu0
        %v2319 = vpop.trf.xlu0
        %v2320 = vpop.trf.xlu0
        %v2321 = vpop.trf.xlu0
        %v2322 = vpack.c.bf16 %v2307, %v2306
        %v2323 = vpack.c.bf16 %v2309, %v2308
        %v2324 = vpack.c.bf16 %v2311, %v2310
        %v2325 = vpack.c.bf16 %v2313, %v2312
        %v2327 = vsel %vm932, %v2322, 0
        %v2330 = vsel %vm932, %v2323, 0
        %v2333 = vsel %vm932, %v2324, 0
        %v2336 = vsel %vm932, %v2325, 0
        %v2339 = vsel %vm996, %v916, 0
        %2341 = vmatprep.subr.bf16.mxu0 0
        %2342 = vmatpush1.bf16.msra.mxu0 %v2339
        %2343 = vmatprep.subr.bf16.mxu0 0
        %2344 = vmatpush1.bf16.msra.mxu0 0
        %2345 = vmatprep.subr.bf16.mxu0 0
        %2346 = vmatpush1.bf16.msra.mxu0 0
        %2347 = vmatprep.subr.bf16.mxu0 0
        %2348 = vmatpush1.bf16.msra.mxu0 0
        %2349 = vmatprep.subr.bf16.mxu0 0
        %2350 = vmatpush1.bf16.msra.mxu0 0
        %2351 = vmatprep.subr.bf16.mxu0 0
        %2352 = vmatpush1.bf16.msra.mxu0 0
        %2353 = vmatprep.subr.bf16.mxu0 0
        %2354 = vmatpush1.bf16.msra.mxu0 0
        %2355 = vmatprep.subr.bf16.mxu0 0
        %2356 = vmatpush1.bf16.msra.mxu0 0
        %2357 = vmatprep.subr.bf16.mxu0 0
        %2358 = vmatpush1.bf16.msra.mxu0 0
        %2359 = vmatprep.subr.bf16.mxu0 0
        %2360 = vmatpush1.bf16.msra.mxu0 0
        %2361 = vmatprep.subr.bf16.mxu0 0
        %2362 = vmatpush1.bf16.msra.mxu0 0
        %2363 = vmatprep.subr.bf16.mxu0 0
        %2364 = vmatpush1.bf16.msra.mxu0 0
        %2365 = vmatprep.subr.bf16.mxu0 0
        %2366 = vmatpush1.bf16.msra.mxu0 0
        %2367 = vmatprep.subr.bf16.mxu0 0
        %2368 = vmatpush1.bf16.msra.mxu0 0
        %2369 = vmatprep.subr.bf16.mxu0 0
        %2370 = vmatpush1.bf16.msra.mxu0 0
        %2371 = vmatprep.subr.bf16.mxu0 0
        %2372 = vmatpush1.bf16.msra.mxu0 0
        %2373 = vmatprep.mubr.bf16.mxu0 0
        %2374 = vmatmul.mubr.bf16.gmra.mrb[0].mxu0 %v2327
        %v2375 = vpop.f32.mrb[0].mxu0
        %v2376 = vadd.f32 0.0, %v2375
        %v2377 = vpop.f32.mrb[0].mxu0
        %v2378 = vpop.f32.mrb[0].mxu0
        %v2379 = vadd.f32 0.0, %v2378
        %v2380 = vpop.f32.mrb[0].mxu0
        %2381 = vmatprep.mubr.bf16.mxu0 0
        %2382 = vmatmul.mubr.bf16.gmra.mrb[0].mxu0 %v2330
        %v2383 = vpop.f32.mrb[0].mxu0
        %v2384 = vadd.f32 0.0, %v2383
        %v2385 = vpop.f32.mrb[0].mxu0
        %v2386 = vpop.f32.mrb[0].mxu0
        %v2387 = vadd.f32 0.0, %v2386
        %v2388 = vpop.f32.mrb[0].mxu0
        %2389 = vmatprep.mubr.bf16.mxu0 0
        %2390 = vmatmul.mubr.bf16.gmra.mrb[0].mxu0 %v2333
        %v2391 = vpop.f32.mrb[0].mxu0
        %v2392 = vadd.f32 0.0, %v2391
        %v2393 = vpop.f32.mrb[0].mxu0
        %v2394 = vpop.f32.mrb[0].mxu0
        %v2395 = vadd.f32 0.0, %v2394
        %v2396 = vpop.f32.mrb[0].mxu0
        %2397 = vmatprep.mubr.bf16.mxu0 0
        %2398 = vmatmul.mubr.bf16.gmra.mrb[0].mxu0 %v2336
        %v2399 = vpop.f32.mrb[0].mxu0
        %v2400 = vadd.f32 0.0, %v2399
        %v2401 = vpop.f32.mrb[0].mxu0
        %v2402 = vpop.f32.mrb[0].mxu0
        %v2403 = vadd.f32 0.0, %v2402
        %v2404 = vpop.f32.mrb[0].mxu0
        %2405 = vdwg.mxu0
        %vm2406 = vcmask 523264
        %v2407 = vsel %vm2406, %v2289, 0.0
        %v2408 = vrot.slane %v2407, 4
        %v2409 = vadd.f32 %v2407, %v2408
        %v2410 = vrot.slane %v2409, 2
        %v2411 = vadd.f32 %v2409, %v2410
        %v2412 = vrot.slane %v2411, 1
        %v2413 = vadd.f32 %v2411, %v2412
        %v2414 = vpack.c.bf16 %v2242, %v2242
        %v2415 = vpack.c.bf16 %v2379, %v2376
        %v2416 = vpack.c.bf16 %v2387, %v2384
        %v2417 = vpack.c.bf16 %v2395, %v2392
        %v2418 = vpack.c.bf16 %v2403, %v2400
        %v2420 = vsel %vm2406, %v2414, 0
        %2422 = vmatprep.subr.bf16.mxu0 0
        %2423 = vmatpush1.bf16.msra.mxu0 %v2415
        %2424 = vmatprep.subr.bf16.mxu0 0
        %2425 = vmatpush1.bf16.msra.mxu0 %v2416
        %2426 = vmatprep.subr.bf16.mxu0 0
        %2427 = vmatpush1.bf16.msra.mxu0 %v2417
        %2428 = vmatprep.subr.bf16.mxu0 0
        %2429 = vmatpush1.bf16.msra.mxu0 %v2418
        %2430 = vmatprep.subr.bf16.mxu0 0
        %2431 = vmatpush1.bf16.msra.mxu0 0
        %2432 = vmatprep.subr.bf16.mxu0 0
        %2433 = vmatpush1.bf16.msra.mxu0 0
        %2434 = vmatprep.subr.bf16.mxu0 0
        %2435 = vmatpush1.bf16.msra.mxu0 0
        %2436 = vmatprep.subr.bf16.mxu0 0
        %2437 = vmatpush1.bf16.msra.mxu0 0
        %2438 = vmatprep.subr.bf16.mxu0 0
        %2439 = vmatpush1.bf16.msra.mxu0 0
        %2440 = vmatprep.subr.bf16.mxu0 0
        %2441 = vmatpush1.bf16.msra.mxu0 0
        %2442 = vmatprep.subr.bf16.mxu0 0
        %2443 = vmatpush1.bf16.msra.mxu0 0
        %2444 = vmatprep.subr.bf16.mxu0 0
        %2445 = vmatpush1.bf16.msra.mxu0 0
        %2446 = vmatprep.subr.bf16.mxu0 0
        %2447 = vmatpush1.bf16.msra.mxu0 0
        %2448 = vmatprep.subr.bf16.mxu0 0
        %2449 = vmatpush1.bf16.msra.mxu0 0
        %2450 = vmatprep.subr.bf16.mxu0 0
        %2451 = vmatpush1.bf16.msra.mxu0 0
        %2452 = vmatprep.subr.bf16.mxu0 0
        %2453 = vmatpush1.bf16.msra.mxu0 0
        %2454 = vmatprep.mubr.bf16.mxu0 0
        %2455 = vmatmul.mubr.bf16.gmra.mrb[0].mxu0 %v2420
        %v2456 = vpop.f32.mrb[0].mxu0
        %v2457 = vadd.f32 0.0, %v2456
        %v2458 = vpop.f32.mrb[0].mxu0
        %v2459 = vpop.f32.mrb[0].mxu0
        %v2460 = vpop.f32.mrb[0].mxu0
        %2461 = vdwg.mxu0
        %v2462 = vmul.f32 %v2242, %v2413
        %v2463 = vsel %vm2406, %v2462, 0.0
        %2464 = vadd.xlane.f32.xlu0 %v2463
        %v2465 = vpop.xlane.xlu0 %2464
        %v2466 = vadd.f32 %v2465, 1e-06
        %v2467 = vrcp.pop %v2466
        %v2468 = vmul.f32 %v2457, %v2467
        %v2469 = vpack.c.bf16 %v2468, %v2468
        %2470 = vrot.lane.b32.xlu0 %v915, 56
        %v2471 = vpop.permute.xlu0 %2470
        %v2473 = vsel %vm932, %v2471, 0
        %v2476 = vsel %vm996, %v2190, 0
        %2478 = vmatprep.subr.bf16.mxu0 0
        %2479 = vmatpush1.bf16.msra.mxu0 %v2476
        %2480 = vmatprep.subr.bf16.mxu0 0
        %2481 = vmatpush1.bf16.msra.mxu0 0
        %2482 = vmatprep.subr.bf16.mxu0 0
        %2483 = vmatpush1.bf16.msra.mxu0 0
        %2484 = vmatprep.subr.bf16.mxu0 0
        %2485 = vmatpush1.bf16.msra.mxu0 0
        %2486 = vmatprep.subr.bf16.mxu0 0
        %2487 = vmatpush1.bf16.msra.mxu0 0
        %2488 = vmatprep.subr.bf16.mxu0 0
        %2489 = vmatpush1.bf16.msra.mxu0 0
        %2490 = vmatprep.subr.bf16.mxu0 0
        %2491 = vmatpush1.bf16.msra.mxu0 0
        %2492 = vmatprep.subr.bf16.mxu0 0
        %2493 = vmatpush1.bf16.msra.mxu0 0
        %2494 = vmatprep.subr.bf16.mxu0 0
        %2495 = vmatpush1.bf16.msra.mxu0 0
        %2496 = vmatprep.subr.bf16.mxu0 0
        %2497 = vmatpush1.bf16.msra.mxu0 0
        %2498 = vmatprep.subr.bf16.mxu0 0
        %2499 = vmatpush1.bf16.msra.mxu0 0
        %2500 = vmatprep.subr.bf16.mxu0 0
        %2501 = vmatpush1.bf16.msra.mxu0 0
        %2502 = vmatprep.subr.bf16.mxu0 0
        %2503 = vmatpush1.bf16.msra.mxu0 0
        %2504 = vmatprep.subr.bf16.mxu0 0
        %2505 = vmatpush1.bf16.msra.mxu0 0
        %2506 = vmatprep.subr.bf16.mxu0 0
        %2507 = vmatpush1.bf16.msra.mxu0 0
        %2508 = vmatprep.subr.bf16.mxu0 0
        %2509 = vmatpush1.bf16.msra.mxu0 0
        %2510 = vmatprep.mubr.bf16.mxu0 0
        %2511 = vmatmul.mubr.bf16.gmra.mrb[0].mxu0 %v2473
        %v2512 = vpop.f32.mrb[0].mxu0
        %v2513 = vadd.f32 0.0, %v2512
        %v2514 = vpop.f32.mrb[0].mxu0
        %v2515 = vpop.f32.mrb[0].mxu0
        %v2516 = vpop.f32.mrb[0].mxu0
        %2517 = vdwg.mxu0
        %v2518 = vmax.f32 %v2513, 0.0
        %v2519 = vadd.f32 %v2518, 1e-06
        %2520 = vrot.lane.b32.xlu0 %v915, 24
        %v2521 = vpop.permute.xlu0 %2520
        %v2523 = vsel %vm932, %v2521, 0
        %2525 = vmatprep.subr.bf16.mxu0 0
        %2526 = vmatpush1.bf16.msra.mxu0 %v2476
        %2527 = vmatprep.subr.bf16.mxu0 0
        %2528 = vmatpush1.bf16.msra.mxu0 0
        %2529 = vmatprep.subr.bf16.mxu0 0
        %2530 = vmatpush1.bf16.msra.mxu0 0
        %2531 = vmatprep.subr.bf16.mxu0 0
        %2532 = vmatpush1.bf16.msra.mxu0 0
        %2533 = vmatprep.subr.bf16.mxu0 0
        %2534 = vmatpush1.bf16.msra.mxu0 0
        %2535 = vmatprep.subr.bf16.mxu0 0
        %2536 = vmatpush1.bf16.msra.mxu0 0
        %2537 = vmatprep.subr.bf16.mxu0 0
        %2538 = vmatpush1.bf16.msra.mxu0 0
        %2539 = vmatprep.subr.bf16.mxu0 0
        %2540 = vmatpush1.bf16.msra.mxu0 0
        %2541 = vmatprep.subr.bf16.mxu0 0
        %2542 = vmatpush1.bf16.msra.mxu0 0
        %2543 = vmatprep.subr.bf16.mxu0 0
        %2544 = vmatpush1.bf16.msra.mxu0 0
        %2545 = vmatprep.subr.bf16.mxu0 0
        %2546 = vmatpush1.bf16.msra.mxu0 0
        %2547 = vmatprep.subr.bf16.mxu0 0
        %2548 = vmatpush1.bf16.msra.mxu0 0
        %2549 = vmatprep.subr.bf16.mxu0 0
        %2550 = vmatpush1.bf16.msra.mxu0 0
        %2551 = vmatprep.subr.bf16.mxu0 0
        %2552 = vmatpush1.bf16.msra.mxu0 0
        %2553 = vmatprep.subr.bf16.mxu0 0
        %2554 = vmatpush1.bf16.msra.mxu0 0
        %2555 = vmatprep.subr.bf16.mxu0 0
        %2556 = vmatpush1.bf16.msra.mxu0 0
        %2557 = vmatprep.mubr.bf16.mxu0 0
        %2558 = vmatmul.mubr.bf16.gmra.mrb[0].mxu0 %v2523
        %v2559 = vpop.f32.mrb[0].mxu0
        %v2560 = vadd.f32 0.0, %v2559
        %v2561 = vpop.f32.mrb[0].mxu0
        %v2562 = vpop.f32.mrb[0].mxu0
        %v2563 = vpop.f32.mrb[0].mxu0
        %2564 = vdwg.mxu0
        %v2565 = vmax.f32 %v2560, 0.0
        %v2566 = vadd.f32 %v2565, 1e-06
        %2567 = vxpose.xlu0.b32.start [1/16] %v2566, 128
        %2568 = vxpose.xlu0.b32.cont [2/16] 0.0, 128
        %2569 = vxpose.xlu0.b32.cont [3/16] 0.0, 128
        %2570 = vxpose.xlu0.b32.cont [4/16] 0.0, 128
        %2571 = vxpose.xlu0.b32.cont [5/16] 0.0, 128
        %2572 = vxpose.xlu0.b32.cont [6/16] 0.0, 128
        %2573 = vxpose.xlu0.b32.cont [7/16] 0.0, 128
        %2574 = vxpose.xlu0.b32.cont [8/16] 0.0, 128
        %2575 = vxpose.xlu0.b32.cont [9/16] 0.0, 128
        %2576 = vxpose.xlu0.b32.cont [10/16] 0.0, 128
        %2577 = vxpose.xlu0.b32.cont [11/16] 0.0, 128
        %2578 = vxpose.xlu0.b32.cont [12/16] 0.0, 128
        %2579 = vxpose.xlu0.b32.cont [13/16] 0.0, 128
        %2580 = vxpose.xlu0.b32.cont [14/16] 0.0, 128
        %2581 = vxpose.xlu0.b32.cont [15/16] 0.0, 128
        %2582 = vxpose.xlu0.b32.end [16/16] 0.0, 128
        %v2583 = vpop.trf.xlu0
        %v2584 = vpop.trf.xlu0
        %v2585 = vpop.trf.xlu0
        %v2586 = vpop.trf.xlu0
        %v2587 = vpop.trf.xlu0
        %v2588 = vpop.trf.xlu0
        %v2589 = vpop.trf.xlu0
        %v2590 = vpop.trf.xlu0
        %v2591 = vpop.trf.xlu0
        %v2592 = vpop.trf.xlu0
        %v2593 = vpop.trf.xlu0
        %v2594 = vpop.trf.xlu0
        %v2595 = vpop.trf.xlu0
        %v2596 = vpop.trf.xlu0
        %v2597 = vpop.trf.xlu0
        %v2598 = vpop.trf.xlu0
        %v2599 = vpack.c.bf16 %v2584, %v2583
        %v2600 = vpack.c.bf16 %v2586, %v2585
        %v2601 = vpack.c.bf16 %v2588, %v2587
        %v2602 = vpack.c.bf16 %v2590, %v2589
        %2604 = vrot.lane.b32.xlu0 %v916, 120
        %v2605 = vpop.permute.xlu0 %2604
        %v2607 = vsel %vm932, %v2599, 0
        %v2610 = vsel %vm932, %v2600, 0
        %v2613 = vsel %vm932, %v2601, 0
        %v2616 = vsel %vm932, %v2602, 0
        %v2619 = vsel %vm996, %v2605, 0
        %2621 = vmatprep.subr.bf16.mxu0 0
        %2622 = vmatpush1.bf16.msra.mxu0 %v2619
        %2623 = vmatprep.subr.bf16.mxu0 0
        %2624 = vmatpush1.bf16.msra.mxu0 0
        %2625 = vmatprep.subr.bf16.mxu0 0
        %2626 = vmatpush1.bf16.msra.mxu0 0
        %2627 = vmatprep.subr.bf16.mxu0 0
        %2628 = vmatpush1.bf16.msra.mxu0 0
        %2629 = vmatprep.subr.bf16.mxu0 0
        %2630 = vmatpush1.bf16.msra.mxu0 0
        %2631 = vmatprep.subr.bf16.mxu0 0
        %2632 = vmatpush1.bf16.msra.mxu0 0
        %2633 = vmatprep.subr.bf16.mxu0 0
        %2634 = vmatpush1.bf16.msra.mxu0 0
        %2635 = vmatprep.subr.bf16.mxu0 0
        %2636 = vmatpush1.bf16.msra.mxu0 0
        %2637 = vmatprep.subr.bf16.mxu0 0
        %2638 = vmatpush1.bf16.msra.mxu0 0
        %2639 = vmatprep.subr.bf16.mxu0 0
        %2640 = vmatpush1.bf16.msra.mxu0 0
        %2641 = vmatprep.subr.bf16.mxu0 0
        %2642 = vmatpush1.bf16.msra.mxu0 0
        %2643 = vmatprep.subr.bf16.mxu0 0
        %2644 = vmatpush1.bf16.msra.mxu0 0
        %2645 = vmatprep.subr.bf16.mxu0 0
        %2646 = vmatpush1.bf16.msra.mxu0 0
        %2647 = vmatprep.subr.bf16.mxu0 0
        %2648 = vmatpush1.bf16.msra.mxu0 0
        %2649 = vmatprep.subr.bf16.mxu0 0
        %2650 = vmatpush1.bf16.msra.mxu0 0
        %2651 = vmatprep.subr.bf16.mxu0 0
        %2652 = vmatpush1.bf16.msra.mxu0 0
        %2653 = vmatprep.mubr.bf16.mxu0 0
        %2654 = vmatmul.mubr.bf16.gmra.mrb[0].mxu0 %v2607
        %v2655 = vpop.f32.mrb[0].mxu0
        %v2656 = vadd.f32 0.0, %v2655
        %v2657 = vpop.f32.mrb[0].mxu0
        %v2658 = vpop.f32.mrb[0].mxu0
        %v2659 = vadd.f32 0.0, %v2658
        %v2660 = vpop.f32.mrb[0].mxu0
        %2661 = vmatprep.mubr.bf16.mxu0 0
        %2662 = vmatmul.mubr.bf16.gmra.mrb[0].mxu0 %v2610
        %v2663 = vpop.f32.mrb[0].mxu0
        %v2664 = vadd.f32 0.0, %v2663
        %v2665 = vpop.f32.mrb[0].mxu0
        %v2666 = vpop.f32.mrb[0].mxu0
        %v2667 = vadd.f32 0.0, %v2666
        %v2668 = vpop.f32.mrb[0].mxu0
        %2669 = vmatprep.mubr.bf16.mxu0 0
        %2670 = vmatmul.mubr.bf16.gmra.mrb[0].mxu0 %v2613
        %v2671 = vpop.f32.mrb[0].mxu0
        %v2672 = vadd.f32 0.0, %v2671
        %v2673 = vpop.f32.mrb[0].mxu0
        %v2674 = vpop.f32.mrb[0].mxu0
        %v2675 = vadd.f32 0.0, %v2674
        %v2676 = vpop.f32.mrb[0].mxu0
        %2677 = vmatprep.mubr.bf16.mxu0 0
        %2678 = vmatmul.mubr.bf16.gmra.mrb[0].mxu0 %v2616
        %v2679 = vpop.f32.mrb[0].mxu0
        %v2680 = vadd.f32 0.0, %v2679
        %v2681 = vpop.f32.mrb[0].mxu0
        %v2682 = vpop.f32.mrb[0].mxu0
        %v2683 = vadd.f32 0.0, %v2682
        %v2684 = vpop.f32.mrb[0].mxu0
        %2685 = vdwg.mxu0
        %v2686 = vsel %vm2406, %v2566, 0.0
        %v2687 = vrot.slane %v2686, 4
        %v2688 = vadd.f32 %v2686, %v2687
        %v2689 = vrot.slane %v2688, 2
        %v2690 = vadd.f32 %v2688, %v2689
        %v2691 = vrot.slane %v2690, 1
        %v2692 = vadd.f32 %v2690, %v2691
        %v2693 = vpack.c.bf16 %v2519, %v2519
        %v2694 = vpack.c.bf16 %v2659, %v2656
        %v2695 = vpack.c.bf16 %v2667, %v2664
        %v2696 = vpack.c.bf16 %v2675, %v2672
        %v2697 = vpack.c.bf16 %v2683, %v2680
        %v2699 = vsel %vm2406, %v2693, 0
        %2701 = vmatprep.subr.bf16.mxu0 0
        %2702 = vmatpush1.bf16.msra.mxu0 %v2694
        %2703 = vmatprep.subr.bf16.mxu0 0
        %2704 = vmatpush1.bf16.msra.mxu0 %v2695
        %2705 = vmatprep.subr.bf16.mxu0 0
        %2706 = vmatpush1.bf16.msra.mxu0 %v2696
        %2707 = vmatprep.subr.bf16.mxu0 0
        %2708 = vmatpush1.bf16.msra.mxu0 %v2697
        %2709 = vmatprep.subr.bf16.mxu0 0
        %2710 = vmatpush1.bf16.msra.mxu0 0
        %2711 = vmatprep.subr.bf16.mxu0 0
        %2712 = vmatpush1.bf16.msra.mxu0 0
        %2713 = vmatprep.subr.bf16.mxu0 0
        %2714 = vmatpush1.bf16.msra.mxu0 0
        %2715 = vmatprep.subr.bf16.mxu0 0
        %2716 = vmatpush1.bf16.msra.mxu0 0
        %2717 = vmatprep.subr.bf16.mxu0 0
        %2718 = vmatpush1.bf16.msra.mxu0 0
        %2719 = vmatprep.subr.bf16.mxu0 0
        %2720 = vmatpush1.bf16.msra.mxu0 0
        %2721 = vmatprep.subr.bf16.mxu0 0
        %2722 = vmatpush1.bf16.msra.mxu0 0
        %2723 = vmatprep.subr.bf16.mxu0 0
        %2724 = vmatpush1.bf16.msra.mxu0 0
        %2725 = vmatprep.subr.bf16.mxu0 0
        %2726 = vmatpush1.bf16.msra.mxu0 0
        %2727 = vmatprep.subr.bf16.mxu0 0
        %2728 = vmatpush1.bf16.msra.mxu0 0
        %2729 = vmatprep.subr.bf16.mxu0 0
        %2730 = vmatpush1.bf16.msra.mxu0 0
        %2731 = vmatprep.subr.bf16.mxu0 0
        %2732 = vmatpush1.bf16.msra.mxu0 0
        %2733 = vmatprep.mubr.bf16.mxu0 0
        %2734 = vmatmul.mubr.bf16.gmra.mrb[0].mxu0 %v2699
        %v2735 = vpop.f32.mrb[0].mxu0
        %v2736 = vadd.f32 0.0, %v2735
        %v2737 = vpop.f32.mrb[0].mxu0
        %v2738 = vpop.f32.mrb[0].mxu0
        %v2739 = vpop.f32.mrb[0].mxu0
        %2740 = vdwg.mxu0
        %v2741 = vmul.f32 %v2519, %v2692
        %v2742 = vsel %vm2406, %v2741, 0.0
        %2743 = vadd.xlane.f32.xlu0 %v2742
        %v2744 = vpop.xlane.xlu0 %2743
        %v2745 = vadd.f32 %v2744, 1e-06
        %v2746 = vrcp.pop %v2745
        %v2747 = vmul.f32 %v2736, %v2746
        %v2748 = vpack.c.bf16 %v2747, %v2747
        %v2750 = vsel %vm932, %v2748, 0
        %v2753 = vsel %vm996, %v926, 0
        %2755 = vmatprep.subr.bf16.mxu0 0
        %2756 = vmatpush1.bf16.msra.mxu0 %v2753
        %2757 = vmatprep.subr.bf16.mxu0 0
        %2758 = vmatpush1.bf16.msra.mxu0 0
        %2759 = vmatprep.subr.bf16.mxu0 0
        %2760 = vmatpush1.bf16.msra.mxu0 0
        %2761 = vmatprep.subr.bf16.mxu0 0
        %2762 = vmatpush1.bf16.msra.mxu0 0
        %2763 = vmatprep.subr.bf16.mxu0 0
        %2764 = vmatpush1.bf16.msra.mxu0 0
        %2765 = vmatprep.subr.bf16.mxu0 0
        %2766 = vmatpush1.bf16.msra.mxu0 0
        %2767 = vmatprep.subr.bf16.mxu0 0
        %2768 = vmatpush1.bf16.msra.mxu0 0
        %2769 = vmatprep.subr.bf16.mxu0 0
        %2770 = vmatpush1.bf16.msra.mxu0 0
        %2771 = vmatprep.subr.bf16.mxu0 0
        %2772 = vmatpush1.bf16.msra.mxu0 0
        %2773 = vmatprep.subr.bf16.mxu0 0
        %2774 = vmatpush1.bf16.msra.mxu0 0
        %2775 = vmatprep.subr.bf16.mxu0 0
        %2776 = vmatpush1.bf16.msra.mxu0 0
        %2777 = vmatprep.subr.bf16.mxu0 0
        %2778 = vmatpush1.bf16.msra.mxu0 0
        %2779 = vmatprep.subr.bf16.mxu0 0
        %2780 = vmatpush1.bf16.msra.mxu0 0
        %2781 = vmatprep.subr.bf16.mxu0 0
        %2782 = vmatpush1.bf16.msra.mxu0 0
        %2783 = vmatprep.subr.bf16.mxu0 0
        %2784 = vmatpush1.bf16.msra.mxu0 0
        %2785 = vmatprep.subr.bf16.mxu0 0
        %2786 = vmatpush1.bf16.msra.mxu0 0
        %2787 = vmatprep.mubr.bf16.mxu0 0
        %2788 = vmatmul.mubr.bf16.gmra.mrb[0].mxu0 %v2750
        %v2789 = vpop.f32.mrb[0].mxu0
        %v2790 = vadd.f32 0.0, %v2789
        %v2791 = vpop.f32.mrb[0].mxu0
        %v2792 = vpop.f32.mrb[0].mxu0
        %v2793 = vpop.f32.mrb[0].mxu0
        %2794 = vdwg.mxu0
        %v2796 = vsel %vm932, %v2469, 0
        %v2799 = vsel %vm996, %v925, 0
        %2801 = vmatprep.subr.bf16.mxu0 0
        %2802 = vmatpush1.bf16.msra.mxu0 %v2799
        %2803 = vmatprep.subr.bf16.mxu0 0
        %2804 = vmatpush1.bf16.msra.mxu0 0
        %2805 = vmatprep.subr.bf16.mxu0 0
        %2806 = vmatpush1.bf16.msra.mxu0 0
        %2807 = vmatprep.subr.bf16.mxu0 0
        %2808 = vmatpush1.bf16.msra.mxu0 0
        %2809 = vmatprep.subr.bf16.mxu0 0
        %2810 = vmatpush1.bf16.msra.mxu0 0
        %2811 = vmatprep.subr.bf16.mxu0 0
        %2812 = vmatpush1.bf16.msra.mxu0 0
        %2813 = vmatprep.subr.bf16.mxu0 0
        %2814 = vmatpush1.bf16.msra.mxu0 0
        %2815 = vmatprep.subr.bf16.mxu0 0
        %2816 = vmatpush1.bf16.msra.mxu0 0
        %2817 = vmatprep.subr.bf16.mxu0 0
        %2818 = vmatpush1.bf16.msra.mxu0 0
        %2819 = vmatprep.subr.bf16.mxu0 0
        %2820 = vmatpush1.bf16.msra.mxu0 0
        %2821 = vmatprep.subr.bf16.mxu0 0
        %2822 = vmatpush1.bf16.msra.mxu0 0
        %2823 = vmatprep.subr.bf16.mxu0 0
        %2824 = vmatpush1.bf16.msra.mxu0 0
        %2825 = vmatprep.subr.bf16.mxu0 0
        %2826 = vmatpush1.bf16.msra.mxu0 0
        %2827 = vmatprep.subr.bf16.mxu0 0
        %2828 = vmatpush1.bf16.msra.mxu0 0
        %2829 = vmatprep.subr.bf16.mxu0 0
        %2830 = vmatpush1.bf16.msra.mxu0 0
        %2831 = vmatprep.subr.bf16.mxu0 0
        %2832 = vmatpush1.bf16.msra.mxu0 0
        %2833 = vmatprep.mubr.bf16.mxu0 0
        %2834 = vmatmul.mubr.bf16.gmra.mrb[0].mxu0 %v2796
        %v2835 = vpop.f32.mrb[0].mxu0
        %v2836 = vadd.f32 %v2790, %v2835
        %v2837 = vpop.f32.mrb[0].mxu0
        %v2838 = vpop.f32.mrb[0].mxu0
        %v2839 = vpop.f32.mrb[0].mxu0
        %2840 = vdwg.mxu0
        %2841 = vrot.lane.b32.xlu0 %v915, 48
        %v2842 = vpop.permute.xlu0 %2841
        %v2844 = vsel %vm932, %v2842, 0
        %v2847 = vsel %vm996, %v2191, 0
        %2849 = vmatprep.subr.bf16.mxu0 0
        %2850 = vmatpush1.bf16.msra.mxu0 %v2847
        %2851 = vmatprep.subr.bf16.mxu0 0
        %2852 = vmatpush1.bf16.msra.mxu0 0
        %2853 = vmatprep.subr.bf16.mxu0 0
        %2854 = vmatpush1.bf16.msra.mxu0 0
        %2855 = vmatprep.subr.bf16.mxu0 0
        %2856 = vmatpush1.bf16.msra.mxu0 0
        %2857 = vmatprep.subr.bf16.mxu0 0
        %2858 = vmatpush1.bf16.msra.mxu0 0
        %2859 = vmatprep.subr.bf16.mxu0 0
        %2860 = vmatpush1.bf16.msra.mxu0 0
        %2861 = vmatprep.subr.bf16.mxu0 0
        %2862 = vmatpush1.bf16.msra.mxu0 0
        %2863 = vmatprep.subr.bf16.mxu0 0
        %2864 = vmatpush1.bf16.msra.mxu0 0
        %2865 = vmatprep.subr.bf16.mxu0 0
        %2866 = vmatpush1.bf16.msra.mxu0 0
        %2867 = vmatprep.subr.bf16.mxu0 0
        %2868 = vmatpush1.bf16.msra.mxu0 0
        %2869 = vmatprep.subr.bf16.mxu0 0
        %2870 = vmatpush1.bf16.msra.mxu0 0
        %2871 = vmatprep.subr.bf16.mxu0 0
        %2872 = vmatpush1.bf16.msra.mxu0 0
        %2873 = vmatprep.subr.bf16.mxu0 0
        %2874 = vmatpush1.bf16.msra.mxu0 0
        %2875 = vmatprep.subr.bf16.mxu0 0
        %2876 = vmatpush1.bf16.msra.mxu0 0
        %2877 = vmatprep.subr.bf16.mxu0 0
        %2878 = vmatpush1.bf16.msra.mxu0 0
        %2879 = vmatprep.subr.bf16.mxu0 0
        %2880 = vmatpush1.bf16.msra.mxu0 0
        %2881 = vmatprep.mubr.bf16.mxu0 0
        %2882 = vmatmul.mubr.bf16.gmra.mrb[0].mxu0 %v2844
        %v2883 = vpop.f32.mrb[0].mxu0
        %v2884 = vadd.f32 0.0, %v2883
        %v2885 = vpop.f32.mrb[0].mxu0
        %v2886 = vpop.f32.mrb[0].mxu0
        %v2887 = vpop.f32.mrb[0].mxu0
        %2888 = vdwg.mxu0
        %v2889 = vmax.f32 %v2884, 0.0
        %v2890 = vadd.f32 %v2889, 1e-06
        %2891 = vrot.lane.b32.xlu0 %v915, 16
        %v2892 = vpop.permute.xlu0 %2891
        %v2894 = vsel %vm932, %v2892, 0
        %2896 = vmatprep.subr.bf16.mxu0 0
        %2897 = vmatpush1.bf16.msra.mxu0 %v2847
        %2898 = vmatprep.subr.bf16.mxu0 0
        %2899 = vmatpush1.bf16.msra.mxu0 0
        %2900 = vmatprep.subr.bf16.mxu0 0
        %2901 = vmatpush1.bf16.msra.mxu0 0
        %2902 = vmatprep.subr.bf16.mxu0 0
        %2903 = vmatpush1.bf16.msra.mxu0 0
        %2904 = vmatprep.subr.bf16.mxu0 0
        %2905 = vmatpush1.bf16.msra.mxu0 0
        %2906 = vmatprep.subr.bf16.mxu0 0
        %2907 = vmatpush1.bf16.msra.mxu0 0
        %2908 = vmatprep.subr.bf16.mxu0 0
        %2909 = vmatpush1.bf16.msra.mxu0 0
        %2910 = vmatprep.subr.bf16.mxu0 0
        %2911 = vmatpush1.bf16.msra.mxu0 0
        %2912 = vmatprep.subr.bf16.mxu0 0
        %2913 = vmatpush1.bf16.msra.mxu0 0
        %2914 = vmatprep.subr.bf16.mxu0 0
        %2915 = vmatpush1.bf16.msra.mxu0 0
        %2916 = vmatprep.subr.bf16.mxu0 0
        %2917 = vmatpush1.bf16.msra.mxu0 0
        %2918 = vmatprep.subr.bf16.mxu0 0
        %2919 = vmatpush1.bf16.msra.mxu0 0
        %2920 = vmatprep.subr.bf16.mxu0 0
        %2921 = vmatpush1.bf16.msra.mxu0 0
        %2922 = vmatprep.subr.bf16.mxu0 0
        %2923 = vmatpush1.bf16.msra.mxu0 0
        %2924 = vmatprep.subr.bf16.mxu0 0
        %2925 = vmatpush1.bf16.msra.mxu0 0
        %2926 = vmatprep.subr.bf16.mxu0 0
        %2927 = vmatpush1.bf16.msra.mxu0 0
        %2928 = vmatprep.mubr.bf16.mxu0 0
        %2929 = vmatmul.mubr.bf16.gmra.mrb[0].mxu0 %v2894
        %v2930 = vpop.f32.mrb[0].mxu0
        %v2931 = vadd.f32 0.0, %v2930
        %v2932 = vpop.f32.mrb[0].mxu0
        %v2933 = vpop.f32.mrb[0].mxu0
        %v2934 = vpop.f32.mrb[0].mxu0
        %2935 = vdwg.mxu0
        %v2936 = vmax.f32 %v2931, 0.0
        %v2937 = vadd.f32 %v2936, 1e-06
        %2938 = vxpose.xlu0.b32.start [1/16] %v2937, 128
        %2939 = vxpose.xlu0.b32.cont [2/16] 0.0, 128
        %2940 = vxpose.xlu0.b32.cont [3/16] 0.0, 128
        %2941 = vxpose.xlu0.b32.cont [4/16] 0.0, 128
        %2942 = vxpose.xlu0.b32.cont [5/16] 0.0, 128
        %2943 = vxpose.xlu0.b32.cont [6/16] 0.0, 128
        %2944 = vxpose.xlu0.b32.cont [7/16] 0.0, 128
        %2945 = vxpose.xlu0.b32.cont [8/16] 0.0, 128
        %2946 = vxpose.xlu0.b32.cont [9/16] 0.0, 128
        %2947 = vxpose.xlu0.b32.cont [10/16] 0.0, 128
        %2948 = vxpose.xlu0.b32.cont [11/16] 0.0, 128
        %2949 = vxpose.xlu0.b32.cont [12/16] 0.0, 128
        %2950 = vxpose.xlu0.b32.cont [13/16] 0.0, 128
        %2951 = vxpose.xlu0.b32.cont [14/16] 0.0, 128
        %2952 = vxpose.xlu0.b32.cont [15/16] 0.0, 128
        %2953 = vxpose.xlu0.b32.end [16/16] 0.0, 128
        %v2954 = vpop.trf.xlu0
        %v2955 = vpop.trf.xlu0
        %v2956 = vpop.trf.xlu0
        %v2957 = vpop.trf.xlu0
        %v2958 = vpop.trf.xlu0
        %v2959 = vpop.trf.xlu0
        %v2960 = vpop.trf.xlu0
        %v2961 = vpop.trf.xlu0
        %v2962 = vpop.trf.xlu0
        %v2963 = vpop.trf.xlu0
        %v2964 = vpop.trf.xlu0
        %v2965 = vpop.trf.xlu0
        %v2966 = vpop.trf.xlu0
        %v2967 = vpop.trf.xlu0
        %v2968 = vpop.trf.xlu0
        %v2969 = vpop.trf.xlu0
        %v2970 = vpack.c.bf16 %v2955, %v2954
        %v2971 = vpack.c.bf16 %v2957, %v2956
        %v2972 = vpack.c.bf16 %v2959, %v2958
        %v2973 = vpack.c.bf16 %v2961, %v2960
        %2974 = vrot.lane.b32.xlu0 %v916, 112
        %v2975 = vpop.permute.xlu0 %2974
        %v2977 = vsel %vm932, %v2970, 0
        %v2980 = vsel %vm932, %v2971, 0
        %v2983 = vsel %vm932, %v2972, 0
        %v2986 = vsel %vm932, %v2973, 0
        %v2989 = vsel %vm996, %v2975, 0
        %2991 = vmatprep.subr.bf16.mxu0 0
        %2992 = vmatpush1.bf16.msra.mxu0 %v2989
        %2993 = vmatprep.subr.bf16.mxu0 0
        %2994 = vmatpush1.bf16.msra.mxu0 0
        %2995 = vmatprep.subr.bf16.mxu0 0
        %2996 = vmatpush1.bf16.msra.mxu0 0
        %2997 = vmatprep.subr.bf16.mxu0 0
        %2998 = vmatpush1.bf16.msra.mxu0 0
        %2999 = vmatprep.subr.bf16.mxu0 0
        %3000 = vmatpush1.bf16.msra.mxu0 0
        %3001 = vmatprep.subr.bf16.mxu0 0
        %3002 = vmatpush1.bf16.msra.mxu0 0
        %3003 = vmatprep.subr.bf16.mxu0 0
        %3004 = vmatpush1.bf16.msra.mxu0 0
        %3005 = vmatprep.subr.bf16.mxu0 0
        %3006 = vmatpush1.bf16.msra.mxu0 0
        %3007 = vmatprep.subr.bf16.mxu0 0
        %3008 = vmatpush1.bf16.msra.mxu0 0
        %3009 = vmatprep.subr.bf16.mxu0 0
        %3010 = vmatpush1.bf16.msra.mxu0 0
        %3011 = vmatprep.subr.bf16.mxu0 0
        %3012 = vmatpush1.bf16.msra.mxu0 0
        %3013 = vmatprep.subr.bf16.mxu0 0
        %3014 = vmatpush1.bf16.msra.mxu0 0
        %3015 = vmatprep.subr.bf16.mxu0 0
        %3016 = vmatpush1.bf16.msra.mxu0 0
        %3017 = vmatprep.subr.bf16.mxu0 0
        %3018 = vmatpush1.bf16.msra.mxu0 0
        %3019 = vmatprep.subr.bf16.mxu0 0
        %3020 = vmatpush1.bf16.msra.mxu0 0
        %3021 = vmatprep.subr.bf16.mxu0 0
        %3022 = vmatpush1.bf16.msra.mxu0 0
        %3023 = vmatprep.mubr.bf16.mxu0 0
        %3024 = vmatmul.mubr.bf16.gmra.mrb[0].mxu0 %v2977
        %v3025 = vpop.f32.mrb[0].mxu0
        %v3026 = vadd.f32 0.0, %v3025
        %v3027 = vpop.f32.mrb[0].mxu0
        %v3028 = vpop.f32.mrb[0].mxu0
        %v3029 = vadd.f32 0.0, %v3028
        %v3030 = vpop.f32.mrb[0].mxu0
        %3031 = vmatprep.mubr.bf16.mxu0 0
        %3032 = vmatmul.mubr.bf16.gmra.mrb[0].mxu0 %v2980
        %v3033 = vpop.f32.mrb[0].mxu0
        %v3034 = vadd.f32 0.0, %v3033
        %v3035 = vpop.f32.mrb[0].mxu0
        %v3036 = vpop.f32.mrb[0].mxu0
        %v3037 = vadd.f32 0.0, %v3036
        %v3038 = vpop.f32.mrb[0].mxu0
        %3039 = vmatprep.mubr.bf16.mxu0 0
        %3040 = vmatmul.mubr.bf16.gmra.mrb[0].mxu0 %v2983
        %v3041 = vpop.f32.mrb[0].mxu0
        %v3042 = vadd.f32 0.0, %v3041
        %v3043 = vpop.f32.mrb[0].mxu0
        %v3044 = vpop.f32.mrb[0].mxu0
        %v3045 = vadd.f32 0.0, %v3044
        %v3046 = vpop.f32.mrb[0].mxu0
        %3047 = vmatprep.mubr.bf16.mxu0 0
        %3048 = vmatmul.mubr.bf16.gmra.mrb[0].mxu0 %v2986
        %v3049 = vpop.f32.mrb[0].mxu0
        %v3050 = vadd.f32 0.0, %v3049
        %v3051 = vpop.f32.mrb[0].mxu0
        %v3052 = vpop.f32.mrb[0].mxu0
        %v3053 = vadd.f32 0.0, %v3052
        %v3054 = vpop.f32.mrb[0].mxu0
        %3055 = vdwg.mxu0
        %v3056 = vsel %vm2406, %v2937, 0.0
        %v3057 = vrot.slane %v3056, 4
        %v3058 = vadd.f32 %v3056, %v3057
        %v3059 = vrot.slane %v3058, 2
        %v3060 = vadd.f32 %v3058, %v3059
        %v3061 = vrot.slane %v3060, 1
        %v3062 = vadd.f32 %v3060, %v3061
        %v3063 = vpack.c.bf16 %v2890, %v2890
        %v3064 = vpack.c.bf16 %v3029, %v3026
        %v3065 = vpack.c.bf16 %v3037, %v3034
        %v3066 = vpack.c.bf16 %v3045, %v3042
        %v3067 = vpack.c.bf16 %v3053, %v3050
        %v3069 = vsel %vm2406, %v3063, 0
        %3071 = vmatprep.subr.bf16.mxu0 0
        %3072 = vmatpush1.bf16.msra.mxu0 %v3064
        %3073 = vmatprep.subr.bf16.mxu0 0
        %3074 = vmatpush1.bf16.msra.mxu0 %v3065
        %3075 = vmatprep.subr.bf16.mxu0 0
        %3076 = vmatpush1.bf16.msra.mxu0 %v3066
        %3077 = vmatprep.subr.bf16.mxu0 0
        %3078 = vmatpush1.bf16.msra.mxu0 %v3067
        %3079 = vmatprep.subr.bf16.mxu0 0
        %3080 = vmatpush1.bf16.msra.mxu0 0
        %3081 = vmatprep.subr.bf16.mxu0 0
        %3082 = vmatpush1.bf16.msra.mxu0 0
        %3083 = vmatprep.subr.bf16.mxu0 0
        %3084 = vmatpush1.bf16.msra.mxu0 0
        %3085 = vmatprep.subr.bf16.mxu0 0
        %3086 = vmatpush1.bf16.msra.mxu0 0
        %3087 = vmatprep.subr.bf16.mxu0 0
        %3088 = vmatpush1.bf16.msra.mxu0 0
        %3089 = vmatprep.subr.bf16.mxu0 0
        %3090 = vmatpush1.bf16.msra.mxu0 0
        %3091 = vmatprep.subr.bf16.mxu0 0
        %3092 = vmatpush1.bf16.msra.mxu0 0
        %3093 = vmatprep.subr.bf16.mxu0 0
        %3094 = vmatpush1.bf16.msra.mxu0 0
        %3095 = vmatprep.subr.bf16.mxu0 0
        %3096 = vmatpush1.bf16.msra.mxu0 0
        %3097 = vmatprep.subr.bf16.mxu0 0
        %3098 = vmatpush1.bf16.msra.mxu0 0
        %3099 = vmatprep.subr.bf16.mxu0 0
        %3100 = vmatpush1.bf16.msra.mxu0 0
        %3101 = vmatprep.subr.bf16.mxu0 0
        %3102 = vmatpush1.bf16.msra.mxu0 0
        %3103 = vmatprep.mubr.bf16.mxu0 0
        %3104 = vmatmul.mubr.bf16.gmra.mrb[0].mxu0 %v3069
        %v3105 = vpop.f32.mrb[0].mxu0
        %v3106 = vadd.f32 0.0, %v3105
        %v3107 = vpop.f32.mrb[0].mxu0
        %v3108 = vpop.f32.mrb[0].mxu0
        %v3109 = vpop.f32.mrb[0].mxu0
        %3110 = vdwg.mxu0
        %v3111 = vmul.f32 %v2890, %v3062
        %v3112 = vsel %vm2406, %v3111, 0.0
        %3113 = vadd.xlane.f32.xlu0 %v3112
        %v3114 = vpop.xlane.xlu0 %3113
        %v3115 = vadd.f32 %v3114, 1e-06
        %v3116 = vrcp.pop %v3115
        %v3117 = vmul.f32 %v3106, %v3116
        %v3118 = vpack.c.bf16 %v3117, %v3117
        %v3120 = vsel %vm932, %v3118, 0
        %v3123 = vsel %vm996, %v927, 0
        %3125 = vmatprep.subr.bf16.mxu0 0
        %3126 = vmatpush1.bf16.msra.mxu0 %v3123
        %3127 = vmatprep.subr.bf16.mxu0 0
        %3128 = vmatpush1.bf16.msra.mxu0 0
        %3129 = vmatprep.subr.bf16.mxu0 0
        %3130 = vmatpush1.bf16.msra.mxu0 0
        %3131 = vmatprep.subr.bf16.mxu0 0
        %3132 = vmatpush1.bf16.msra.mxu0 0
        %3133 = vmatprep.subr.bf16.mxu0 0
        %3134 = vmatpush1.bf16.msra.mxu0 0
        %3135 = vmatprep.subr.bf16.mxu0 0
        %3136 = vmatpush1.bf16.msra.mxu0 0
        %3137 = vmatprep.subr.bf16.mxu0 0
        %3138 = vmatpush1.bf16.msra.mxu0 0
        %3139 = vmatprep.subr.bf16.mxu0 0
        %3140 = vmatpush1.bf16.msra.mxu0 0
        %3141 = vmatprep.subr.bf16.mxu0 0
        %3142 = vmatpush1.bf16.msra.mxu0 0
        %3143 = vmatprep.subr.bf16.mxu0 0
        %3144 = vmatpush1.bf16.msra.mxu0 0
        %3145 = vmatprep.subr.bf16.mxu0 0
        %3146 = vmatpush1.bf16.msra.mxu0 0
        %3147 = vmatprep.subr.bf16.mxu0 0
        %3148 = vmatpush1.bf16.msra.mxu0 0
        %3149 = vmatprep.subr.bf16.mxu0 0
        %3150 = vmatpush1.bf16.msra.mxu0 0
        %3151 = vmatprep.subr.bf16.mxu0 0
        %3152 = vmatpush1.bf16.msra.mxu0 0
        %3153 = vmatprep.subr.bf16.mxu0 0
        %3154 = vmatpush1.bf16.msra.mxu0 0
        %3155 = vmatprep.subr.bf16.mxu0 0
        %3156 = vmatpush1.bf16.msra.mxu0 0
        %3157 = vmatprep.mubr.bf16.mxu0 0
        %3158 = vmatmul.mubr.bf16.gmra.mrb[0].mxu0 %v3120
        %v3159 = vpop.f32.mrb[0].mxu0
        %v3160 = vadd.f32 0.0, %v3159
        %v3161 = vpop.f32.mrb[0].mxu0
        %v3162 = vpop.f32.mrb[0].mxu0
        %v3163 = vpop.f32.mrb[0].mxu0
        %3164 = vdwg.mxu0
        %v3165 = vadd.f32 %v2836, %v3160
        %3166 = vrot.lane.b32.xlu0 %v915, 40
        %v3167 = vpop.permute.xlu0 %3166
        %v3169 = vsel %vm932, %v3167, 0
        %v3172 = vsel %vm996, %v2192, 0
        %3174 = vmatprep.subr.bf16.mxu0 0
        %3175 = vmatpush1.bf16.msra.mxu0 %v3172
        %3176 = vmatprep.subr.bf16.mxu0 0
        %3177 = vmatpush1.bf16.msra.mxu0 0
        %3178 = vmatprep.subr.bf16.mxu0 0
        %3179 = vmatpush1.bf16.msra.mxu0 0
        %3180 = vmatprep.subr.bf16.mxu0 0
        %3181 = vmatpush1.bf16.msra.mxu0 0
        %3182 = vmatprep.subr.bf16.mxu0 0
        %3183 = vmatpush1.bf16.msra.mxu0 0
        %3184 = vmatprep.subr.bf16.mxu0 0
        %3185 = vmatpush1.bf16.msra.mxu0 0
        %3186 = vmatprep.subr.bf16.mxu0 0
        %3187 = vmatpush1.bf16.msra.mxu0 0
        %3188 = vmatprep.subr.bf16.mxu0 0
        %3189 = vmatpush1.bf16.msra.mxu0 0
        %3190 = vmatprep.subr.bf16.mxu0 0
        %3191 = vmatpush1.bf16.msra.mxu0 0
        %3192 = vmatprep.subr.bf16.mxu0 0
        %3193 = vmatpush1.bf16.msra.mxu0 0
        %3194 = vmatprep.subr.bf16.mxu0 0
        %3195 = vmatpush1.bf16.msra.mxu0 0
        %3196 = vmatprep.subr.bf16.mxu0 0
        %3197 = vmatpush1.bf16.msra.mxu0 0
        %3198 = vmatprep.subr.bf16.mxu0 0
        %3199 = vmatpush1.bf16.msra.mxu0 0
        %3200 = vmatprep.subr.bf16.mxu0 0
        %3201 = vmatpush1.bf16.msra.mxu0 0
        %3202 = vmatprep.subr.bf16.mxu0 0
        %3203 = vmatpush1.bf16.msra.mxu0 0
        %3204 = vmatprep.subr.bf16.mxu0 0
        %3205 = vmatpush1.bf16.msra.mxu0 0
        %3206 = vmatprep.mubr.bf16.mxu0 0
        %3207 = vmatmul.mubr.bf16.gmra.mrb[0].mxu0 %v3169
        %v3208 = vpop.f32.mrb[0].mxu0
        %v3209 = vadd.f32 0.0, %v3208
        %v3210 = vpop.f32.mrb[0].mxu0
        %v3211 = vpop.f32.mrb[0].mxu0
        %v3212 = vpop.f32.mrb[0].mxu0
        %3213 = vdwg.mxu0
        %v3214 = vmax.f32 %v3209, 0.0
        %v3215 = vadd.f32 %v3214, 1e-06
        %3216 = vrot.lane.b32.xlu0 %v915, 8
        %v3217 = vpop.permute.xlu0 %3216
        %v3219 = vsel %vm932, %v3217, 0
        %3221 = vmatprep.subr.bf16.mxu0 0
        %3222 = vmatpush1.bf16.msra.mxu0 %v3172
        %3223 = vmatprep.subr.bf16.mxu0 0
        %3224 = vmatpush1.bf16.msra.mxu0 0
        %3225 = vmatprep.subr.bf16.mxu0 0
        %3226 = vmatpush1.bf16.msra.mxu0 0
        %3227 = vmatprep.subr.bf16.mxu0 0
        %3228 = vmatpush1.bf16.msra.mxu0 0
        %3229 = vmatprep.subr.bf16.mxu0 0
        %3230 = vmatpush1.bf16.msra.mxu0 0
        %3231 = vmatprep.subr.bf16.mxu0 0
        %3232 = vmatpush1.bf16.msra.mxu0 0
        %3233 = vmatprep.subr.bf16.mxu0 0
        %3234 = vmatpush1.bf16.msra.mxu0 0
        %3235 = vmatprep.subr.bf16.mxu0 0
        %3236 = vmatpush1.bf16.msra.mxu0 0
        %3237 = vmatprep.subr.bf16.mxu0 0
        %3238 = vmatpush1.bf16.msra.mxu0 0
        %3239 = vmatprep.subr.bf16.mxu0 0
        %3240 = vmatpush1.bf16.msra.mxu0 0
        %3241 = vmatprep.subr.bf16.mxu0 0
        %3242 = vmatpush1.bf16.msra.mxu0 0
        %3243 = vmatprep.subr.bf16.mxu0 0
        %3244 = vmatpush1.bf16.msra.mxu0 0
        %3245 = vmatprep.subr.bf16.mxu0 0
        %3246 = vmatpush1.bf16.msra.mxu0 0
        %3247 = vmatprep.subr.bf16.mxu0 0
        %3248 = vmatpush1.bf16.msra.mxu0 0
        %3249 = vmatprep.subr.bf16.mxu0 0
        %3250 = vmatpush1.bf16.msra.mxu0 0
        %3251 = vmatprep.subr.bf16.mxu0 0
        %3252 = vmatpush1.bf16.msra.mxu0 0
        %3253 = vmatprep.mubr.bf16.mxu0 0
        %3254 = vmatmul.mubr.bf16.gmra.mrb[0].mxu0 %v3219
        %v3255 = vpop.f32.mrb[0].mxu0
        %v3256 = vadd.f32 0.0, %v3255
        %v3257 = vpop.f32.mrb[0].mxu0
        %v3258 = vpop.f32.mrb[0].mxu0
        %v3259 = vpop.f32.mrb[0].mxu0
        %3260 = vdwg.mxu0
        %v3261 = vmax.f32 %v3256, 0.0
        %v3262 = vadd.f32 %v3261, 1e-06
        %3263 = vxpose.xlu0.b32.start [1/16] %v3262, 128
        %3264 = vxpose.xlu0.b32.cont [2/16] 0.0, 128
        %3265 = vxpose.xlu0.b32.cont [3/16] 0.0, 128
        %3266 = vxpose.xlu0.b32.cont [4/16] 0.0, 128
        %3267 = vxpose.xlu0.b32.cont [5/16] 0.0, 128
        %3268 = vxpose.xlu0.b32.cont [6/16] 0.0, 128
        %3269 = vxpose.xlu0.b32.cont [7/16] 0.0, 128
        %3270 = vxpose.xlu0.b32.cont [8/16] 0.0, 128
        %3271 = vxpose.xlu0.b32.cont [9/16] 0.0, 128
        %3272 = vxpose.xlu0.b32.cont [10/16] 0.0, 128
        %3273 = vxpose.xlu0.b32.cont [11/16] 0.0, 128
        %3274 = vxpose.xlu0.b32.cont [12/16] 0.0, 128
        %3275 = vxpose.xlu0.b32.cont [13/16] 0.0, 128
        %3276 = vxpose.xlu0.b32.cont [14/16] 0.0, 128
        %3277 = vxpose.xlu0.b32.cont [15/16] 0.0, 128
        %3278 = vxpose.xlu0.b32.end [16/16] 0.0, 128
        %v3279 = vpop.trf.xlu0
        %v3280 = vpop.trf.xlu0
        %v3281 = vpop.trf.xlu0
        %v3282 = vpop.trf.xlu0
        %v3283 = vpop.trf.xlu0
        %v3284 = vpop.trf.xlu0
        %v3285 = vpop.trf.xlu0
        %v3286 = vpop.trf.xlu0
        %v3287 = vpop.trf.xlu0
        %v3288 = vpop.trf.xlu0
        %v3289 = vpop.trf.xlu0
        %v3290 = vpop.trf.xlu0
        %v3291 = vpop.trf.xlu0
        %v3292 = vpop.trf.xlu0
        %v3293 = vpop.trf.xlu0
        %v3294 = vpop.trf.xlu0
        %v3295 = vpack.c.bf16 %v3280, %v3279
        %v3296 = vpack.c.bf16 %v3282, %v3281
        %v3297 = vpack.c.bf16 %v3284, %v3283
        %v3298 = vpack.c.bf16 %v3286, %v3285
        %3299 = vrot.lane.b32.xlu0 %v916, 104
        %v3300 = vpop.permute.xlu0 %3299
        %v3302 = vsel %vm932, %v3295, 0
        %v3305 = vsel %vm932, %v3296, 0
        %v3308 = vsel %vm932, %v3297, 0
        %v3311 = vsel %vm932, %v3298, 0
        %v3314 = vsel %vm996, %v3300, 0
        %3316 = vmatprep.subr.bf16.mxu0 0
        %3317 = vmatpush1.bf16.msra.mxu0 %v3314
        %3318 = vmatprep.subr.bf16.mxu0 0
        %3319 = vmatpush1.bf16.msra.mxu0 0
        %3320 = vmatprep.subr.bf16.mxu0 0
        %3321 = vmatpush1.bf16.msra.mxu0 0
        %3322 = vmatprep.subr.bf16.mxu0 0
        %3323 = vmatpush1.bf16.msra.mxu0 0
        %3324 = vmatprep.subr.bf16.mxu0 0
        %3325 = vmatpush1.bf16.msra.mxu0 0
        %3326 = vmatprep.subr.bf16.mxu0 0
        %3327 = vmatpush1.bf16.msra.mxu0 0
        %3328 = vmatprep.subr.bf16.mxu0 0
        %3329 = vmatpush1.bf16.msra.mxu0 0
        %3330 = vmatprep.subr.bf16.mxu0 0
        %3331 = vmatpush1.bf16.msra.mxu0 0
        %3332 = vmatprep.subr.bf16.mxu0 0
        %3333 = vmatpush1.bf16.msra.mxu0 0
        %3334 = vmatprep.subr.bf16.mxu0 0
        %3335 = vmatpush1.bf16.msra.mxu0 0
        %3336 = vmatprep.subr.bf16.mxu0 0
        %3337 = vmatpush1.bf16.msra.mxu0 0
        %3338 = vmatprep.subr.bf16.mxu0 0
        %3339 = vmatpush1.bf16.msra.mxu0 0
        %3340 = vmatprep.subr.bf16.mxu0 0
        %3341 = vmatpush1.bf16.msra.mxu0 0
        %3342 = vmatprep.subr.bf16.mxu0 0
        %3343 = vmatpush1.bf16.msra.mxu0 0
        %3344 = vmatprep.subr.bf16.mxu0 0
        %3345 = vmatpush1.bf16.msra.mxu0 0
        %3346 = vmatprep.subr.bf16.mxu0 0
        %3347 = vmatpush1.bf16.msra.mxu0 0
        %3348 = vmatprep.mubr.bf16.mxu0 0
        %3349 = vmatmul.mubr.bf16.gmra.mrb[0].mxu0 %v3302
        %v3350 = vpop.f32.mrb[0].mxu0
        %v3351 = vadd.f32 0.0, %v3350
        %v3352 = vpop.f32.mrb[0].mxu0
        %v3353 = vpop.f32.mrb[0].mxu0
        %v3354 = vadd.f32 0.0, %v3353
        %v3355 = vpop.f32.mrb[0].mxu0
        %3356 = vmatprep.mubr.bf16.mxu0 0
        %3357 = vmatmul.mubr.bf16.gmra.mrb[0].mxu0 %v3305
        %v3358 = vpop.f32.mrb[0].mxu0
        %v3359 = vadd.f32 0.0, %v3358
        %v3360 = vpop.f32.mrb[0].mxu0
        %v3361 = vpop.f32.mrb[0].mxu0
        %v3362 = vadd.f32 0.0, %v3361
        %v3363 = vpop.f32.mrb[0].mxu0
        %3364 = vmatprep.mubr.bf16.mxu0 0
        %3365 = vmatmul.mubr.bf16.gmra.mrb[0].mxu0 %v3308
        %v3366 = vpop.f32.mrb[0].mxu0
        %v3367 = vadd.f32 0.0, %v3366
        %v3368 = vpop.f32.mrb[0].mxu0
        %v3369 = vpop.f32.mrb[0].mxu0
        %v3370 = vadd.f32 0.0, %v3369
        %v3371 = vpop.f32.mrb[0].mxu0
        %3372 = vmatprep.mubr.bf16.mxu0 0
        %3373 = vmatmul.mubr.bf16.gmra.mrb[0].mxu0 %v3311
        %v3374 = vpop.f32.mrb[0].mxu0
        %v3375 = vadd.f32 0.0, %v3374
        %v3376 = vpop.f32.mrb[0].mxu0
        %v3377 = vpop.f32.mrb[0].mxu0
        %v3378 = vadd.f32 0.0, %v3377
        %v3379 = vpop.f32.mrb[0].mxu0
        %3380 = vdwg.mxu0
        %v3381 = vsel %vm2406, %v3262, 0.0
        %v3382 = vrot.slane %v3381, 4
        %v3383 = vadd.f32 %v3381, %v3382
        %v3384 = vrot.slane %v3383, 2
        %v3385 = vadd.f32 %v3383, %v3384
        %v3386 = vrot.slane %v3385, 1
        %v3387 = vadd.f32 %v3385, %v3386
        %v3388 = vpack.c.bf16 %v3215, %v3215
        %v3389 = vpack.c.bf16 %v3354, %v3351
        %v3390 = vpack.c.bf16 %v3362, %v3359
        %v3391 = vpack.c.bf16 %v3370, %v3367
        %v3392 = vpack.c.bf16 %v3378, %v3375
        %v3394 = vsel %vm2406, %v3388, 0
        %3396 = vmatprep.subr.bf16.mxu0 0
        %3397 = vmatpush1.bf16.msra.mxu0 %v3389
        %3398 = vmatprep.subr.bf16.mxu0 0
        %3399 = vmatpush1.bf16.msra.mxu0 %v3390
        %3400 = vmatprep.subr.bf16.mxu0 0
        %3401 = vmatpush1.bf16.msra.mxu0 %v3391
        %3402 = vmatprep.subr.bf16.mxu0 0
        %3403 = vmatpush1.bf16.msra.mxu0 %v3392
        %3404 = vmatprep.subr.bf16.mxu0 0
        %3405 = vmatpush1.bf16.msra.mxu0 0
        %3406 = vmatprep.subr.bf16.mxu0 0
        %3407 = vmatpush1.bf16.msra.mxu0 0
        %3408 = vmatprep.subr.bf16.mxu0 0
        %3409 = vmatpush1.bf16.msra.mxu0 0
        %3410 = vmatprep.subr.bf16.mxu0 0
        %3411 = vmatpush1.bf16.msra.mxu0 0
        %3412 = vmatprep.subr.bf16.mxu0 0
        %3413 = vmatpush1.bf16.msra.mxu0 0
        %3414 = vmatprep.subr.bf16.mxu0 0
        %3415 = vmatpush1.bf16.msra.mxu0 0
        %3416 = vmatprep.subr.bf16.mxu0 0
        %3417 = vmatpush1.bf16.msra.mxu0 0
        %3418 = vmatprep.subr.bf16.mxu0 0
        %3419 = vmatpush1.bf16.msra.mxu0 0
        %3420 = vmatprep.subr.bf16.mxu0 0
        %3421 = vmatpush1.bf16.msra.mxu0 0
        %3422 = vmatprep.subr.bf16.mxu0 0
        %3423 = vmatpush1.bf16.msra.mxu0 0
        %3424 = vmatprep.subr.bf16.mxu0 0
        %3425 = vmatpush1.bf16.msra.mxu0 0
        %3426 = vmatprep.subr.bf16.mxu0 0
        %3427 = vmatpush1.bf16.msra.mxu0 0
        %3428 = vmatprep.mubr.bf16.mxu0 0
        %3429 = vmatmul.mubr.bf16.gmra.mrb[0].mxu0 %v3394
        %v3430 = vpop.f32.mrb[0].mxu0
        %v3431 = vadd.f32 0.0, %v3430
        %v3432 = vpop.f32.mrb[0].mxu0
        %v3433 = vpop.f32.mrb[0].mxu0
        %v3434 = vpop.f32.mrb[0].mxu0
        %3435 = vdwg.mxu0
        %v3436 = vmul.f32 %v3215, %v3387
        %v3437 = vsel %vm2406, %v3436, 0.0
        %3438 = vadd.xlane.f32.xlu0 %v3437
        %v3439 = vpop.xlane.xlu0 %3438
        %v3440 = vadd.f32 %v3439, 1e-06
        %v3441 = vrcp.pop %v3440
        %v3442 = vmul.f32 %v3431, %v3441
        %v3443 = vpack.c.bf16 %v3442, %v3442
        %v3445 = vsel %vm932, %v3443, 0
        %v3448 = vsel %vm996, %v928, 0
        %3450 = vmatprep.subr.bf16.mxu0 0
        %3451 = vmatpush1.bf16.msra.mxu0 %v3448
        %3452 = vmatprep.subr.bf16.mxu0 0
        %3453 = vmatpush1.bf16.msra.mxu0 0
        %3454 = vmatprep.subr.bf16.mxu0 0
        %3455 = vmatpush1.bf16.msra.mxu0 0
        %3456 = vmatprep.subr.bf16.mxu0 0
        %3457 = vmatpush1.bf16.msra.mxu0 0
        %3458 = vmatprep.subr.bf16.mxu0 0
        %3459 = vmatpush1.bf16.msra.mxu0 0
        %3460 = vmatprep.subr.bf16.mxu0 0
        %3461 = vmatpush1.bf16.msra.mxu0 0
        %3462 = vmatprep.subr.bf16.mxu0 0
        %3463 = vmatpush1.bf16.msra.mxu0 0
        %3464 = vmatprep.subr.bf16.mxu0 0
        %3465 = vmatpush1.bf16.msra.mxu0 0
        %3466 = vmatprep.subr.bf16.mxu0 0
        %3467 = vmatpush1.bf16.msra.mxu0 0
        %3468 = vmatprep.subr.bf16.mxu0 0
        %3469 = vmatpush1.bf16.msra.mxu0 0
        %3470 = vmatprep.subr.bf16.mxu0 0
        %3471 = vmatpush1.bf16.msra.mxu0 0
        %3472 = vmatprep.subr.bf16.mxu0 0
        %3473 = vmatpush1.bf16.msra.mxu0 0
        %3474 = vmatprep.subr.bf16.mxu0 0
        %3475 = vmatpush1.bf16.msra.mxu0 0
        %3476 = vmatprep.subr.bf16.mxu0 0
        %3477 = vmatpush1.bf16.msra.mxu0 0
        %3478 = vmatprep.subr.bf16.mxu0 0
        %3479 = vmatpush1.bf16.msra.mxu0 0
        %3480 = vmatprep.subr.bf16.mxu0 0
        %3481 = vmatpush1.bf16.msra.mxu0 0
        %3482 = vmatprep.mubr.bf16.mxu0 0
        %3483 = vmatmul.mubr.bf16.gmra.mrb[0].mxu0 %v3445
        %v3484 = vpop.f32.mrb[0].mxu0
        %v3485 = vadd.f32 0.0, %v3484
        %v3486 = vpop.f32.mrb[0].mxu0
        %v3487 = vpop.f32.mrb[0].mxu0
        %v3488 = vpop.f32.mrb[0].mxu0
        %3489 = vdwg.mxu0
        %v3490 = vadd.f32 %v3165, %v3485
        %v3491 = vld [vmem:[%s4] sm:$0x7]
        %3493 = vset.pattern.permute.xlu0 2
        %3494 = vperm.xlu0 %3493, %v761
        %v3495 = vpop.permute.xlu0 %3494
        %v3497 = vmul.f32 %v3495, %v3491
        %3499 = vset.pattern.permute.xlu0 3
        %3500 = vperm.xlu0 %3499, %v767
        %v3501 = vpop.permute.xlu0 %3500
        %v3504 = vrot.slane %v3491, 1
        %v3506 = vmul.f32 %v3501, %v3504
        %v3507 = vadd.f32 %v3497, %v3506
        %3509 = vset.pattern.permute.xlu0 3
        %3510 = vperm.xlu0 %3509, %v772
        %v3511 = vpop.permute.xlu0 %3510
        %v3513 = vrot.slane %v3491, 2
        %v3515 = vmul.f32 %v3511, %v3513
        %v3516 = vadd.f32 %v3507, %v3515
        %3517 = vrot.lane.b32.xlu0 %v761, 126
        %v3518 = vpop.permute.xlu0 %3517
        %s3519 = vtos %v3518
        %v3520 = vstv %s3519
        %v3522 = vmul.f32 %v3520, %v1559
        %3523 = vrot.lane.b32.xlu0 %v767, 125
        %v3524 = vpop.permute.xlu0 %3523
        %s3525 = vtos %v3524
        %v3526 = vstv %s3525
        %v3528 = vmul.f32 %v3526, %v2188
        %v3529 = vadd.f32 %v3522, %v3528
        %3530 = vrot.lane.b32.xlu0 %v772, 125
        %v3531 = vpop.permute.xlu0 %3530
        %s3532 = vtos %v3531
        %v3533 = vstv %s3532
        %v3535 = vmul.f32 %v3533, %v3490
        %v3536 = vadd.f32 %v3529, %v3535
        %v3537 = vlaneseq
        %v3538 = vshrl.u32 %v3537, 7
        %v3539 = vsub.s32 0, %v3538
        %v3540 = vrot.slane %v3516, %v3539
        %v3541 = vadd.f32 %v3536, %v3540
        %v3542 = vadd.f32 %v518, %v3541
        %v3543 = vld [vmem:[%s14] sm:$0x1]
        %v3544 = vld [vmem:[%s15] sm:$0x1]
        %v3545 = vsel %vm520, %v3542, 0.0
        %3546 = vadd.xlane.f32.xlu0 %v3545
        %v3547 = vpop.xlane.xlu0 %3546
        %v3548 = vrcp.pop 32.0
        %v3549 = vmul.f32 %v3547, %v3548
        %v3550 = vsub.f32 %v3542, %v3549
        %v3551 = vmul.f32 %v3550, %v3550
        %v3552 = vsel %vm520, %v3551, 0.0
        %3553 = vadd.xlane.f32.xlu0 %v3552
        %v3554 = vpop.xlane.xlu0 %3553
        %v3555 = vmul.f32 %v3554, %v3548
        %v3556 = vadd.f32 %v3555, 1e-05
        %v3557 = vrsqrt.pop %v3556
        %v3558 = vmul.f32 %v3550, %v3557
        %v3559 = vlaneseq
        %v3560 = vshrl.u32 %v3559, 7
        %v3561 = vsub.s32 0, %v3560
        %v3562 = vrot.slane %v3543, %v3561
        %v3563 = vmul.f32 %v3558, %v3562
        %v3564 = vlaneseq
        %v3565 = vshrl.u32 %v3564, 7
        %v3566 = vsub.s32 0, %v3565
        %v3567 = vrot.slane %v3544, %v3566
        %v3568 = vadd.f32 %v3563, %v3567
        %v3569 = vpack.c.bf16 %v3568, %v3568
        %v3570 = vld [vmem:[%s10] sm:$0xf]
        %v3571 = vld [vmem:[%s10 + $0x4] sm:$0xf]
        %v3572 = vld [vmem:[%s10 + $0x8] sm:$0xf]
        %v3573 = vld [vmem:[%s10 + $0xc] sm:$0xf]
        %v3574 = vld [vmem:[%s11] sm:$0x1]
        %v3576 = vlaneseq
        %v3577 = vshrl.u32 %v3576, 7
        %v3578 = vsub.s32 0, %v3577
        %v3579 = vrot.slane %v3574, %v3578
        %v3585 = vunpack.c.l.b16 %v3570
        %v3586 = vunpack.c.l.b16 %v3571
        %v3587 = vunpack.c.l.b16 %v3572
        %v3588 = vunpack.c.l.b16 %v3573
        %v3589 = vpack.c.b16 %v3586, %v3585
        %v3590 = vpack.c.b16 %v3588, %v3587
        %v3594 = vsel %vm520, %v3569, 0
        %3596 = vmatprep.subr.bf16.mxu0 0
        %3597 = vmatpush1.bf16.msra.mxu0 %v3589
        %3598 = vmatprep.subr.bf16.mxu0 0
        %3599 = vmatpush1.bf16.msra.mxu0 %v3590
        %3600 = vmatprep.subr.bf16.mxu0 0
        %3601 = vmatpush1.bf16.msra.mxu0 0
        %3602 = vmatprep.subr.bf16.mxu0 0
        %3603 = vmatpush1.bf16.msra.mxu0 0
        %3604 = vmatprep.subr.bf16.mxu0 0
        %3605 = vmatpush1.bf16.msra.mxu0 0
        %3606 = vmatprep.subr.bf16.mxu0 0
        %3607 = vmatpush1.bf16.msra.mxu0 0
        %3608 = vmatprep.subr.bf16.mxu0 0
        %3609 = vmatpush1.bf16.msra.mxu0 0
        %3610 = vmatprep.subr.bf16.mxu0 0
        %3611 = vmatpush1.bf16.msra.mxu0 0
        %3612 = vmatprep.subr.bf16.mxu0 0
        %3613 = vmatpush1.bf16.msra.mxu0 0
        %3614 = vmatprep.subr.bf16.mxu0 0
        %3615 = vmatpush1.bf16.msra.mxu0 0
        %3616 = vmatprep.subr.bf16.mxu0 0
        %3617 = vmatpush1.bf16.msra.mxu0 0
        %3618 = vmatprep.subr.bf16.mxu0 0
        %3619 = vmatpush1.bf16.msra.mxu0 0
        %3620 = vmatprep.subr.bf16.mxu0 0
        %3621 = vmatpush1.bf16.msra.mxu0 0
        %3622 = vmatprep.subr.bf16.mxu0 0
        %3623 = vmatpush1.bf16.msra.mxu0 0
        %3624 = vmatprep.subr.bf16.mxu0 0
        %3625 = vmatpush1.bf16.msra.mxu0 0
        %3626 = vmatprep.subr.bf16.mxu0 0
        %3627 = vmatpush1.bf16.msra.mxu0 0
        %3628 = vmatprep.mubr.bf16.mxu0 0
        %3629 = vmatmul.mubr.bf16.gmra.mrb[0].mxu0 %v3594
        %v3630 = vpop.f32.mrb[0].mxu0
        %v3631 = vadd.f32 %v3579, %v3630
        %v3632 = vpop.f32.mrb[0].mxu0
        %v3633 = vpop.f32.mrb[0].mxu0
        %v3634 = vpop.f32.mrb[0].mxu0
        %3635 = vdwg.mxu0
        %v3636 = vmul.f32 %v3631, %v3631
        %v3637 = vmul.f32 %v3631, %v3636
        %v3638 = vmul.f32 %v3637, 0.044715
        %v3639 = vadd.f32 %v3631, %v3638
        %v3640 = vmul.f32 %v3639, 0.7978846
        %v3641 = vtanh.pop %v3640
        %v3642 = vadd.f32 %v3641, 1.0
        %v3643 = vmul.f32 %v3642, 0.5
        %v3644 = vmul.f32 %v3631, %v3643
        %v3645 = vpack.c.bf16 %v3644, %v3644
        %v3646 = vld [vmem:[%s12] sm:$0xf]
        %v3647 = vld [vmem:[%s12 + $0x4] sm:$0xf]
        %v3648 = vld [vmem:[%s12 + $0x8] sm:$0xf]
        %v3649 = vld [vmem:[%s12 + $0xc] sm:$0xf]
        %v3650 = vld [vmem:[%s12 + $0x10] sm:$0xf]
        %v3651 = vld [vmem:[%s12 + $0x14] sm:$0xf]
        %v3652 = vld [vmem:[%s12 + $0x18] sm:$0xf]
        %v3653 = vld [vmem:[%s12 + $0x1c] sm:$0xf]
        %v3654 = vld [vmem:[%s13] sm:$0x1]
        %v3656 = vlaneseq
        %v3657 = vshrl.u32 %v3656, 7
        %v3658 = vsub.s32 0, %v3657
        %v3659 = vrot.slane %v3654, %v3658
        %v3669 = vunpack.c.l.b16 %v3646
        %v3670 = vunpack.c.l.b16 %v3647
        %v3671 = vunpack.c.l.b16 %v3648
        %v3672 = vunpack.c.l.b16 %v3649
        %v3673 = vunpack.c.l.b16 %v3650
        %v3674 = vunpack.c.l.b16 %v3651
        %v3675 = vunpack.c.l.b16 %v3652
        %v3676 = vunpack.c.l.b16 %v3653
        %v3677 = vpack.c.b16 %v3670, %v3669
        %v3678 = vpack.c.b16 %v3672, %v3671
        %v3679 = vpack.c.b16 %v3674, %v3673
        %v3680 = vpack.c.b16 %v3676, %v3675
        %v3686 = vsel %vm2406, %v3645, 0
        %3688 = vmatprep.subr.bf16.mxu0 0
        %3689 = vmatpush1.bf16.msra.mxu0 %v3677
        %3690 = vmatprep.subr.bf16.mxu0 0
        %3691 = vmatpush1.bf16.msra.mxu0 %v3678
        %3692 = vmatprep.subr.bf16.mxu0 0
        %3693 = vmatpush1.bf16.msra.mxu0 %v3679
        %3694 = vmatprep.subr.bf16.mxu0 0
        %3695 = vmatpush1.bf16.msra.mxu0 %v3680
        %3696 = vmatprep.subr.bf16.mxu0 0
        %3697 = vmatpush1.bf16.msra.mxu0 0
        %3698 = vmatprep.subr.bf16.mxu0 0
        %3699 = vmatpush1.bf16.msra.mxu0 0
        %3700 = vmatprep.subr.bf16.mxu0 0
        %3701 = vmatpush1.bf16.msra.mxu0 0
        %3702 = vmatprep.subr.bf16.mxu0 0
        %3703 = vmatpush1.bf16.msra.mxu0 0
        %3704 = vmatprep.subr.bf16.mxu0 0
        %3705 = vmatpush1.bf16.msra.mxu0 0
        %3706 = vmatprep.subr.bf16.mxu0 0
        %3707 = vmatpush1.bf16.msra.mxu0 0
        %3708 = vmatprep.subr.bf16.mxu0 0
        %3709 = vmatpush1.bf16.msra.mxu0 0
        %3710 = vmatprep.subr.bf16.mxu0 0
        %3711 = vmatpush1.bf16.msra.mxu0 0
        %3712 = vmatprep.subr.bf16.mxu0 0
        %3713 = vmatpush1.bf16.msra.mxu0 0
        %3714 = vmatprep.subr.bf16.mxu0 0
        %3715 = vmatpush1.bf16.msra.mxu0 0
        %3716 = vmatprep.subr.bf16.mxu0 0
        %3717 = vmatpush1.bf16.msra.mxu0 0
        %3718 = vmatprep.subr.bf16.mxu0 0
        %3719 = vmatpush1.bf16.msra.mxu0 0
        %3720 = vmatprep.mubr.bf16.mxu0 0
        %3721 = vmatmul.mubr.bf16.gmra.mrb[0].mxu0 %v3686
        %v3722 = vpop.f32.mrb[0].mxu0
        %v3723 = vadd.f32 %v3659, %v3722
        %v3724 = vpop.f32.mrb[0].mxu0
        %v3725 = vpop.f32.mrb[0].mxu0
        %v3726 = vpop.f32.mrb[0].mxu0
        %3727 = vdwg.mxu0
        %3729 = vrot.lane.b32.xlu0 %v760, 127
        %v3730 = vpop.permute.xlu0 %3729
        %s3731 = vtos %v3730
        %v3732 = vstv %s3731
        %v3734 = vmul.f32 %v3723, %v3732
        %v3735 = vadd.f32 %v3568, %v3734
        %v3736 = vld [vmem:[%s14 + $0x1] sm:$0x1]
        %v3737 = vld [vmem:[%s15 + $0x1] sm:$0x1]
        %v3738 = vsel %vm520, %v3735, 0.0
        %3739 = vadd.xlane.f32.xlu0 %v3738
        %v3740 = vpop.xlane.xlu0 %3739
        %v3741 = vmul.f32 %v3740, %v3548
        %v3742 = vsub.f32 %v3735, %v3741
        %v3743 = vmul.f32 %v3742, %v3742
        %v3744 = vsel %vm520, %v3743, 0.0
        %3745 = vadd.xlane.f32.xlu0 %v3744
        %v3746 = vpop.xlane.xlu0 %3745
        %v3747 = vmul.f32 %v3746, %v3548
        %v3748 = vadd.f32 %v3747, 1e-05
        %v3749 = vrsqrt.pop %v3748
        %v3750 = vmul.f32 %v3742, %v3749
        %v3751 = vlaneseq
        %v3752 = vshrl.u32 %v3751, 7
        %v3753 = vsub.s32 0, %v3752
        %v3754 = vrot.slane %v3736, %v3753
        %v3755 = vmul.f32 %v3750, %v3754
        %v3756 = vlaneseq
        %v3757 = vshrl.u32 %v3756, 7
        %v3758 = vsub.s32 0, %v3757
        %v3759 = vrot.slane %v3737, %v3758
        %v3760 = vadd.f32 %v3755, %v3759
        %v3761 = vld [vmem:[%s14 + $0x2] sm:$0x1]
        %v3762 = vld [vmem:[%s15 + $0x2] sm:$0x1]
        %v3763 = vsel %vm520, %v3760, 0.0
        %3764 = vadd.xlane.f32.xlu0 %v3763
        %v3765 = vpop.xlane.xlu0 %3764
        %v3766 = vmul.f32 %v3765, %v3548
        %v3767 = vsub.f32 %v3760, %v3766
        %v3768 = vmul.f32 %v3767, %v3767
        %v3769 = vsel %vm520, %v3768, 0.0
        %3770 = vadd.xlane.f32.xlu0 %v3769
        %v3771 = vpop.xlane.xlu0 %3770
        %v3772 = vmul.f32 %v3771, %v3548
        %v3773 = vadd.f32 %v3772, 1e-05
        %v3774 = vrsqrt.pop %v3773
        %v3775 = vmul.f32 %v3767, %v3774
        %v3776 = vlaneseq
        %v3777 = vshrl.u32 %v3776, 7
        %v3778 = vsub.s32 0, %v3777
        %v3779 = vrot.slane %v3761, %v3778
        %v3780 = vmul.f32 %v3775, %v3779
        %v3781 = vlaneseq
        %v3782 = vshrl.u32 %v3781, 7
        %v3783 = vsub.s32 0, %v3782
        %v3784 = vrot.slane %v3762, %v3783
        %v3785 = vadd.f32 %v3780, %v3784
        %3786 = vst.msk [vmem:[%s512] sm:$0xff] %vm520, %v3785
        %s3787 = sand.u32 %s379, 1
        %s3788 = scalar_lea.sflag [#allocation3], %s3787
        %s3789 = sand.u32 %s379, 1
        %s3790 = smul.addr %s3789, 8
        %s3791 = scalar_lea.vmem [#allocation2], %s3790
        // Predicated region
        $region85: #{tpu_custom_call.1} parent=83 // pred_check
          %p3792 = pneg %p389
        $region86: #{tpu_custom_call.1} parent=83 // pred_check_branch
          %3794 = sbr.rel (%p3792) target = $region88
        $region87: #{tpu_custom_call.1} parent=83 // pred_region
          %s3796 = ssub.s32 128, 128
          %3797 = vsyncadd %s3788, %s3796
          %s3798 = smul.addr %s30, 128
          %s3799 = scalar_lea.hbm %s16, %s3798
          %s3801 = sshll.u32 %s3791, 4
          %s3802 = int_to_ptr.vmem [resolvable:$true] %s3801
          %3804 = dma.vmem_to_hbm [thread:$0]  %s3802, 128, %s3799, %s3788
        $region88: #{tpu_custom_call.1} parent=83 // pred_fallthru
          _
      $region84: #{tpu_custom_call.1} parent=5 // pred_fallthru
        _
      %p3805 = scmp.le.s32.totalorder 2, %s25
      // Predicated region
      $region89: #{tpu_custom_call.1} parent=5 // pred_check
        %p3806 = pneg %p3805
      $region90: #{tpu_custom_call.1} parent=5 // pred_check_branch
        %3808 = sbr.rel (%p3806) target = $region92
      $region91: #{tpu_custom_call.1} parent=5 // pred_region
        %s3809 = ssub.s32 %s25, 2
        // Predicated region
        $region93: #{tpu_custom_call.1} parent=91 // pred_check
          %p3810 = pneg %p395
        $region94: #{tpu_custom_call.1} parent=91 // pred_check_branch
          %3812 = sbr.rel (%p3810) target = $region96
        $region95: #{tpu_custom_call.1} parent=91 // pred_region
          %s3813 = sand.u32 %s380, 1
          %s3814 = scalar_lea.sflag [#allocation3], %s3813
          %s3815 = sand.u32 %s380, 1
          %s3816 = smul.addr %s3815, 8
          %s3817 = scalar_lea.vmem [#allocation2], %s3816
          %3818 = dma.done %s3814, 128
        $region96: #{tpu_custom_call.1} parent=91 // pred_fallthru
          _
      $region92: #{tpu_custom_call.1} parent=5 // pred_fallthru
        _
    $region6: #{tpu_custom_call.1} parent=1 // loop_footer
      %s29 = sadd.s32 1, %s25
    $region7: #{tpu_custom_call.1} parent=1 // loop_footer_branch
      %24 = sbr.rel target = $region3
    $region8: #{tpu_custom_call.1} parent=1 // loop_exit
      _
    %3819 = vsyncpa [#allocation3], 1
    %s3820 = scalar_lea.sflag [#allocation3], 1
    %3821 = vsyncpa %s3820, 1

</llo_original>
